<compile_context>
chip_gen: v6e
topology: v6e:2x2x1
jax: 0.10.0
libtpu: 0.0.40
codegen_flags: <defaults>
</compile_context>

<pallas_src>
import jax
import jax.numpy as jnp
from jax.experimental import pallas as pl
from jax.experimental.pallas import tpu as pltpu


def _round_up(x, m):
    return (x + m - 1) // m * m


def _cdiv(a, b):
    return -(-a // b)


def _actor_kernel(x_ref, w1_ref, w23_ref, w4_ref, b_ref, o_ref):
    """One batch tile of sigmoid(relu(relu(relu(x@W1+b1)@W2+b2)@W3+b3)@W4+b4)."""
    bf16, f32 = jnp.bfloat16, jnp.float32

    # fc1: single K=32 bf16 dot (concat was fused in the wrapper), f32 acc.
    h = jnp.dot(x_ref[...], w1_ref[...], preferred_element_type=f32)
    h = jnp.maximum(h + b_ref[0:1, :], 0.0)

    # fc2 + ReLU
    h = jnp.dot(h.astype(bf16), w23_ref[0], preferred_element_type=f32)
    h = jnp.maximum(h + b_ref[1:2, :], 0.0)

    # fc3 + ReLU
    h = jnp.dot(h.astype(bf16), w23_ref[1], preferred_element_type=f32)
    h = jnp.maximum(h + b_ref[2:3, :], 0.0)

    # fc4 (output padded to a lane-dense 128 lanes) + sigmoid (EUP tanh).
    n_pad = o_ref.shape[1]
    z = jnp.dot(h.astype(bf16), w4_ref[...], preferred_element_type=f32)
    z = z + b_ref[3:4, :n_pad]
    o_ref[...] = (0.5 * (jnp.tanh(0.5 * z) + 1.0)).astype(o_ref.dtype)


def pack_params(params):
    """One-time packing: bf16 weights, stacked W2/W3, lane-padded W4, packed biases."""
    bf16 = jnp.bfloat16
    H = params["w2"].shape[0]
    action_dim = params["w4"].shape[1]
    n_pad = _round_up(action_dim, 128)

    w1 = params["w1"].astype(bf16)                                    # [K, H]
    w23 = jnp.stack([params["w2"], params["w3"]], axis=0).astype(bf16)  # [2, H, H]
    w4p = jnp.zeros((H, n_pad), bf16).at[:, :action_dim].set(
        params["w4"].astype(bf16))
    b4p = jnp.zeros((1, H), jnp.float32).at[:, :action_dim].set(params["b4"])
    biases = jnp.concatenate(
        [params["b1"], params["b2"], params["b3"], b4p], axis=0
    ).astype(jnp.float32)                                             # [4, H]
    return dict(w1=w1, w23=w23, w4p=w4p, biases=biases,
                hidden=H, action_dim=action_dim, n_pad=n_pad)


def actor_forward(state, goal, packed, *, batch_tile=512):
    """state: [B, state_dim], goal: [B, goal_dim] -> [B, action_dim] (float32)."""
    H = packed["hidden"]
    action_dim = packed["action_dim"]
    n_pad = packed["n_pad"]
    B = state.shape[0]
    K = state.shape[1] + goal.shape[1]

    # Balanced batch tiling (minimal padding); force >= 2 tiles when B >= 16 so
    # both v7x TensorCores get a batch tile. 16-row alignment = bf16 sublane pack.
    n_tiles = _cdiv(B, batch_tile)
    if B >= 16 and n_tiles == 1:
        n_tiles = 2
    TB = _round_up(_cdiv(B, n_tiles), 16)
    Bp = _round_up(B, TB)

    # Fused concat + bf16 cast in the wrapper -> one K=32 MXU pass in the kernel.
    x = jnp.concatenate([state, goal], axis=-1).astype(jnp.bfloat16)
    if Bp != B:
        x = jnp.pad(x, ((0, Bp - B), (0, 0)))

    # TODO(synk): at tiny inference batches this kernel is weight-DMA/launch
    # bound; the real win is batching many actor queries per call or keeping
    # the ~1.2 MiB of weights VMEM-resident across pallas_calls (cross-call
    # semaphore-future pattern), which needs a different calling convention.

    def run(single_buffer_weights):
        resident = (dict(pipeline_mode=pl.Buffered(1))
                    if single_buffer_weights else {})
        return pl.pallas_call(
            _actor_kernel,
            out_shape=jax.ShapeDtypeStruct((Bp, n_pad), jnp.bfloat16),
            grid=(Bp // TB,),
            in_specs=[
                pl.BlockSpec((TB, K), lambda i: (i, 0)),                    # x tile
                pl.BlockSpec((K, H), lambda i: (0, 0), **resident),         # W1
                pl.BlockSpec((2, H, H), lambda i: (0, 0, 0), **resident),   # W2, W3
                pl.BlockSpec((H, n_pad), lambda i: (0, 0), **resident),     # W4 (padded)
                pl.BlockSpec((4, H), lambda i: (0, 0), **resident),         # biases
            ],
            out_specs=pl.BlockSpec((TB, n_pad), lambda i: (i, 0)),
            compiler_params=pltpu.CompilerParams(
                dimension_semantics=("parallel",),   # megacore split of batch
                vmem_limit_bytes=24 << 20,           # footprint << 24 MiB; v7x-safe
            ),
        )(x, packed["w1"], packed["w23"], packed["w4p"], packed["biases"])

    try:
        out = run(True)        # single-buffered resident weights (VMEM headroom)
    except Exception:          # pl.Buffered(1) unsupported -> default pipelining
        out = run(False)

    return out[:B, :action_dim].astype(jnp.float32)


def init_params(key, in_dim, hidden, action_dim):
    """Deterministic PyTorch-Linear-style uniform init; weights stored [in, out]."""
    def linear(k, fan_in, fan_out):
        kw, kb = jax.random.split(k)
        bound = 1.0 / jnp.sqrt(fan_in)
        w = jax.random.uniform(kw, (fan_in, fan_out), jnp.float32, -bound, bound)
        b = jax.random.uniform(kb, (1, fan_out), jnp.float32, -bound, bound)
        return w, b

    k1, k2, k3, k4 = jax.random.split(key, 4)
    w1, b1 = linear(k1, in_dim, hidden)
    w2, b2 = linear(k2, hidden, hidden)
    w3, b3 = linear(k3, hidden, hidden)
    w4, b4 = linear(k4, hidden, action_dim)
    return dict(w1=w1, b1=b1, w2=w2, b2=b2, w3=w3, b3=b3, w4=w4, b4=b4)


def _reference(state, goal, params):
    """JAX reference with the same bf16-operand / f32-accumulate precision."""
    bf16, f32 = jnp.bfloat16, jnp.float32
    x = jnp.concatenate([state, goal], axis=-1)
    h = jnp.dot(x.astype(bf16), params["w1"].astype(bf16),
                preferred_element_type=f32) + params["b1"]
    h = jnp.maximum(h, 0.0)
    h = jnp.dot(h.astype(bf16), params["w2"].astype(bf16),
                preferred_element_type=f32) + params["b2"]
    h = jnp.maximum(h, 0.0)
    h = jnp.dot(h.astype(bf16), params["w3"].astype(bf16),
                preferred_element_type=f32) + params["b3"]
    h = jnp.maximum(h, 0.0)
    z = jnp.dot(h.astype(bf16), params["w4"].astype(bf16),
                preferred_element_type=f32) + params["b4"]
    return jax.nn.sigmoid(z)


if __name__ == "__main__":
    # flatdim(state)=24, flatdim(goal)=8, flatdim(action)=6, hidden=512, batch=8.
    B, STATE_DIM, GOAL_DIM, ACTION_DIM, HIDDEN = 8, 24, 8, 6, 512

    key = jax.random.PRNGKey(0)
    k_state, k_goal, k_params = jax.random.split(key, 3)
    state = jax.random.normal(k_state, (B, STATE_DIM), jnp.float32)
    goal = jax.random.normal(k_goal, (B, GOAL_DIM), jnp.float32)
    params = init_params(k_params, STATE_DIM + GOAL_DIM, HIDDEN, ACTION_DIM)
    packed = pack_params(params)

    out = actor_forward(state, goal, packed)
    out = jax.block_until_ready(out)

    ref = _reference(state, goal, params)
    assert out.shape == (B, ACTION_DIM)
    max_err = float(jnp.max(jnp.abs(out - ref)))
    # bf16 operands everywhere + bf16 output writeback -> ~bf16-level tolerance.
    assert jnp.allclose(out, ref, atol=5e-3, rtol=5e-3), \
        f"mismatch vs JAX reference (max abs err {max_err})"

    print("KERNEL_OK")
</pallas_src>

<mosaic_0001>
module attributes {stable_mosaic.version = 11 : i64} {
  func.func @_actor_kernel(%arg0: i32, %arg1: memref<16x32xbf16, #tpu.memory_space<vmem>>, %arg2: memref<32x512xbf16, #tpu.memory_space<vmem>>, %arg3: memref<2x512x512xbf16, #tpu.memory_space<vmem>>, %arg4: memref<512x128xbf16, #tpu.memory_space<vmem>>, %arg5: memref<4x512xf32, #tpu.memory_space<vmem>>, %arg6: memref<16x128xbf16, #tpu.memory_space<vmem>>) attributes {dimension_semantics = [#tpu.dimension_semantics<parallel>], iteration_bounds = array<i64: 1>, scalar_prefetch = 0 : i64, scratch_operands = 0 : i64, tpu.core_type = #tpu.core_type<tc>, window_params = [{transform_indices = @transform_0, window_bounds = array<i64: 16, 32>}, {pipeline_mode = #tpu.pipeline_mode<synchronous>, transform_indices = @transform_1, window_bounds = array<i64: 32, 512>}, {pipeline_mode = #tpu.pipeline_mode<synchronous>, transform_indices = @transform_2, window_bounds = array<i64: 2, 512, 512>}, {pipeline_mode = #tpu.pipeline_mode<synchronous>, transform_indices = @transform_3, window_bounds = array<i64: 512, 128>}, {pipeline_mode = #tpu.pipeline_mode<synchronous>, transform_indices = @transform_4, window_bounds = array<i64: 4, 512>}, {transform_indices = @transform_5, window_bounds = array<i64: 16, 128>}]} {
    %c0 = arith.constant 0 : index
    %c0_0 = arith.constant 0 : index
    %0 = vector.load %arg1[%c0, %c0_0] : memref<16x32xbf16, #tpu.memory_space<vmem>>, vector<16x32xbf16>
    %c0_1 = arith.constant 0 : index
    %c0_2 = arith.constant 0 : index
    %1 = vector.load %arg2[%c0_1, %c0_2] : memref<32x512xbf16, #tpu.memory_space<vmem>>, vector<32x512xbf16>
    %cst = arith.constant dense<0.000000e+00> : vector<16x512xf32>
    %2 = tpu.matmul %0, %1, %cst {dimension_numbers = #tpu.dot_dimension_numbers<[1], [0], [0], [1], [0, 0, 1, 1], [], []>} : vector<16x32xbf16>, vector<32x512xbf16>, vector<16x512xf32> -> vector<16x512xf32>
    %c0_3 = arith.constant 0 : index
    %c0_4 = arith.constant 0 : index
    %3 = vector.load %arg5[%c0_3, %c0_4] : memref<4x512xf32, #tpu.memory_space<vmem>>, vector<1x512xf32>
    %4 = vector.broadcast %3 : vector<1x512xf32> to vector<16x512xf32>
    %5 = arith.addf %2, %4 : vector<16x512xf32>
    %cst_5 = arith.constant 0.000000e+00 : f32
    %6 = vector.broadcast %cst_5 : f32 to vector<16x512xf32>
    %7 = arith.maximumf %5, %6 : vector<16x512xf32>
    %8 = arith.truncf %7 : vector<16x512xf32> to vector<16x512xbf16>
    %c0_6 = arith.constant 0 : index
    %c0_7 = arith.constant 0 : index
    %c0_8 = arith.constant 0 : index
    %9 = vector.load %arg3[%c0_6, %c0_7, %c0_8] : memref<2x512x512xbf16, #tpu.memory_space<vmem>>, vector<1x512x512xbf16>
    %10 = vector.shape_cast %9 : vector<1x512x512xbf16> to vector<512x512xbf16>
    %cst_9 = arith.constant dense<0.000000e+00> : vector<16x512xf32>
    %11 = tpu.matmul %8, %10, %cst_9 {dimension_numbers = #tpu.dot_dimension_numbers<[1], [0], [0], [1], [0, 0, 1, 1], [], []>} : vector<16x512xbf16>, vector<512x512xbf16>, vector<16x512xf32> -> vector<16x512xf32>
    %c1 = arith.constant 1 : index
    %c0_10 = arith.constant 0 : index
    %12 = vector.load %arg5[%c1, %c0_10] : memref<4x512xf32, #tpu.memory_space<vmem>>, vector<1x512xf32>
    %13 = vector.broadcast %12 : vector<1x512xf32> to vector<16x512xf32>
    %14 = arith.addf %11, %13 : vector<16x512xf32>
    %cst_11 = arith.constant 0.000000e+00 : f32
    %15 = vector.broadcast %cst_11 : f32 to vector<16x512xf32>
    %16 = arith.maximumf %14, %15 : vector<16x512xf32>
    %17 = arith.truncf %16 : vector<16x512xf32> to vector<16x512xbf16>
    %c1_12 = arith.constant 1 : index
    %c0_13 = arith.constant 0 : index
    %c0_14 = arith.constant 0 : index
    %18 = vector.load %arg3[%c1_12, %c0_13, %c0_14] : memref<2x512x512xbf16, #tpu.memory_space<vmem>>, vector<1x512x512xbf16>
    %19 = vector.shape_cast %18 : vector<1x512x512xbf16> to vector<512x512xbf16>
    %cst_15 = arith.constant dense<0.000000e+00> : vector<16x512xf32>
    %20 = tpu.matmul %17, %19, %cst_15 {dimension_numbers = #tpu.dot_dimension_numbers<[1], [0], [0], [1], [0, 0, 1, 1], [], []>} : vector<16x512xbf16>, vector<512x512xbf16>, vector<16x512xf32> -> vector<16x512xf32>
    %c2 = arith.constant 2 : index
    %c0_16 = arith.constant 0 : index
    %21 = vector.load %arg5[%c2, %c0_16] : memref<4x512xf32, #tpu.memory_space<vmem>>, vector<1x512xf32>
    %22 = vector.broadcast %21 : vector<1x512xf32> to vector<16x512xf32>
    %23 = arith.addf %20, %22 : vector<16x512xf32>
    %cst_17 = arith.constant 0.000000e+00 : f32
    %24 = vector.broadcast %cst_17 : f32 to vector<16x512xf32>
    %25 = arith.maximumf %23, %24 : vector<16x512xf32>
    %26 = arith.truncf %25 : vector<16x512xf32> to vector<16x512xbf16>
    %c0_18 = arith.constant 0 : index
    %c0_19 = arith.constant 0 : index
    %27 = vector.load %arg4[%c0_18, %c0_19] : memref<512x128xbf16, #tpu.memory_space<vmem>>, vector<512x128xbf16>
    %cst_20 = arith.constant dense<0.000000e+00> : vector<16x128xf32>
    %28 = tpu.matmul %26, %27, %cst_20 {dimension_numbers = #tpu.dot_dimension_numbers<[1], [0], [0], [1], [0, 0, 1, 1], [], []>} : vector<16x512xbf16>, vector<512x128xbf16>, vector<16x128xf32> -> vector<16x128xf32>
    %c3 = arith.constant 3 : index
    %c0_21 = arith.constant 0 : index
    %29 = vector.load %arg5[%c3, %c0_21] : memref<4x512xf32, #tpu.memory_space<vmem>>, vector<1x128xf32>
    %30 = vector.broadcast %29 : vector<1x128xf32> to vector<16x128xf32>
    %31 = arith.addf %28, %30 : vector<16x128xf32>
    %cst_22 = arith.constant 5.000000e-01 : f32
    %32 = vector.broadcast %cst_22 : f32 to vector<16x128xf32>
    %33 = arith.mulf %32, %31 : vector<16x128xf32>
    %34 = math.tanh %33 : vector<16x128xf32>
    %cst_23 = arith.constant 1.000000e+00 : f32
    %35 = vector.broadcast %cst_23 : f32 to vector<16x128xf32>
    %36 = arith.addf %34, %35 : vector<16x128xf32>
    %cst_24 = arith.constant 5.000000e-01 : f32
    %37 = vector.broadcast %cst_24 : f32 to vector<16x128xf32>
    %38 = arith.mulf %37, %36 : vector<16x128xf32>
    %39 = arith.truncf %38 : vector<16x128xf32> to vector<16x128xbf16>
    %c0_25 = arith.constant 0 : index
    %c0_26 = arith.constant 0 : index
    %40 = vector.load %arg6[%c0_25, %c0_26] : memref<16x128xbf16, #tpu.memory_space<vmem>>, vector<16x128xbf16>
    tpu.vector_store %arg6[%c0_25, %c0_26], %39 {strides = array<i32>} : memref<16x128xbf16, #tpu.memory_space<vmem>>, vector<16x128xbf16>,
    return
  }
  func.func @transform_0(%arg0: i32) -> (i32, i32) {
    %c0_i32 = arith.constant 0 : i32
    %c0_i32_0 = arith.constant 0 : i32
    return %arg0, %c0_i32 : i32, i32
  }
  func.func @transform_1(%arg0: i32) -> (i32, i32) {
    %c0_i32 = arith.constant 0 : i32
    %c0_i32_0 = arith.constant 0 : i32
    %c0_i32_1 = arith.constant 0 : i32
    return %c0_i32, %c0_i32_0 : i32, i32
  }
  func.func @transform_2(%arg0: i32) -> (i32, i32, i32) {
    %c0_i32 = arith.constant 0 : i32
    %c0_i32_0 = arith.constant 0 : i32
    %c0_i32_1 = arith.constant 0 : i32
    %c0_i32_2 = arith.constant 0 : i32
    return %c0_i32, %c0_i32_0, %c0_i32_1 : i32, i32, i32
  }
  func.func @transform_3(%arg0: i32) -> (i32, i32) {
    %c0_i32 = arith.constant 0 : i32
    %c0_i32_0 = arith.constant 0 : i32
    %c0_i32_1 = arith.constant 0 : i32
    return %c0_i32, %c0_i32_0 : i32, i32
  }
  func.func @transform_4(%arg0: i32) -> (i32, i32) {
    %c0_i32 = arith.constant 0 : i32
    %c0_i32_0 = arith.constant 0 : i32
    %c0_i32_1 = arith.constant 0 : i32
    return %c0_i32, %c0_i32_0 : i32, i32
  }
  func.func @transform_5(%arg0: i32) -> (i32, i32) {
    %c0_i32 = arith.constant 0 : i32
    %c0_i32_0 = arith.constant 0 : i32
    return %arg0, %c0_i32 : i32, i32
  }
}

module attributes {stable_mosaic.version = 11 : i64} {
  func.func @_actor_kernel(%arg0: i32, %arg1: memref<16x32xbf16, #tpu.memory_space<vmem>>, %arg2: memref<32x512xbf16, #tpu.memory_space<vmem>>, %arg3: memref<2x512x512xbf16, #tpu.memory_space<vmem>>, %arg4: memref<512x128xbf16, #tpu.memory_space<vmem>>, %arg5: memref<4x512xf32, #tpu.memory_space<vmem>>, %arg6: memref<16x128xbf16, #tpu.memory_space<vmem>>) attributes {dimension_semantics = [#tpu.dimension_semantics<parallel>], iteration_bounds = array<i64: 1>, scalar_prefetch = 0 : i64, scratch_operands = 0 : i64, tpu.core_type = #tpu.core_type<tc>, window_params = [{transform_indices = @transform_0, window_bounds = array<i64: 16, 32>}, {pipeline_mode = #tpu.pipeline_mode<synchronous>, transform_indices = @transform_1, window_bounds = array<i64: 32, 512>}, {pipeline_mode = #tpu.pipeline_mode<synchronous>, transform_indices = @transform_2, window_bounds = array<i64: 2, 512, 512>}, {pipeline_mode = #tpu.pipeline_mode<synchronous>, transform_indices = @transform_3, window_bounds = array<i64: 512, 128>}, {pipeline_mode = #tpu.pipeline_mode<synchronous>, transform_indices = @transform_4, window_bounds = array<i64: 4, 512>}, {transform_indices = @transform_5, window_bounds = array<i64: 16, 128>}]} {
    %c0 = arith.constant 0 : index
    %c0_0 = arith.constant 0 : index
    %0 = vector.load %arg1[%c0, %c0_0] : memref<16x32xbf16, #tpu.memory_space<vmem>>, vector<16x32xbf16>
    %c0_1 = arith.constant 0 : index
    %c0_2 = arith.constant 0 : index
    %1 = vector.load %arg2[%c0_1, %c0_2] : memref<32x512xbf16, #tpu.memory_space<vmem>>, vector<32x512xbf16>
    %cst = arith.constant dense<0.000000e+00> : vector<16x512xf32>
    %2 = tpu.matmul %0, %1, %cst {dimension_numbers = #tpu.dot_dimension_numbers<[1], [0], [0], [1], [0, 0, 1, 1], [], []>} : vector<16x32xbf16>, vector<32x512xbf16>, vector<16x512xf32> -> vector<16x512xf32>
    %c0_3 = arith.constant 0 : index
    %c0_4 = arith.constant 0 : index
    %3 = vector.load %arg5[%c0_3, %c0_4] : memref<4x512xf32, #tpu.memory_space<vmem>>, vector<1x512xf32>
    %4 = vector.broadcast %3 : vector<1x512xf32> to vector<16x512xf32>
    %5 = arith.addf %2, %4 : vector<16x512xf32>
    %cst_5 = arith.constant 0.000000e+00 : f32
    %6 = vector.broadcast %cst_5 : f32 to vector<16x512xf32>
    %7 = arith.maximumf %5, %6 : vector<16x512xf32>
    %8 = arith.truncf %7 : vector<16x512xf32> to vector<16x512xbf16>
    %c0_6 = arith.constant 0 : index
    %c0_7 = arith.constant 0 : index
    %c0_8 = arith.constant 0 : index
    %9 = vector.load %arg3[%c0_6, %c0_7, %c0_8] : memref<2x512x512xbf16, #tpu.memory_space<vmem>>, vector<1x512x512xbf16>
    %10 = vector.shape_cast %9 : vector<1x512x512xbf16> to vector<512x512xbf16>
    %cst_9 = arith.constant dense<0.000000e+00> : vector<16x512xf32>
    %11 = tpu.matmul %8, %10, %cst_9 {dimension_numbers = #tpu.dot_dimension_numbers<[1], [0], [0], [1], [0, 0, 1, 1], [], []>} : vector<16x512xbf16>, vector<512x512xbf16>, vector<16x512xf32> -> vector<16x512xf32>
    %c1 = arith.constant 1 : index
    %c0_10 = arith.constant 0 : index
    %12 = vector.load %arg5[%c1, %c0_10] : memref<4x512xf32, #tpu.memory_space<vmem>>, vector<1x512xf32>
    %13 = vector.broadcast %12 : vector<1x512xf32> to vector<16x512xf32>
    %14 = arith.addf %11, %13 : vector<16x512xf32>
    %cst_11 = arith.constant 0.000000e+00 : f32
    %15 = vector.broadcast %cst_11 : f32 to vector<16x512xf32>
    %16 = arith.maximumf %14, %15 : vector<16x512xf32>
    %17 = arith.truncf %16 : vector<16x512xf32> to vector<16x512xbf16>
    %c1_12 = arith.constant 1 : index
    %c0_13 = arith.constant 0 : index
    %c0_14 = arith.constant 0 : index
    %18 = vector.load %arg3[%c1_12, %c0_13, %c0_14] : memref<2x512x512xbf16, #tpu.memory_space<vmem>>, vector<1x512x512xbf16>
    %19 = vector.shape_cast %18 : vector<1x512x512xbf16> to vector<512x512xbf16>
    %cst_15 = arith.constant dense<0.000000e+00> : vector<16x512xf32>
    %20 = tpu.matmul %17, %19, %cst_15 {dimension_numbers = #tpu.dot_dimension_numbers<[1], [0], [0], [1], [0, 0, 1, 1], [], []>} : vector<16x512xbf16>, vector<512x512xbf16>, vector<16x512xf32> -> vector<16x512xf32>
    %c2 = arith.constant 2 : index
    %c0_16 = arith.constant 0 : index
    %21 = vector.load %arg5[%c2, %c0_16] : memref<4x512xf32, #tpu.memory_space<vmem>>, vector<1x512xf32>
    %22 = vector.broadcast %21 : vector<1x512xf32> to vector<16x512xf32>
    %23 = arith.addf %20, %22 : vector<16x512xf32>
    %cst_17 = arith.constant 0.000000e+00 : f32
    %24 = vector.broadcast %cst_17 : f32 to vector<16x512xf32>
    %25 = arith.maximumf %23, %24 : vector<16x512xf32>
    %26 = arith.truncf %25 : vector<16x512xf32> to vector<16x512xbf16>
    %c0_18 = arith.constant 0 : index
    %c0_19 = arith.constant 0 : index
    %27 = vector.load %arg4[%c0_18, %c0_19] : memref<512x128xbf16, #tpu.memory_space<vmem>>, vector<512x128xbf16>
    %cst_20 = arith.constant dense<0.000000e+00> : vector<16x128xf32>
    %28 = tpu.matmul %26, %27, %cst_20 {dimension_numbers = #tpu.dot_dimension_numbers<[1], [0], [0], [1], [0, 0, 1, 1], [], []>} : vector<16x512xbf16>, vector<512x128xbf16>, vector<16x128xf32> -> vector<16x128xf32>
    %c3 = arith.constant 3 : index
    %c0_21 = arith.constant 0 : index
    %29 = vector.load %arg5[%c3, %c0_21] : memref<4x512xf32, #tpu.memory_space<vmem>>, vector<1x128xf32>
    %30 = vector.broadcast %29 : vector<1x128xf32> to vector<16x128xf32>
    %31 = arith.addf %28, %30 : vector<16x128xf32>
    %cst_22 = arith.constant 5.000000e-01 : f32
    %32 = vector.broadcast %cst_22 : f32 to vector<16x128xf32>
    %33 = arith.mulf %32, %31 : vector<16x128xf32>
    %34 = math.tanh %33 : vector<16x128xf32>
    %cst_23 = arith.constant 1.000000e+00 : f32
    %35 = vector.broadcast %cst_23 : f32 to vector<16x128xf32>
    %36 = arith.addf %34, %35 : vector<16x128xf32>
    %cst_24 = arith.constant 5.000000e-01 : f32
    %37 = vector.broadcast %cst_24 : f32 to vector<16x128xf32>
    %38 = arith.mulf %37, %36 : vector<16x128xf32>
    %39 = arith.truncf %38 : vector<16x128xf32> to vector<16x128xbf16>
    %c0_25 = arith.constant 0 : index
    %c0_26 = arith.constant 0 : index
    %40 = vector.load %arg6[%c0_25, %c0_26] : memref<16x128xbf16, #tpu.memory_space<vmem>>, vector<16x128xbf16>
    tpu.vector_store %arg6[%c0_25, %c0_26], %39 {strides = array<i32>} : memref<16x128xbf16, #tpu.memory_space<vmem>>, vector<16x128xbf16>,
    return
  }
  func.func @transform_0(%arg0: i32) -> (i32, i32) {
    %c0_i32 = arith.constant 0 : i32
    %c0_i32_0 = arith.constant 0 : i32
    return %arg0, %c0_i32 : i32, i32
  }
  func.func @transform_1(%arg0: i32) -> (i32, i32) {
    %c0_i32 = arith.constant 0 : i32
    %c0_i32_0 = arith.constant 0 : i32
    %c0_i32_1 = arith.constant 0 : i32
    return %c0_i32, %c0_i32_0 : i32, i32
  }
  func.func @transform_2(%arg0: i32) -> (i32, i32, i32) {
    %c0_i32 = arith.constant 0 : i32
    %c0_i32_0 = arith.constant 0 : i32
    %c0_i32_1 = arith.constant 0 : i32
    %c0_i32_2 = arith.constant 0 : i32
    return %c0_i32, %c0_i32_0, %c0_i32_1 : i32, i32, i32
  }
  func.func @transform_3(%arg0: i32) -> (i32, i32) {
    %c0_i32 = arith.constant 0 : i32
    %c0_i32_0 = arith.constant 0 : i32
    %c0_i32_1 = arith.constant 0 : i32
    return %c0_i32, %c0_i32_0 : i32, i32
  }
  func.func @transform_4(%arg0: i32) -> (i32, i32) {
    %c0_i32 = arith.constant 0 : i32
    %c0_i32_0 = arith.constant 0 : i32
    %c0_i32_1 = arith.constant 0 : i32
    return %c0_i32, %c0_i32_0 : i32, i32
  }
  func.func @transform_5(%arg0: i32) -> (i32, i32) {
    %c0_i32 = arith.constant 0 : i32
    %c0_i32_0 = arith.constant 0 : i32
    return %arg0, %c0_i32 : i32, i32
  }
}

</mosaic_0001>

<llo_original>
// kernel: tpu_custom_call.1
$region0: #{tpu_custom_call.1}
  #allocation0 [shape = 'u32[]', space=smem, size = 0x4, offset = 0x4, fixed_abs, tag = 'smem constant byte address 0x4 - core index']
  #allocation1 [shape = 'u32[144,128]{1,0:T(1,128)}', space=vmem, size = 0x12000, scoped, tag = 'internal scratch']
  %s0 = inlined_call_operand.hbm [shape: bf16[16,32], index: 0, kind: input, shape index: {}]
  %s1 = inlined_call_operand.hbm [shape: bf16[32,512], index: 1, kind: input, shape index: {}]
  %s2 = inlined_call_operand.hbm [shape: bf16[2,512,512], index: 2, kind: input, shape index: {}]
  %s3 = inlined_call_operand.hbm [shape: bf16[512,128], index: 3, kind: input, shape index: {}]
  %s4 = inlined_call_operand.hbm [shape: f32[4,512], index: 4, kind: input, shape index: {}]
  %s5 = inlined_call_operand.hbm [shape: bf16[16,128], index: 5, kind: output, shape index: {}]
  %s6 = sld [smem:[#allocation0]]
  $region50: #{tpu_custom_call.1} parent=0
    _
  %s8 = ssub.s32 1, %s6
  %s9 = scalar_select 0, %s8, %s6
  $region1: #{tpu_custom_call.1} parent=0
    #allocation2 [shape = 'u8[4096]{0}', space=vmem, size = 0x1000, scoped, tag = 'input window, operand 0, single buffered']
    #allocation3 [shape = 's32[1]{0}', space=sflag, size = 0x4, scoped, tag = 'scoped memory for tpu_custom_call.1']
    #allocation4 [shape = 's32[1]{0}', space=sflag, size = 0x4, scoped, tag = 'scoped memory for tpu_custom_call.1']
    #allocation5 [shape = 'u8[32768]{0}', space=vmem, size = 0x8000, scoped, tag = 'input window, operand 1, single buffered']
    #allocation6 [shape = 's32[1]{0}', space=sflag, size = 0x4, scoped, tag = 'scoped memory for tpu_custom_call.1']
    #allocation7 [shape = 'u8[1048576]{0}', space=vmem, size = 0x100000, scoped, tag = 'input window, operand 2, single buffered']
    #allocation8 [shape = 'u8[131072]{0}', space=vmem, size = 0x20000, scoped, tag = 'input window, operand 3, single buffered']
    #allocation9 [shape = 's32[1]{0}', space=sflag, size = 0x4, scoped, tag = 'scoped memory for tpu_custom_call.1']
    #allocation10 [shape = 'u8[8192]{0}', space=vmem, size = 0x2000, scoped, tag = 'input window, operand 4, single buffered']
    #allocation11 [shape = 'u8[4096]{0}', space=vmem, size = 0x1000, scoped, tag = 'output window, operand 0, single buffered']
    %10 = vsyncpa [#allocation3], 0
    %11 = vsyncpa [#allocation6], 0
    %12 = vsyncpa [#allocation9], 0
    %13 = vsyncpa [#allocation4], 0
    // Predicated region
    $region2: #{tpu_custom_call.1} parent=1 // pred_check
      _
    $region3: #{tpu_custom_call.1} parent=1 // pred_check_branch
      %15 = sbr.rel (0) target = $region5
    $region4: #{tpu_custom_call.1} parent=1 // pred_region
      %s17 = ssub.s32 128, 128
      %18 = vsyncadd [#allocation3], %s17
      %s19 = sshll.u32 [#allocation2], 4
      %s20 = int_to_ptr.vmem [resolvable:$true] %s19
      %25 = dma.hbm_to_vmem [thread:$0]  %s0, 128, %s20, [#allocation3], 64, 64, 4
    $region5: #{tpu_custom_call.1} parent=1 // pred_fallthru
      _
    // Predicated region
    $region6: #{tpu_custom_call.1} parent=1 // pred_check
      _
    $region7: #{tpu_custom_call.1} parent=1 // pred_check_branch
      %27 = sbr.rel (0) target = $region9
    $region8: #{tpu_custom_call.1} parent=1 // pred_region
      %s29 = ssub.s32 1024, 1024
      %30 = vsyncadd [#allocation6], %s29
      %s31 = sshll.u32 [#allocation5], 4
      %s32 = int_to_ptr.vmem [resolvable:$true] %s31
      %37 = dma.hbm_to_vmem [thread:$0]  %s1, 1024, %s32, [#allocation6], 256, 256, 16
    $region9: #{tpu_custom_call.1} parent=1 // pred_fallthru
      _
    // Predicated region
    $region10: #{tpu_custom_call.1} parent=1 // pred_check
      _
    $region11: #{tpu_custom_call.1} parent=1 // pred_check_branch
      %39 = sbr.rel (0) target = $region13
    $region12: #{tpu_custom_call.1} parent=1 // pred_region
      %s41 = ssub.s32 32768, 32768
      %42 = vsyncadd [#allocation6], %s41
      %s43 = sshll.u32 [#allocation7], 4
      %s44 = int_to_ptr.vmem [resolvable:$true] %s43
      %49 = dma.hbm_to_vmem [thread:$0]  %s2, 32768, %s44, [#allocation6], 256, 256, 16
    $region13: #{tpu_custom_call.1} parent=1 // pred_fallthru
      _
    // Predicated region
    $region14: #{tpu_custom_call.1} parent=1 // pred_check
      _
    $region15: #{tpu_custom_call.1} parent=1 // pred_check_branch
      %51 = sbr.rel (0) target = $region17
    $region16: #{tpu_custom_call.1} parent=1 // pred_region
      %s53 = ssub.s32 4096, 4096
      %54 = vsyncadd [#allocation9], %s53
      %s55 = sshll.u32 [#allocation8], 4
      %s56 = int_to_ptr.vmem [resolvable:$true] %s55
      %61 = dma.hbm_to_vmem [thread:$0]  %s3, 4096, %s56, [#allocation9], 64, 64, 4
    $region17: #{tpu_custom_call.1} parent=1 // pred_fallthru
      _
    // Predicated region
    $region18: #{tpu_custom_call.1} parent=1 // pred_check
      _
    $region19: #{tpu_custom_call.1} parent=1 // pred_check_branch
      %63 = sbr.rel (0) target = $region21
    $region20: #{tpu_custom_call.1} parent=1 // pred_region
      %s65 = ssub.s32 256, 256
      %66 = vsyncadd [#allocation9], %s65
      %s68 = sshll.u32 [#allocation10], 4
      %s69 = int_to_ptr.vmem [resolvable:$true] %s68
      %71 = dma.hbm_to_vmem [thread:$0]  %s4, 256, %s69, [#allocation9]
    $region21: #{tpu_custom_call.1} parent=1 // pred_fallthru
      _
    // Predicated region
    $region22: #{tpu_custom_call.1} parent=1 // pred_check
      _
    $region23: #{tpu_custom_call.1} parent=1 // pred_check_branch
      %73 = sbr.rel (0) target = $region25
    $region24: #{tpu_custom_call.1} parent=1 // pred_region
      %74 = dma.done [#allocation3], 128
    $region25: #{tpu_custom_call.1} parent=1 // pred_fallthru
      _
    // Predicated region
    $region26: #{tpu_custom_call.1} parent=1 // pred_check
      _
    $region27: #{tpu_custom_call.1} parent=1 // pred_check_branch
      %76 = sbr.rel (0) target = $region29
    $region28: #{tpu_custom_call.1} parent=1 // pred_region
      %77 = dma.done [#allocation6], 1024
    $region29: #{tpu_custom_call.1} parent=1 // pred_fallthru
      _
    // Predicated region
    $region30: #{tpu_custom_call.1} parent=1 // pred_check
      _
    $region31: #{tpu_custom_call.1} parent=1 // pred_check_branch
      %79 = sbr.rel (0) target = $region33
    $region32: #{tpu_custom_call.1} parent=1 // pred_region
      %80 = dma.done [#allocation6], 32768
    $region33: #{tpu_custom_call.1} parent=1 // pred_fallthru
      _
    // Predicated region
    $region34: #{tpu_custom_call.1} parent=1 // pred_check
      _
    $region35: #{tpu_custom_call.1} parent=1 // pred_check_branch
      %82 = sbr.rel (0) target = $region37
    $region36: #{tpu_custom_call.1} parent=1 // pred_region
      %83 = dma.done [#allocation9], 4096
    $region37: #{tpu_custom_call.1} parent=1 // pred_fallthru
      _
    // Predicated region
    $region38: #{tpu_custom_call.1} parent=1 // pred_check
      _
    $region39: #{tpu_custom_call.1} parent=1 // pred_check_branch
      %85 = sbr.rel (0) target = $region41
    $region40: #{tpu_custom_call.1} parent=1 // pred_region
      %86 = dma.done [#allocation9], 256
    $region41: #{tpu_custom_call.1} parent=1 // pred_fallthru
      _
    %v88 = vld [vmem:[#allocation2] sm:$0xf]
    %v89 = vld [vmem:[#allocation2 + $0x4] sm:$0xf]
    %v90 = vld [vmem:[#allocation5] sm:$0xff]
    %v91 = vld [vmem:[#allocation5 + $0x8] sm:$0xff]
    %v92 = vld [vmem:[#allocation5 + $0x10] sm:$0xff]
    %v93 = vld [vmem:[#allocation5 + $0x18] sm:$0xff]
    %v94 = vld [vmem:[#allocation5 + $0x20] sm:$0xff]
    %v95 = vld [vmem:[#allocation5 + $0x28] sm:$0xff]
    %v96 = vld [vmem:[#allocation5 + $0x30] sm:$0xff]
    %v97 = vld [vmem:[#allocation5 + $0x38] sm:$0xff]
    %v98 = vld [vmem:[#allocation10] ss:$4 sm:$0xf]
    %v100 = vlaneseq
    %v101 = vshrl.u32 %v100, 7
    %v102 = vsub.s32 0, %v101
    %v103 = vrot.slane %v98, %v102
    %v104 = vlaneseq
    %v105 = vshrl.u32 %v104, 7
    %v106 = vsub.s32 1, %v105
    %v107 = vrot.slane %v98, %v106
    %v108 = vlaneseq
    %v109 = vshrl.u32 %v108, 7
    %v110 = vsub.s32 2, %v109
    %v111 = vrot.slane %v98, %v110
    %v112 = vlaneseq
    %v113 = vshrl.u32 %v112, 7
    %v114 = vsub.s32 3, %v113
    %v115 = vrot.slane %v98, %v114
    %v122 = vunpack.c.l.b16 %v88
    %v123 = vunpack.c.l.b16 %v89
    %v124 = vpack.c.b16 %v123, %v122
    %v133 = vunpack.c.l.b16 %v90
    %v134 = vunpack.c.h.b16 %v90
    %v135 = vunpack.c.l.b16 %v91
    %v136 = vunpack.c.h.b16 %v91
    %v137 = vunpack.c.l.b16 %v92
    %v138 = vunpack.c.h.b16 %v92
    %v139 = vunpack.c.l.b16 %v93
    %v140 = vunpack.c.h.b16 %v93
    %v141 = vunpack.c.l.b16 %v94
    %v142 = vunpack.c.h.b16 %v94
    %v143 = vunpack.c.l.b16 %v95
    %v144 = vunpack.c.h.b16 %v95
    %v145 = vunpack.c.l.b16 %v96
    %v146 = vunpack.c.h.b16 %v96
    %v147 = vunpack.c.l.b16 %v97
    %v148 = vunpack.c.h.b16 %v97
    %v149 = vpack.c.b16 %v137, %v133
    %v150 = vpack.c.b16 %v138, %v134
    %v151 = vpack.c.b16 %v139, %v135
    %v152 = vpack.c.b16 %v140, %v136
    %v153 = vpack.c.b16 %v145, %v141
    %v154 = vpack.c.b16 %v146, %v142
    %v155 = vpack.c.b16 %v147, %v143
    %v156 = vpack.c.b16 %v148, %v144
    %vm165 = vcmask 261120
    %v167 = vsel %vm165, %v124, 0
    %169 = vmatprep.subr.bf16.mxu0 0
    %170 = vmatpush1.bf16.msra.mxu0 0
    %171 = vmatprep.subr.bf16.mxu0 0
    %172 = vmatpush1.bf16.msra.mxu0 0
    %173 = vmatprep.subr.bf16.mxu0 0
    %174 = vmatpush1.bf16.msra.mxu0 0
    %175 = vmatprep.subr.bf16.mxu0 0
    %176 = vmatpush1.bf16.msra.mxu0 0
    %177 = vmatprep.subr.bf16.mxu0 0
    %178 = vmatpush1.bf16.msra.mxu0 0
    %179 = vmatprep.subr.bf16.mxu0 0
    %180 = vmatpush1.bf16.msra.mxu0 0
    %181 = vmatprep.subr.bf16.mxu0 %v154
    %182 = vmatpush1.bf16.msra.mxu0 %v153
    %183 = vmatprep.subr.bf16.mxu0 %v150
    %184 = vmatpush1.bf16.msra.mxu0 %v149
    %185 = vmatprep.subr.bf16.mxu0 0
    %186 = vmatpush2.bf16.msra.mxu0 0
    %187 = vmatprep.subr.bf16.mxu0 0
    %188 = vmatpush2.bf16.msra.mxu0 0
    %189 = vmatprep.subr.bf16.mxu0 0
    %190 = vmatpush2.bf16.msra.mxu0 0
    %191 = vmatprep.subr.bf16.mxu0 0
    %192 = vmatpush2.bf16.msra.mxu0 0
    %193 = vmatprep.subr.bf16.mxu0 0
    %194 = vmatpush2.bf16.msra.mxu0 0
    %195 = vmatprep.subr.bf16.mxu0 0
    %196 = vmatpush2.bf16.msra.mxu0 0
    %197 = vmatprep.subr.bf16.mxu0 0
    %198 = vmatpush2.bf16.msra.mxu0 0
    %199 = vmatprep.subr.bf16.mxu0 0
    %200 = vmatpush2.bf16.msra.mxu0 0
    %201 = vmatprep.mubr.bf16.mxu0 0
    %202 = vmatmul.mubr.bf16.gmra.mxu0 %v167
    %v203 = vpop.f32.mrf.mxu0
    %v204 = vadd.f32 %v103, %v203
    %v205 = vpop.f32.mrf.mxu0
    %v206 = vadd.f32 %v107, %v205
    %v207 = vpop.f32.mrf.mxu0
    %v208 = vadd.f32 %v103, %v207
    %v209 = vpop.f32.mrf.mxu0
    %v210 = vadd.f32 %v107, %v209
    %211 = vdwg.mxu0
    %212 = vmatprep.subr.bf16.mxu0 0
    %213 = vmatpush1.bf16.msra.mxu0 0
    %214 = vmatprep.subr.bf16.mxu0 0
    %215 = vmatpush1.bf16.msra.mxu0 0
    %216 = vmatprep.subr.bf16.mxu0 0
    %217 = vmatpush1.bf16.msra.mxu0 0
    %218 = vmatprep.subr.bf16.mxu0 0
    %219 = vmatpush1.bf16.msra.mxu0 0
    %220 = vmatprep.subr.bf16.mxu0 0
    %221 = vmatpush1.bf16.msra.mxu0 0
    %222 = vmatprep.subr.bf16.mxu0 0
    %223 = vmatpush1.bf16.msra.mxu0 0
    %224 = vmatprep.subr.bf16.mxu0 %v156
    %225 = vmatpush1.bf16.msra.mxu0 %v155
    %226 = vmatprep.subr.bf16.mxu0 %v152
    %227 = vmatpush1.bf16.msra.mxu0 %v151
    %228 = vmatprep.subr.bf16.mxu0 0
    %229 = vmatpush2.bf16.msra.mxu0 0
    %230 = vmatprep.subr.bf16.mxu0 0
    %231 = vmatpush2.bf16.msra.mxu0 0
    %232 = vmatprep.subr.bf16.mxu0 0
    %233 = vmatpush2.bf16.msra.mxu0 0
    %234 = vmatprep.subr.bf16.mxu0 0
    %235 = vmatpush2.bf16.msra.mxu0 0
    %236 = vmatprep.subr.bf16.mxu0 0
    %237 = vmatpush2.bf16.msra.mxu0 0
    %238 = vmatprep.subr.bf16.mxu0 0
    %239 = vmatpush2.bf16.msra.mxu0 0
    %240 = vmatprep.subr.bf16.mxu0 0
    %241 = vmatpush2.bf16.msra.mxu0 0
    %242 = vmatprep.subr.bf16.mxu0 0
    %243 = vmatpush2.bf16.msra.mxu0 0
    %244 = vmatprep.mubr.bf16.mxu0 0
    %245 = vmatmul.mubr.bf16.gmra.mxu0 %v167
    %v246 = vpop.f32.mrf.mxu0
    %v247 = vadd.f32 %v111, %v246
    %v248 = vpop.f32.mrf.mxu0
    %v249 = vadd.f32 %v115, %v248
    %v250 = vpop.f32.mrf.mxu0
    %v251 = vadd.f32 %v111, %v250
    %v252 = vpop.f32.mrf.mxu0
    %v253 = vadd.f32 %v115, %v252
    %254 = vdwg.mxu0
    %v255 = vmax.f32 %v204, 0.0
    %v256 = vmax.f32 %v206, 0.0
    %v257 = vmax.f32 %v247, 0.0
    %v258 = vmax.f32 %v249, 0.0
    %v259 = vmax.f32 %v208, 0.0
    %v260 = vmax.f32 %v210, 0.0
    %v261 = vmax.f32 %v251, 0.0
    %v262 = vmax.f32 %v253, 0.0
    %v263 = vpack.c.bf16 %v259, %v255
    %v264 = vpack.c.bf16 %v260, %v256
    %v265 = vpack.c.bf16 %v261, %v257
    %v266 = vpack.c.bf16 %v262, %v258
    %v267 = vld [vmem:[#allocation7] sm:$0xff]
    %v268 = vld [vmem:[#allocation7 + $0x8] sm:$0xff]
    %v269 = vld [vmem:[#allocation7 + $0x10] sm:$0xff]
    %v270 = vld [vmem:[#allocation7 + $0x18] sm:$0xff]
    %v271 = vld [vmem:[#allocation7 + $0x20] sm:$0xff]
    %v272 = vld [vmem:[#allocation7 + $0x28] sm:$0xff]
    %v273 = vld [vmem:[#allocation7 + $0x30] sm:$0xff]
    %v274 = vld [vmem:[#allocation7 + $0x38] sm:$0xff]
    %v275 = vld [vmem:[#allocation7 + $0x40] sm:$0xff]
    %v276 = vld [vmem:[#allocation7 + $0x48] sm:$0xff]
    %v277 = vld [vmem:[#allocation7 + $0x50] sm:$0xff]
    %v278 = vld [vmem:[#allocation7 + $0x58] sm:$0xff]
    %v279 = vld [vmem:[#allocation7 + $0x60] sm:$0xff]
    %v280 = vld [vmem:[#allocation7 + $0x68] sm:$0xff]
    %v281 = vld [vmem:[#allocation7 + $0x70] sm:$0xff]
    %v282 = vld [vmem:[#allocation7 + $0x78] sm:$0xff]
    %v283 = vld [vmem:[#allocation7 + $0x80] sm:$0xff]
    %v284 = vld [vmem:[#allocation7 + $0x88] sm:$0xff]
    %v285 = vld [vmem:[#allocation7 + $0x90] sm:$0xff]
    %v286 = vld [vmem:[#allocation7 + $0x98] sm:$0xff]
    %v287 = vld [vmem:[#allocation7 + $0xa0] sm:$0xff]
    %v288 = vld [vmem:[#allocation7 + $0xa8] sm:$0xff]
    %v289 = vld [vmem:[#allocation7 + $0xb0] sm:$0xff]
    %v290 = vld [vmem:[#allocation7 + $0xb8] sm:$0xff]
    %v291 = vld [vmem:[#allocation7 + $0xc0] sm:$0xff]
    %v292 = vld [vmem:[#allocation7 + $0xc8] sm:$0xff]
    %v293 = vld [vmem:[#allocation7 + $0xd0] sm:$0xff]
    %v294 = vld [vmem:[#allocation7 + $0xd8] sm:$0xff]
    %v295 = vld [vmem:[#allocation7 + $0xe0] sm:$0xff]
    %v296 = vld [vmem:[#allocation7 + $0xe8] sm:$0xff]
    %v297 = vld [vmem:[#allocation7 + $0xf0] sm:$0xff]
    %v298 = vld [vmem:[#allocation7 + $0xf8] sm:$0xff]
    %v299 = vld [vmem:[#allocation7 + $0x100] sm:$0xff]
    %v300 = vld [vmem:[#allocation7 + $0x108] sm:$0xff]
    %v301 = vld [vmem:[#allocation7 + $0x110] sm:$0xff]
    %v302 = vld [vmem:[#allocation7 + $0x118] sm:$0xff]
    %v303 = vld [vmem:[#allocation7 + $0x120] sm:$0xff]
    %v304 = vld [vmem:[#allocation7 + $0x128] sm:$0xff]
    %v305 = vld [vmem:[#allocation7 + $0x130] sm:$0xff]
    %v306 = vld [vmem:[#allocation7 + $0x138] sm:$0xff]
    %v307 = vld [vmem:[#allocation7 + $0x140] sm:$0xff]
    %v308 = vld [vmem:[#allocation7 + $0x148] sm:$0xff]
    %v309 = vld [vmem:[#allocation7 + $0x150] sm:$0xff]
    %v310 = vld [vmem:[#allocation7 + $0x158] sm:$0xff]
    %v311 = vld [vmem:[#allocation7 + $0x160] sm:$0xff]
    %v312 = vld [vmem:[#allocation7 + $0x168] sm:$0xff]
    %v313 = vld [vmem:[#allocation7 + $0x170] sm:$0xff]
    %v314 = vld [vmem:[#allocation7 + $0x178] sm:$0xff]
    %v315 = vld [vmem:[#allocation7 + $0x180] sm:$0xff]
    %v316 = vld [vmem:[#allocation7 + $0x188] sm:$0xff]
    %v317 = vld [vmem:[#allocation7 + $0x190] sm:$0xff]
    %v318 = vld [vmem:[#allocation7 + $0x198] sm:$0xff]
    %v319 = vld [vmem:[#allocation7 + $0x1a0] sm:$0xff]
    %v320 = vld [vmem:[#allocation7 + $0x1a8] sm:$0xff]
    %v321 = vld [vmem:[#allocation7 + $0x1b0] sm:$0xff]
    %v322 = vld [vmem:[#allocation7 + $0x1b8] sm:$0xff]
    %v323 = vld [vmem:[#allocation7 + $0x1c0] sm:$0xff]
    %v324 = vld [vmem:[#allocation7 + $0x1c8] sm:$0xff]
    %v325 = vld [vmem:[#allocation7 + $0x1d0] sm:$0xff]
    %v326 = vld [vmem:[#allocation7 + $0x1d8] sm:$0xff]
    %v327 = vld [vmem:[#allocation7 + $0x1e0] sm:$0xff]
    %v328 = vld [vmem:[#allocation7 + $0x1e8] sm:$0xff]
    %v329 = vld [vmem:[#allocation7 + $0x1f0] sm:$0xff]
    %v330 = vld [vmem:[#allocation7 + $0x1f8] sm:$0xff]
    %v331 = vld [vmem:[#allocation7 + $0x200] sm:$0xff]
    %v332 = vld [vmem:[#allocation7 + $0x208] sm:$0xff]
    %v333 = vld [vmem:[#allocation7 + $0x210] sm:$0xff]
    %v334 = vld [vmem:[#allocation7 + $0x218] sm:$0xff]
    %v335 = vld [vmem:[#allocation7 + $0x220] sm:$0xff]
    %v336 = vld [vmem:[#allocation7 + $0x228] sm:$0xff]
    %v337 = vld [vmem:[#allocation7 + $0x230] sm:$0xff]
    %v338 = vld [vmem:[#allocation7 + $0x238] sm:$0xff]
    %v339 = vld [vmem:[#allocation7 + $0x240] sm:$0xff]
    %v340 = vld [vmem:[#allocation7 + $0x248] sm:$0xff]
    %v341 = vld [vmem:[#allocation7 + $0x250] sm:$0xff]
    %v342 = vld [vmem:[#allocation7 + $0x258] sm:$0xff]
    %v343 = vld [vmem:[#allocation7 + $0x260] sm:$0xff]
    %v344 = vld [vmem:[#allocation7 + $0x268] sm:$0xff]
    %v345 = vld [vmem:[#allocation7 + $0x270] sm:$0xff]
    %v346 = vld [vmem:[#allocation7 + $0x278] sm:$0xff]
    %v347 = vld [vmem:[#allocation7 + $0x280] sm:$0xff]
    %v348 = vld [vmem:[#allocation7 + $0x288] sm:$0xff]
    %v349 = vld [vmem:[#allocation7 + $0x290] sm:$0xff]
    %v350 = vld [vmem:[#allocation7 + $0x298] sm:$0xff]
    %v351 = vld [vmem:[#allocation7 + $0x2a0] sm:$0xff]
    %v352 = vld [vmem:[#allocation7 + $0x2a8] sm:$0xff]
    %v353 = vld [vmem:[#allocation7 + $0x2b0] sm:$0xff]
    %v354 = vld [vmem:[#allocation7 + $0x2b8] sm:$0xff]
    %v355 = vld [vmem:[#allocation7 + $0x2c0] sm:$0xff]
    %v356 = vld [vmem:[#allocation7 + $0x2c8] sm:$0xff]
    %v357 = vld [vmem:[#allocation7 + $0x2d0] sm:$0xff]
    %v358 = vld [vmem:[#allocation7 + $0x2d8] sm:$0xff]
    %v359 = vld [vmem:[#allocation7 + $0x2e0] sm:$0xff]
    %v360 = vld [vmem:[#allocation7 + $0x2e8] sm:$0xff]
    %v361 = vld [vmem:[#allocation7 + $0x2f0] sm:$0xff]
    %v362 = vld [vmem:[#allocation7 + $0x2f8] sm:$0xff]
    %v363 = vld [vmem:[#allocation7 + $0x300] sm:$0xff]
    %v364 = vld [vmem:[#allocation7 + $0x308] sm:$0xff]
    %v365 = vld [vmem:[#allocation7 + $0x310] sm:$0xff]
    %v366 = vld [vmem:[#allocation7 + $0x318] sm:$0xff]
    %v367 = vld [vmem:[#allocation7 + $0x320] sm:$0xff]
    %v368 = vld [vmem:[#allocation7 + $0x328] sm:$0xff]
    %v369 = vld [vmem:[#allocation7 + $0x330] sm:$0xff]
    %v370 = vld [vmem:[#allocation7 + $0x338] sm:$0xff]
    %v371 = vld [vmem:[#allocation7 + $0x340] sm:$0xff]
    %v372 = vld [vmem:[#allocation7 + $0x348] sm:$0xff]
    %v373 = vld [vmem:[#allocation7 + $0x350] sm:$0xff]
    %v374 = vld [vmem:[#allocation7 + $0x358] sm:$0xff]
    %v375 = vld [vmem:[#allocation7 + $0x360] sm:$0xff]
    %v376 = vld [vmem:[#allocation7 + $0x368] sm:$0xff]
    %v377 = vld [vmem:[#allocation7 + $0x370] sm:$0xff]
    %v378 = vld [vmem:[#allocation7 + $0x378] sm:$0xff]
    %v379 = vld [vmem:[#allocation7 + $0x380] sm:$0xff]
    %v380 = vld [vmem:[#allocation7 + $0x388] sm:$0xff]
    %v381 = vld [vmem:[#allocation7 + $0x390] sm:$0xff]
    %v382 = vld [vmem:[#allocation7 + $0x398] sm:$0xff]
    %v383 = vld [vmem:[#allocation7 + $0x3a0] sm:$0xff]
    %v384 = vld [vmem:[#allocation7 + $0x3a8] sm:$0xff]
    %v385 = vld [vmem:[#allocation7 + $0x3b0] sm:$0xff]
    %v386 = vld [vmem:[#allocation7 + $0x3b8] sm:$0xff]
    %v387 = vld [vmem:[#allocation7 + $0x3c0] sm:$0xff]
    %v388 = vld [vmem:[#allocation7 + $0x3c8] sm:$0xff]
    %v389 = vld [vmem:[#allocation7 + $0x3d0] sm:$0xff]
    %v390 = vld [vmem:[#allocation7 + $0x3d8] sm:$0xff]
    %v391 = vld [vmem:[#allocation7 + $0x3e0] sm:$0xff]
    %v392 = vld [vmem:[#allocation7 + $0x3e8] sm:$0xff]
    %v393 = vld [vmem:[#allocation7 + $0x3f0] sm:$0xff]
    %v394 = vld [vmem:[#allocation7 + $0x3f8] sm:$0xff]
    %s395 = scalar_lea.vmem [#allocation10], 1
    %v396 = vld [vmem:[%s395] ss:$4 sm:$0xf]
    %v398 = vlaneseq
    %v399 = vshrl.u32 %v398, 7
    %v400 = vsub.s32 0, %v399
    %v401 = vrot.slane %v396, %v400
    %v402 = vlaneseq
    %v403 = vshrl.u32 %v402, 7
    %v404 = vsub.s32 1, %v403
    %v405 = vrot.slane %v396, %v404
    %v406 = vlaneseq
    %v407 = vshrl.u32 %v406, 7
    %v408 = vsub.s32 2, %v407
    %v409 = vrot.slane %v396, %v408
    %v410 = vlaneseq
    %v411 = vshrl.u32 %v410, 7
    %v412 = vsub.s32 3, %v411
    %v413 = vrot.slane %v396, %v412
    %v546 = vunpack.c.l.b16 %v267
    %v547 = vunpack.c.h.b16 %v267
    %v548 = vunpack.c.l.b16 %v268
    %v549 = vunpack.c.h.b16 %v268
    %v550 = vunpack.c.l.b16 %v269
    %v551 = vunpack.c.h.b16 %v269
    %v552 = vunpack.c.l.b16 %v270
    %v553 = vunpack.c.h.b16 %v270
    %v554 = vunpack.c.l.b16 %v271
    %v555 = vunpack.c.h.b16 %v271
    %v556 = vunpack.c.l.b16 %v272
    %v557 = vunpack.c.h.b16 %v272
    %v558 = vunpack.c.l.b16 %v273
    %v559 = vunpack.c.h.b16 %v273
    %v560 = vunpack.c.l.b16 %v274
    %v561 = vunpack.c.h.b16 %v274
    %v562 = vunpack.c.l.b16 %v275
    %v563 = vunpack.c.h.b16 %v275
    %v564 = vunpack.c.l.b16 %v276
    %v565 = vunpack.c.h.b16 %v276
    %v566 = vunpack.c.l.b16 %v277
    %v567 = vunpack.c.h.b16 %v277
    %v568 = vunpack.c.l.b16 %v278
    %v569 = vunpack.c.h.b16 %v278
    %v570 = vunpack.c.l.b16 %v279
    %v571 = vunpack.c.h.b16 %v279
    %v572 = vunpack.c.l.b16 %v280
    %v573 = vunpack.c.h.b16 %v280
    %v574 = vunpack.c.l.b16 %v281
    %v575 = vunpack.c.h.b16 %v281
    %v576 = vunpack.c.l.b16 %v282
    %v577 = vunpack.c.h.b16 %v282
    %v578 = vunpack.c.l.b16 %v283
    %v579 = vunpack.c.h.b16 %v283
    %v580 = vunpack.c.l.b16 %v284
    %v581 = vunpack.c.h.b16 %v284
    %v582 = vunpack.c.l.b16 %v285
    %v583 = vunpack.c.h.b16 %v285
    %v584 = vunpack.c.l.b16 %v286
    %v585 = vunpack.c.h.b16 %v286
    %v586 = vunpack.c.l.b16 %v287
    %v587 = vunpack.c.h.b16 %v287
    %v588 = vunpack.c.l.b16 %v288
    %v589 = vunpack.c.h.b16 %v288
    %v590 = vunpack.c.l.b16 %v289
    %v591 = vunpack.c.h.b16 %v289
    %v592 = vunpack.c.l.b16 %v290
    %v593 = vunpack.c.h.b16 %v290
    %v594 = vunpack.c.l.b16 %v291
    %v595 = vunpack.c.h.b16 %v291
    %v596 = vunpack.c.l.b16 %v292
    %v597 = vunpack.c.h.b16 %v292
    %v598 = vunpack.c.l.b16 %v293
    %v599 = vunpack.c.h.b16 %v293
    %v600 = vunpack.c.l.b16 %v294
    %v601 = vunpack.c.h.b16 %v294
    %v602 = vunpack.c.l.b16 %v295
    %v603 = vunpack.c.h.b16 %v295
    %v604 = vunpack.c.l.b16 %v296
    %v605 = vunpack.c.h.b16 %v296
    %v606 = vunpack.c.l.b16 %v297
    %v607 = vunpack.c.h.b16 %v297
    %v608 = vunpack.c.l.b16 %v298
    %v609 = vunpack.c.h.b16 %v298
    %v610 = vunpack.c.l.b16 %v299
    %v611 = vunpack.c.h.b16 %v299
    %v612 = vunpack.c.l.b16 %v300
    %v613 = vunpack.c.h.b16 %v300
    %v614 = vunpack.c.l.b16 %v301
    %v615 = vunpack.c.h.b16 %v301
    %v616 = vunpack.c.l.b16 %v302
    %v617 = vunpack.c.h.b16 %v302
    %v618 = vunpack.c.l.b16 %v303
    %v619 = vunpack.c.h.b16 %v303
    %v620 = vunpack.c.l.b16 %v304
    %v621 = vunpack.c.h.b16 %v304
    %v622 = vunpack.c.l.b16 %v305
    %v623 = vunpack.c.h.b16 %v305
    %v624 = vunpack.c.l.b16 %v306
    %v625 = vunpack.c.h.b16 %v306
    %v626 = vunpack.c.l.b16 %v307
    %v627 = vunpack.c.h.b16 %v307
    %v628 = vunpack.c.l.b16 %v308
    %v629 = vunpack.c.h.b16 %v308
    %v630 = vunpack.c.l.b16 %v309
    %v631 = vunpack.c.h.b16 %v309
    %v632 = vunpack.c.l.b16 %v310
    %v633 = vunpack.c.h.b16 %v310
    %v634 = vunpack.c.l.b16 %v311
    %v635 = vunpack.c.h.b16 %v311
    %v636 = vunpack.c.l.b16 %v312
    %v637 = vunpack.c.h.b16 %v312
    %v638 = vunpack.c.l.b16 %v313
    %v639 = vunpack.c.h.b16 %v313
    %v640 = vunpack.c.l.b16 %v314
    %v641 = vunpack.c.h.b16 %v314
    %v642 = vunpack.c.l.b16 %v315
    %v643 = vunpack.c.h.b16 %v315
    %v644 = vunpack.c.l.b16 %v316
    %v645 = vunpack.c.h.b16 %v316
    %v646 = vunpack.c.l.b16 %v317
    %v647 = vunpack.c.h.b16 %v317
    %v648 = vunpack.c.l.b16 %v318
    %v649 = vunpack.c.h.b16 %v318
    %v650 = vunpack.c.l.b16 %v319
    %v651 = vunpack.c.h.b16 %v319
    %v652 = vunpack.c.l.b16 %v320
    %v653 = vunpack.c.h.b16 %v320
    %v654 = vunpack.c.l.b16 %v321
    %v655 = vunpack.c.h.b16 %v321
    %v656 = vunpack.c.l.b16 %v322
    %v657 = vunpack.c.h.b16 %v322
    %v658 = vunpack.c.l.b16 %v323
    %v659 = vunpack.c.h.b16 %v323
    %v660 = vunpack.c.l.b16 %v324
    %v661 = vunpack.c.h.b16 %v324
    %v662 = vunpack.c.l.b16 %v325
    %v663 = vunpack.c.h.b16 %v325
    %v664 = vunpack.c.l.b16 %v326
    %v665 = vunpack.c.h.b16 %v326
    %v666 = vunpack.c.l.b16 %v327
    %v667 = vunpack.c.h.b16 %v327
    %v668 = vunpack.c.l.b16 %v328
    %v669 = vunpack.c.h.b16 %v328
    %v670 = vunpack.c.l.b16 %v329
    %v671 = vunpack.c.h.b16 %v329
    %v672 = vunpack.c.l.b16 %v330
    %v673 = vunpack.c.h.b16 %v330
    %v674 = vunpack.c.l.b16 %v331
    %v675 = vunpack.c.h.b16 %v331
    %v676 = vunpack.c.l.b16 %v332
    %v677 = vunpack.c.h.b16 %v332
    %v678 = vunpack.c.l.b16 %v333
    %v679 = vunpack.c.h.b16 %v333
    %v680 = vunpack.c.l.b16 %v334
    %v681 = vunpack.c.h.b16 %v334
    %v682 = vunpack.c.l.b16 %v335
    %v683 = vunpack.c.h.b16 %v335
    %v684 = vunpack.c.l.b16 %v336
    %v685 = vunpack.c.h.b16 %v336
    %v686 = vunpack.c.l.b16 %v337
    %v687 = vunpack.c.h.b16 %v337
    %v688 = vunpack.c.l.b16 %v338
    %v689 = vunpack.c.h.b16 %v338
    %v690 = vunpack.c.l.b16 %v339
    %v691 = vunpack.c.h.b16 %v339
    %v692 = vunpack.c.l.b16 %v340
    %v693 = vunpack.c.h.b16 %v340
    %v694 = vunpack.c.l.b16 %v341
    %v695 = vunpack.c.h.b16 %v341
    %v696 = vunpack.c.l.b16 %v342
    %v697 = vunpack.c.h.b16 %v342
    %v698 = vunpack.c.l.b16 %v343
    %v699 = vunpack.c.h.b16 %v343
    %v700 = vunpack.c.l.b16 %v344
    %v701 = vunpack.c.h.b16 %v344
    %v702 = vunpack.c.l.b16 %v345
    %v703 = vunpack.c.h.b16 %v345
    %v704 = vunpack.c.l.b16 %v346
    %v705 = vunpack.c.h.b16 %v346
    %v706 = vunpack.c.l.b16 %v347
    %v707 = vunpack.c.h.b16 %v347
    %v708 = vunpack.c.l.b16 %v348
    %v709 = vunpack.c.h.b16 %v348
    %v710 = vunpack.c.l.b16 %v349
    %v711 = vunpack.c.h.b16 %v349
    %v712 = vunpack.c.l.b16 %v350
    %v713 = vunpack.c.h.b16 %v350
    %v714 = vunpack.c.l.b16 %v351
    %v715 = vunpack.c.h.b16 %v351
    %v716 = vunpack.c.l.b16 %v352
    %v717 = vunpack.c.h.b16 %v352
    %v718 = vunpack.c.l.b16 %v353
    %v719 = vunpack.c.h.b16 %v353
    %v720 = vunpack.c.l.b16 %v354
    %v721 = vunpack.c.h.b16 %v354
    %v722 = vunpack.c.l.b16 %v355
    %v723 = vunpack.c.h.b16 %v355
    %v724 = vunpack.c.l.b16 %v356
    %v725 = vunpack.c.h.b16 %v356
    %v726 = vunpack.c.l.b16 %v357
    %v727 = vunpack.c.h.b16 %v357
    %v728 = vunpack.c.l.b16 %v358
    %v729 = vunpack.c.h.b16 %v358
    %v730 = vunpack.c.l.b16 %v359
    %v731 = vunpack.c.h.b16 %v359
    %v732 = vunpack.c.l.b16 %v360
    %v733 = vunpack.c.h.b16 %v360
    %v734 = vunpack.c.l.b16 %v361
    %v735 = vunpack.c.h.b16 %v361
    %v736 = vunpack.c.l.b16 %v362
    %v737 = vunpack.c.h.b16 %v362
    %v738 = vunpack.c.l.b16 %v363
    %v739 = vunpack.c.h.b16 %v363
    %v740 = vunpack.c.l.b16 %v364
    %v741 = vunpack.c.h.b16 %v364
    %v742 = vunpack.c.l.b16 %v365
    %v743 = vunpack.c.h.b16 %v365
    %v744 = vunpack.c.l.b16 %v366
    %v745 = vunpack.c.h.b16 %v366
    %v746 = vunpack.c.l.b16 %v367
    %v747 = vunpack.c.h.b16 %v367
    %v748 = vunpack.c.l.b16 %v368
    %v749 = vunpack.c.h.b16 %v368
    %v750 = vunpack.c.l.b16 %v369
    %v751 = vunpack.c.h.b16 %v369
    %v752 = vunpack.c.l.b16 %v370
    %v753 = vunpack.c.h.b16 %v370
    %v754 = vunpack.c.l.b16 %v371
    %v755 = vunpack.c.h.b16 %v371
    %v756 = vunpack.c.l.b16 %v372
    %v757 = vunpack.c.h.b16 %v372
    %v758 = vunpack.c.l.b16 %v373
    %v759 = vunpack.c.h.b16 %v373
    %v760 = vunpack.c.l.b16 %v374
    %v761 = vunpack.c.h.b16 %v374
    %v762 = vunpack.c.l.b16 %v375
    %v763 = vunpack.c.h.b16 %v375
    %v764 = vunpack.c.l.b16 %v376
    %v765 = vunpack.c.h.b16 %v376
    %v766 = vunpack.c.l.b16 %v377
    %v767 = vunpack.c.h.b16 %v377
    %v768 = vunpack.c.l.b16 %v378
    %v769 = vunpack.c.h.b16 %v378
    %v770 = vunpack.c.l.b16 %v379
    %v771 = vunpack.c.h.b16 %v379
    %v772 = vunpack.c.l.b16 %v380
    %v773 = vunpack.c.h.b16 %v380
    %v774 = vunpack.c.l.b16 %v381
    %v775 = vunpack.c.h.b16 %v381
    %v776 = vunpack.c.l.b16 %v382
    %v777 = vunpack.c.h.b16 %v382
    %v778 = vunpack.c.l.b16 %v383
    %v779 = vunpack.c.h.b16 %v383
    %v780 = vunpack.c.l.b16 %v384
    %v781 = vunpack.c.h.b16 %v384
    %v782 = vunpack.c.l.b16 %v385
    %v783 = vunpack.c.h.b16 %v385
    %v784 = vunpack.c.l.b16 %v386
    %v785 = vunpack.c.h.b16 %v386
    %v786 = vunpack.c.l.b16 %v387
    %v787 = vunpack.c.h.b16 %v387
    %v788 = vunpack.c.l.b16 %v388
    %v789 = vunpack.c.h.b16 %v388
    %v790 = vunpack.c.l.b16 %v389
    %v791 = vunpack.c.h.b16 %v389
    %v792 = vunpack.c.l.b16 %v390
    %v793 = vunpack.c.h.b16 %v390
    %v794 = vunpack.c.l.b16 %v391
    %v795 = vunpack.c.h.b16 %v391
    %v796 = vunpack.c.l.b16 %v392
    %v797 = vunpack.c.h.b16 %v392
    %v798 = vunpack.c.l.b16 %v393
    %v799 = vunpack.c.h.b16 %v393
    %v800 = vunpack.c.l.b16 %v394
    %v801 = vunpack.c.h.b16 %v394
    %v802 = vpack.c.b16 %v550, %v546
    %v803 = vpack.c.b16 %v551, %v547
    %v804 = vpack.c.b16 %v552, %v548
    %v805 = vpack.c.b16 %v553, %v549
    %v806 = vpack.c.b16 %v558, %v554
    %v807 = vpack.c.b16 %v559, %v555
    %v808 = vpack.c.b16 %v560, %v556
    %v809 = vpack.c.b16 %v561, %v557
    %v810 = vpack.c.b16 %v566, %v562
    %v811 = vpack.c.b16 %v567, %v563
    %v812 = vpack.c.b16 %v568, %v564
    %v813 = vpack.c.b16 %v569, %v565
    %v814 = vpack.c.b16 %v574, %v570
    %v815 = vpack.c.b16 %v575, %v571
    %v816 = vpack.c.b16 %v576, %v572
    %v817 = vpack.c.b16 %v577, %v573
    %v818 = vpack.c.b16 %v582, %v578
    %v819 = vpack.c.b16 %v583, %v579
    %v820 = vpack.c.b16 %v584, %v580
    %v821 = vpack.c.b16 %v585, %v581
    %v822 = vpack.c.b16 %v590, %v586
    %v823 = vpack.c.b16 %v591, %v587
    %v824 = vpack.c.b16 %v592, %v588
    %v825 = vpack.c.b16 %v593, %v589
    %v826 = vpack.c.b16 %v598, %v594
    %v827 = vpack.c.b16 %v599, %v595
    %v828 = vpack.c.b16 %v600, %v596
    %v829 = vpack.c.b16 %v601, %v597
    %v830 = vpack.c.b16 %v606, %v602
    %v831 = vpack.c.b16 %v607, %v603
    %v832 = vpack.c.b16 %v608, %v604
    %v833 = vpack.c.b16 %v609, %v605
    %v834 = vpack.c.b16 %v614, %v610
    %v835 = vpack.c.b16 %v615, %v611
    %v836 = vpack.c.b16 %v616, %v612
    %v837 = vpack.c.b16 %v617, %v613
    %v838 = vpack.c.b16 %v622, %v618
    %v839 = vpack.c.b16 %v623, %v619
    %v840 = vpack.c.b16 %v624, %v620
    %v841 = vpack.c.b16 %v625, %v621
    %v842 = vpack.c.b16 %v630, %v626
    %v843 = vpack.c.b16 %v631, %v627
    %v844 = vpack.c.b16 %v632, %v628
    %v845 = vpack.c.b16 %v633, %v629
    %v846 = vpack.c.b16 %v638, %v634
    %v847 = vpack.c.b16 %v639, %v635
    %v848 = vpack.c.b16 %v640, %v636
    %v849 = vpack.c.b16 %v641, %v637
    %v850 = vpack.c.b16 %v646, %v642
    %v851 = vpack.c.b16 %v647, %v643
    %v852 = vpack.c.b16 %v648, %v644
    %v853 = vpack.c.b16 %v649, %v645
    %v854 = vpack.c.b16 %v654, %v650
    %v855 = vpack.c.b16 %v655, %v651
    %v856 = vpack.c.b16 %v656, %v652
    %v857 = vpack.c.b16 %v657, %v653
    %v858 = vpack.c.b16 %v662, %v658
    %v859 = vpack.c.b16 %v663, %v659
    %v860 = vpack.c.b16 %v664, %v660
    %v861 = vpack.c.b16 %v665, %v661
    %v862 = vpack.c.b16 %v670, %v666
    %v863 = vpack.c.b16 %v671, %v667
    %v864 = vpack.c.b16 %v672, %v668
    %v865 = vpack.c.b16 %v673, %v669
    %v866 = vpack.c.b16 %v678, %v674
    %v867 = vpack.c.b16 %v679, %v675
    %v868 = vpack.c.b16 %v680, %v676
    %v869 = vpack.c.b16 %v681, %v677
    %v870 = vpack.c.b16 %v686, %v682
    %v871 = vpack.c.b16 %v687, %v683
    %v872 = vpack.c.b16 %v688, %v684
    %v873 = vpack.c.b16 %v689, %v685
    %v874 = vpack.c.b16 %v694, %v690
    %v875 = vpack.c.b16 %v695, %v691
    %v876 = vpack.c.b16 %v696, %v692
    %v877 = vpack.c.b16 %v697, %v693
    %v878 = vpack.c.b16 %v702, %v698
    %v879 = vpack.c.b16 %v703, %v699
    %v880 = vpack.c.b16 %v704, %v700
    %v881 = vpack.c.b16 %v705, %v701
    %v882 = vpack.c.b16 %v710, %v706
    %v883 = vpack.c.b16 %v711, %v707
    %v884 = vpack.c.b16 %v712, %v708
    %v885 = vpack.c.b16 %v713, %v709
    %v886 = vpack.c.b16 %v718, %v714
    %v887 = vpack.c.b16 %v719, %v715
    %v888 = vpack.c.b16 %v720, %v716
    %v889 = vpack.c.b16 %v721, %v717
    %v890 = vpack.c.b16 %v726, %v722
    %v891 = vpack.c.b16 %v727, %v723
    %v892 = vpack.c.b16 %v728, %v724
    %v893 = vpack.c.b16 %v729, %v725
    %v894 = vpack.c.b16 %v734, %v730
    %v895 = vpack.c.b16 %v735, %v731
    %v896 = vpack.c.b16 %v736, %v732
    %v897 = vpack.c.b16 %v737, %v733
    %v898 = vpack.c.b16 %v742, %v738
    %v899 = vpack.c.b16 %v743, %v739
    %v900 = vpack.c.b16 %v744, %v740
    %v901 = vpack.c.b16 %v745, %v741
    %v902 = vpack.c.b16 %v750, %v746
    %v903 = vpack.c.b16 %v751, %v747
    %v904 = vpack.c.b16 %v752, %v748
    %v905 = vpack.c.b16 %v753, %v749
    %v906 = vpack.c.b16 %v758, %v754
    %v907 = vpack.c.b16 %v759, %v755
    %v908 = vpack.c.b16 %v760, %v756
    %v909 = vpack.c.b16 %v761, %v757
    %v910 = vpack.c.b16 %v766, %v762
    %v911 = vpack.c.b16 %v767, %v763
    %v912 = vpack.c.b16 %v768, %v764
    %v913 = vpack.c.b16 %v769, %v765
    %v914 = vpack.c.b16 %v774, %v770
    %v915 = vpack.c.b16 %v775, %v771
    %v916 = vpack.c.b16 %v776, %v772
    %v917 = vpack.c.b16 %v777, %v773
    %v918 = vpack.c.b16 %v782, %v778
    %v919 = vpack.c.b16 %v783, %v779
    %v920 = vpack.c.b16 %v784, %v780
    %v921 = vpack.c.b16 %v785, %v781
    %v922 = vpack.c.b16 %v790, %v786
    %v923 = vpack.c.b16 %v791, %v787
    %v924 = vpack.c.b16 %v792, %v788
    %v925 = vpack.c.b16 %v793, %v789
    %v926 = vpack.c.b16 %v798, %v794
    %v927 = vpack.c.b16 %v799, %v795
    %v928 = vpack.c.b16 %v800, %v796
    %v929 = vpack.c.b16 %v801, %v797
    %1058 = vmatprep.subr.bf16.mxu0 %v831
    %1059 = vmatpush1.bf16.msra.mxu0 %v830
    %1060 = vmatprep.subr.bf16.mxu0 %v827
    %1061 = vmatpush1.bf16.msra.mxu0 %v826
    %1062 = vmatprep.subr.bf16.mxu0 %v823
    %1063 = vmatpush1.bf16.msra.mxu0 %v822
    %1064 = vmatprep.subr.bf16.mxu0 %v819
    %1065 = vmatpush1.bf16.msra.mxu0 %v818
    %1066 = vmatprep.subr.bf16.mxu0 %v815
    %1067 = vmatpush1.bf16.msra.mxu0 %v814
    %1068 = vmatprep.subr.bf16.mxu0 %v811
    %1069 = vmatpush1.bf16.msra.mxu0 %v810
    %1070 = vmatprep.subr.bf16.mxu0 %v807
    %1071 = vmatpush1.bf16.msra.mxu0 %v806
    %1072 = vmatprep.subr.bf16.mxu0 %v803
    %1073 = vmatpush1.bf16.msra.mxu0 %v802
    %1074 = vmatprep.subr.bf16.mxu0 %v863
    %1075 = vmatpush2.bf16.msra.mxu0 %v862
    %1076 = vmatprep.subr.bf16.mxu0 %v859
    %1077 = vmatpush2.bf16.msra.mxu0 %v858
    %1078 = vmatprep.subr.bf16.mxu0 %v855
    %1079 = vmatpush2.bf16.msra.mxu0 %v854
    %1080 = vmatprep.subr.bf16.mxu0 %v851
    %1081 = vmatpush2.bf16.msra.mxu0 %v850
    %1082 = vmatprep.subr.bf16.mxu0 %v847
    %1083 = vmatpush2.bf16.msra.mxu0 %v846
    %1084 = vmatprep.subr.bf16.mxu0 %v843
    %1085 = vmatpush2.bf16.msra.mxu0 %v842
    %1086 = vmatprep.subr.bf16.mxu0 %v839
    %1087 = vmatpush2.bf16.msra.mxu0 %v838
    %1088 = vmatprep.subr.bf16.mxu0 %v835
    %1089 = vmatpush2.bf16.msra.mxu0 %v834
    %1090 = vmatprep.mubr.bf16.mxu0 %v264
    %1091 = vmatmul.mubr.bf16.gmra.mxu0 %v263
    %v1092 = vpop.f32.mrf.mxu0
    %v1093 = vadd.f32 %v401, %v1092
    %v1094 = vpop.f32.mrf.mxu0
    %v1095 = vadd.f32 %v405, %v1094
    %v1096 = vpop.f32.mrf.mxu0
    %v1097 = vadd.f32 %v401, %v1096
    %v1098 = vpop.f32.mrf.mxu0
    %v1099 = vadd.f32 %v405, %v1098
    %1100 = vdwg.mxu0
    %1101 = vmatprep.subr.bf16.mxu0 %v895
    %1102 = vmatpush1.bf16.msra.mxu0 %v894
    %1103 = vmatprep.subr.bf16.mxu0 %v891
    %1104 = vmatpush1.bf16.msra.mxu0 %v890
    %1105 = vmatprep.subr.bf16.mxu0 %v887
    %1106 = vmatpush1.bf16.msra.mxu0 %v886
    %1107 = vmatprep.subr.bf16.mxu0 %v883
    %1108 = vmatpush1.bf16.msra.mxu0 %v882
    %1109 = vmatprep.subr.bf16.mxu0 %v879
    %1110 = vmatpush1.bf16.msra.mxu0 %v878
    %1111 = vmatprep.subr.bf16.mxu0 %v875
    %1112 = vmatpush1.bf16.msra.mxu0 %v874
    %1113 = vmatprep.subr.bf16.mxu0 %v871
    %1114 = vmatpush1.bf16.msra.mxu0 %v870
    %1115 = vmatprep.subr.bf16.mxu0 %v867
    %1116 = vmatpush1.bf16.msra.mxu0 %v866
    %1117 = vmatprep.subr.bf16.mxu0 %v927
    %1118 = vmatpush2.bf16.msra.mxu0 %v926
    %1119 = vmatprep.subr.bf16.mxu0 %v923
    %1120 = vmatpush2.bf16.msra.mxu0 %v922
    %1121 = vmatprep.subr.bf16.mxu0 %v919
    %1122 = vmatpush2.bf16.msra.mxu0 %v918
    %1123 = vmatprep.subr.bf16.mxu0 %v915
    %1124 = vmatpush2.bf16.msra.mxu0 %v914
    %1125 = vmatprep.subr.bf16.mxu0 %v911
    %1126 = vmatpush2.bf16.msra.mxu0 %v910
    %1127 = vmatprep.subr.bf16.mxu0 %v907
    %1128 = vmatpush2.bf16.msra.mxu0 %v906
    %1129 = vmatprep.subr.bf16.mxu0 %v903
    %1130 = vmatpush2.bf16.msra.mxu0 %v902
    %1131 = vmatprep.subr.bf16.mxu0 %v899
    %1132 = vmatpush2.bf16.msra.mxu0 %v898
    %1133 = vmatprep.mubr.bf16.mxu0 %v266
    %1134 = vmatmul.mubr.bf16.gmra.mxu0 %v265
    %v1135 = vpop.f32.mrf.mxu0
    %v1136 = vadd.f32 %v1093, %v1135
    %v1137 = vpop.f32.mrf.mxu0
    %v1138 = vadd.f32 %v1095, %v1137
    %v1139 = vpop.f32.mrf.mxu0
    %v1140 = vadd.f32 %v1097, %v1139
    %v1141 = vpop.f32.mrf.mxu0
    %v1142 = vadd.f32 %v1099, %v1141
    %1143 = vdwg.mxu0
    %1144 = vmatprep.subr.bf16.mxu0 %v833
    %1145 = vmatpush1.bf16.msra.mxu0 %v832
    %1146 = vmatprep.subr.bf16.mxu0 %v829
    %1147 = vmatpush1.bf16.msra.mxu0 %v828
    %1148 = vmatprep.subr.bf16.mxu0 %v825
    %1149 = vmatpush1.bf16.msra.mxu0 %v824
    %1150 = vmatprep.subr.bf16.mxu0 %v821
    %1151 = vmatpush1.bf16.msra.mxu0 %v820
    %1152 = vmatprep.subr.bf16.mxu0 %v817
    %1153 = vmatpush1.bf16.msra.mxu0 %v816
    %1154 = vmatprep.subr.bf16.mxu0 %v813
    %1155 = vmatpush1.bf16.msra.mxu0 %v812
    %1156 = vmatprep.subr.bf16.mxu0 %v809
    %1157 = vmatpush1.bf16.msra.mxu0 %v808
    %1158 = vmatprep.subr.bf16.mxu0 %v805
    %1159 = vmatpush1.bf16.msra.mxu0 %v804
    %1160 = vmatprep.subr.bf16.mxu0 %v865
    %1161 = vmatpush2.bf16.msra.mxu0 %v864
    %1162 = vmatprep.subr.bf16.mxu0 %v861
    %1163 = vmatpush2.bf16.msra.mxu0 %v860
    %1164 = vmatprep.subr.bf16.mxu0 %v857
    %1165 = vmatpush2.bf16.msra.mxu0 %v856
    %1166 = vmatprep.subr.bf16.mxu0 %v853
    %1167 = vmatpush2.bf16.msra.mxu0 %v852
    %1168 = vmatprep.subr.bf16.mxu0 %v849
    %1169 = vmatpush2.bf16.msra.mxu0 %v848
    %1170 = vmatprep.subr.bf16.mxu0 %v845
    %1171 = vmatpush2.bf16.msra.mxu0 %v844
    %1172 = vmatprep.subr.bf16.mxu0 %v841
    %1173 = vmatpush2.bf16.msra.mxu0 %v840
    %1174 = vmatprep.subr.bf16.mxu0 %v837
    %1175 = vmatpush2.bf16.msra.mxu0 %v836
    %1176 = vmatprep.mubr.bf16.mxu0 %v264
    %1177 = vmatmul.mubr.bf16.gmra.mxu0 %v263
    %v1178 = vpop.f32.mrf.mxu0
    %v1179 = vadd.f32 %v409, %v1178
    %v1180 = vpop.f32.mrf.mxu0
    %v1181 = vadd.f32 %v413, %v1180
    %v1182 = vpop.f32.mrf.mxu0
    %v1183 = vadd.f32 %v409, %v1182
    %v1184 = vpop.f32.mrf.mxu0
    %v1185 = vadd.f32 %v413, %v1184
    %1186 = vdwg.mxu0
    %1187 = vmatprep.subr.bf16.mxu0 %v897
    %1188 = vmatpush1.bf16.msra.mxu0 %v896
    %1189 = vmatprep.subr.bf16.mxu0 %v893
    %1190 = vmatpush1.bf16.msra.mxu0 %v892
    %1191 = vmatprep.subr.bf16.mxu0 %v889
    %1192 = vmatpush1.bf16.msra.mxu0 %v888
    %1193 = vmatprep.subr.bf16.mxu0 %v885
    %1194 = vmatpush1.bf16.msra.mxu0 %v884
    %1195 = vmatprep.subr.bf16.mxu0 %v881
    %1196 = vmatpush1.bf16.msra.mxu0 %v880
    %1197 = vmatprep.subr.bf16.mxu0 %v877
    %1198 = vmatpush1.bf16.msra.mxu0 %v876
    %1199 = vmatprep.subr.bf16.mxu0 %v873
    %1200 = vmatpush1.bf16.msra.mxu0 %v872
    %1201 = vmatprep.subr.bf16.mxu0 %v869
    %1202 = vmatpush1.bf16.msra.mxu0 %v868
    %1203 = vmatprep.subr.bf16.mxu0 %v929
    %1204 = vmatpush2.bf16.msra.mxu0 %v928
    %1205 = vmatprep.subr.bf16.mxu0 %v925
    %1206 = vmatpush2.bf16.msra.mxu0 %v924
    %1207 = vmatprep.subr.bf16.mxu0 %v921
    %1208 = vmatpush2.bf16.msra.mxu0 %v920
    %1209 = vmatprep.subr.bf16.mxu0 %v917
    %1210 = vmatpush2.bf16.msra.mxu0 %v916
    %1211 = vmatprep.subr.bf16.mxu0 %v913
    %1212 = vmatpush2.bf16.msra.mxu0 %v912
    %1213 = vmatprep.subr.bf16.mxu0 %v909
    %1214 = vmatpush2.bf16.msra.mxu0 %v908
    %1215 = vmatprep.subr.bf16.mxu0 %v905
    %1216 = vmatpush2.bf16.msra.mxu0 %v904
    %1217 = vmatprep.subr.bf16.mxu0 %v901
    %1218 = vmatpush2.bf16.msra.mxu0 %v900
    %1219 = vmatprep.mubr.bf16.mxu0 %v266
    %1220 = vmatmul.mubr.bf16.gmra.mxu0 %v265
    %v1221 = vpop.f32.mrf.mxu0
    %v1222 = vadd.f32 %v1179, %v1221
    %v1223 = vpop.f32.mrf.mxu0
    %v1224 = vadd.f32 %v1181, %v1223
    %v1225 = vpop.f32.mrf.mxu0
    %v1226 = vadd.f32 %v1183, %v1225
    %v1227 = vpop.f32.mrf.mxu0
    %v1228 = vadd.f32 %v1185, %v1227
    %1229 = vdwg.mxu0
    %v1230 = vmax.f32 %v1136, 0.0
    %v1231 = vmax.f32 %v1138, 0.0
    %v1232 = vmax.f32 %v1222, 0.0
    %v1233 = vmax.f32 %v1224, 0.0
    %v1234 = vmax.f32 %v1140, 0.0
    %v1235 = vmax.f32 %v1142, 0.0
    %v1236 = vmax.f32 %v1226, 0.0
    %v1237 = vmax.f32 %v1228, 0.0
    %v1238 = vpack.c.bf16 %v1234, %v1230
    %v1239 = vpack.c.bf16 %v1235, %v1231
    %v1240 = vpack.c.bf16 %v1236, %v1232
    %v1241 = vpack.c.bf16 %v1237, %v1233
    %s1242 = scalar_lea.vmem [#allocation7], 1024
    %v1243 = vld [vmem:[%s1242] sm:$0xff]
    %v1244 = vld [vmem:[%s1242 + $0x8] sm:$0xff]
    %v1245 = vld [vmem:[%s1242 + $0x10] sm:$0xff]
    %v1246 = vld [vmem:[%s1242 + $0x18] sm:$0xff]
    %v1247 = vld [vmem:[%s1242 + $0x20] sm:$0xff]
    %v1248 = vld [vmem:[%s1242 + $0x28] sm:$0xff]
    %v1249 = vld [vmem:[%s1242 + $0x30] sm:$0xff]
    %v1250 = vld [vmem:[%s1242 + $0x38] sm:$0xff]
    %v1251 = vld [vmem:[%s1242 + $0x40] sm:$0xff]
    %v1252 = vld [vmem:[%s1242 + $0x48] sm:$0xff]
    %v1253 = vld [vmem:[%s1242 + $0x50] sm:$0xff]
    %v1254 = vld [vmem:[%s1242 + $0x58] sm:$0xff]
    %v1255 = vld [vmem:[%s1242 + $0x60] sm:$0xff]
    %v1256 = vld [vmem:[%s1242 + $0x68] sm:$0xff]
    %v1257 = vld [vmem:[%s1242 + $0x70] sm:$0xff]
    %v1258 = vld [vmem:[%s1242 + $0x78] sm:$0xff]
    %v1259 = vld [vmem:[%s1242 + $0x80] sm:$0xff]
    %v1260 = vld [vmem:[%s1242 + $0x88] sm:$0xff]
    %v1261 = vld [vmem:[%s1242 + $0x90] sm:$0xff]
    %v1262 = vld [vmem:[%s1242 + $0x98] sm:$0xff]
    %v1263 = vld [vmem:[%s1242 + $0xa0] sm:$0xff]
    %v1264 = vld [vmem:[%s1242 + $0xa8] sm:$0xff]
    %v1265 = vld [vmem:[%s1242 + $0xb0] sm:$0xff]
    %v1266 = vld [vmem:[%s1242 + $0xb8] sm:$0xff]
    %v1267 = vld [vmem:[%s1242 + $0xc0] sm:$0xff]
    %v1268 = vld [vmem:[%s1242 + $0xc8] sm:$0xff]
    %v1269 = vld [vmem:[%s1242 + $0xd0] sm:$0xff]
    %v1270 = vld [vmem:[%s1242 + $0xd8] sm:$0xff]
    %v1271 = vld [vmem:[%s1242 + $0xe0] sm:$0xff]
    %v1272 = vld [vmem:[%s1242 + $0xe8] sm:$0xff]
    %v1273 = vld [vmem:[%s1242 + $0xf0] sm:$0xff]
    %v1274 = vld [vmem:[%s1242 + $0xf8] sm:$0xff]
    %v1275 = vld [vmem:[%s1242 + $0x100] sm:$0xff]
    %v1276 = vld [vmem:[%s1242 + $0x108] sm:$0xff]
    %v1277 = vld [vmem:[%s1242 + $0x110] sm:$0xff]
    %v1278 = vld [vmem:[%s1242 + $0x118] sm:$0xff]
    %v1279 = vld [vmem:[%s1242 + $0x120] sm:$0xff]
    %v1280 = vld [vmem:[%s1242 + $0x128] sm:$0xff]
    %v1281 = vld [vmem:[%s1242 + $0x130] sm:$0xff]
    %v1282 = vld [vmem:[%s1242 + $0x138] sm:$0xff]
    %v1283 = vld [vmem:[%s1242 + $0x140] sm:$0xff]
    %v1284 = vld [vmem:[%s1242 + $0x148] sm:$0xff]
    %v1285 = vld [vmem:[%s1242 + $0x150] sm:$0xff]
    %v1286 = vld [vmem:[%s1242 + $0x158] sm:$0xff]
    %v1287 = vld [vmem:[%s1242 + $0x160] sm:$0xff]
    %v1288 = vld [vmem:[%s1242 + $0x168] sm:$0xff]
    %v1289 = vld [vmem:[%s1242 + $0x170] sm:$0xff]
    %v1290 = vld [vmem:[%s1242 + $0x178] sm:$0xff]
    %v1291 = vld [vmem:[%s1242 + $0x180] sm:$0xff]
    %v1292 = vld [vmem:[%s1242 + $0x188] sm:$0xff]
    %v1293 = vld [vmem:[%s1242 + $0x190] sm:$0xff]
    %v1294 = vld [vmem:[%s1242 + $0x198] sm:$0xff]
    %v1295 = vld [vmem:[%s1242 + $0x1a0] sm:$0xff]
    %v1296 = vld [vmem:[%s1242 + $0x1a8] sm:$0xff]
    %v1297 = vld [vmem:[%s1242 + $0x1b0] sm:$0xff]
    %v1298 = vld [vmem:[%s1242 + $0x1b8] sm:$0xff]
    %v1299 = vld [vmem:[%s1242 + $0x1c0] sm:$0xff]
    %v1300 = vld [vmem:[%s1242 + $0x1c8] sm:$0xff]
    %v1301 = vld [vmem:[%s1242 + $0x1d0] sm:$0xff]
    %v1302 = vld [vmem:[%s1242 + $0x1d8] sm:$0xff]
    %v1303 = vld [vmem:[%s1242 + $0x1e0] sm:$0xff]
    %v1304 = vld [vmem:[%s1242 + $0x1e8] sm:$0xff]
    %v1305 = vld [vmem:[%s1242 + $0x1f0] sm:$0xff]
    %v1306 = vld [vmem:[%s1242 + $0x1f8] sm:$0xff]
    %v1307 = vld [vmem:[%s1242 + $0x200] sm:$0xff]
    %v1308 = vld [vmem:[%s1242 + $0x208] sm:$0xff]
    %v1309 = vld [vmem:[%s1242 + $0x210] sm:$0xff]
    %v1310 = vld [vmem:[%s1242 + $0x218] sm:$0xff]
    %v1311 = vld [vmem:[%s1242 + $0x220] sm:$0xff]
    %v1312 = vld [vmem:[%s1242 + $0x228] sm:$0xff]
    %v1313 = vld [vmem:[%s1242 + $0x230] sm:$0xff]
    %v1314 = vld [vmem:[%s1242 + $0x238] sm:$0xff]
    %v1315 = vld [vmem:[%s1242 + $0x240] sm:$0xff]
    %v1316 = vld [vmem:[%s1242 + $0x248] sm:$0xff]
    %v1317 = vld [vmem:[%s1242 + $0x250] sm:$0xff]
    %v1318 = vld [vmem:[%s1242 + $0x258] sm:$0xff]
    %v1319 = vld [vmem:[%s1242 + $0x260] sm:$0xff]
    %v1320 = vld [vmem:[%s1242 + $0x268] sm:$0xff]
    %v1321 = vld [vmem:[%s1242 + $0x270] sm:$0xff]
    %v1322 = vld [vmem:[%s1242 + $0x278] sm:$0xff]
    %v1323 = vld [vmem:[%s1242 + $0x280] sm:$0xff]
    %v1324 = vld [vmem:[%s1242 + $0x288] sm:$0xff]
    %v1325 = vld [vmem:[%s1242 + $0x290] sm:$0xff]
    %v1326 = vld [vmem:[%s1242 + $0x298] sm:$0xff]
    %v1327 = vld [vmem:[%s1242 + $0x2a0] sm:$0xff]
    %v1328 = vld [vmem:[%s1242 + $0x2a8] sm:$0xff]
    %v1329 = vld [vmem:[%s1242 + $0x2b0] sm:$0xff]
    %v1330 = vld [vmem:[%s1242 + $0x2b8] sm:$0xff]
    %v1331 = vld [vmem:[%s1242 + $0x2c0] sm:$0xff]
    %v1332 = vld [vmem:[%s1242 + $0x2c8] sm:$0xff]
    %v1333 = vld [vmem:[%s1242 + $0x2d0] sm:$0xff]
    %v1334 = vld [vmem:[%s1242 + $0x2d8] sm:$0xff]
    %v1335 = vld [vmem:[%s1242 + $0x2e0] sm:$0xff]
    %v1336 = vld [vmem:[%s1242 + $0x2e8] sm:$0xff]
    %v1337 = vld [vmem:[%s1242 + $0x2f0] sm:$0xff]
    %v1338 = vld [vmem:[%s1242 + $0x2f8] sm:$0xff]
    %v1339 = vld [vmem:[%s1242 + $0x300] sm:$0xff]
    %v1340 = vld [vmem:[%s1242 + $0x308] sm:$0xff]
    %v1341 = vld [vmem:[%s1242 + $0x310] sm:$0xff]
    %v1342 = vld [vmem:[%s1242 + $0x318] sm:$0xff]
    %v1343 = vld [vmem:[%s1242 + $0x320] sm:$0xff]
    %v1344 = vld [vmem:[%s1242 + $0x328] sm:$0xff]
    %v1345 = vld [vmem:[%s1242 + $0x330] sm:$0xff]
    %v1346 = vld [vmem:[%s1242 + $0x338] sm:$0xff]
    %v1347 = vld [vmem:[%s1242 + $0x340] sm:$0xff]
    %v1348 = vld [vmem:[%s1242 + $0x348] sm:$0xff]
    %v1349 = vld [vmem:[%s1242 + $0x350] sm:$0xff]
    %v1350 = vld [vmem:[%s1242 + $0x358] sm:$0xff]
    %v1351 = vld [vmem:[%s1242 + $0x360] sm:$0xff]
    %v1352 = vld [vmem:[%s1242 + $0x368] sm:$0xff]
    %v1353 = vld [vmem:[%s1242 + $0x370] sm:$0xff]
    %v1354 = vld [vmem:[%s1242 + $0x378] sm:$0xff]
    %v1355 = vld [vmem:[%s1242 + $0x380] sm:$0xff]
    %v1356 = vld [vmem:[%s1242 + $0x388] sm:$0xff]
    %v1357 = vld [vmem:[%s1242 + $0x390] sm:$0xff]
    %v1358 = vld [vmem:[%s1242 + $0x398] sm:$0xff]
    %v1359 = vld [vmem:[%s1242 + $0x3a0] sm:$0xff]
    %v1360 = vld [vmem:[%s1242 + $0x3a8] sm:$0xff]
    %v1361 = vld [vmem:[%s1242 + $0x3b0] sm:$0xff]
    %v1362 = vld [vmem:[%s1242 + $0x3b8] sm:$0xff]
    %v1363 = vld [vmem:[%s1242 + $0x3c0] sm:$0xff]
    %v1364 = vld [vmem:[%s1242 + $0x3c8] sm:$0xff]
    %v1365 = vld [vmem:[%s1242 + $0x3d0] sm:$0xff]
    %v1366 = vld [vmem:[%s1242 + $0x3d8] sm:$0xff]
    %v1367 = vld [vmem:[%s1242 + $0x3e0] sm:$0xff]
    %v1368 = vld [vmem:[%s1242 + $0x3e8] sm:$0xff]
    %v1369 = vld [vmem:[%s1242 + $0x3f0] sm:$0xff]
    %v1370 = vld [vmem:[%s1242 + $0x3f8] sm:$0xff]
    %s1371 = scalar_lea.vmem [#allocation10], 2
    %v1372 = vld [vmem:[%s1371] ss:$4 sm:$0xf]
    %v1374 = vlaneseq
    %v1375 = vshrl.u32 %v1374, 7
    %v1376 = vsub.s32 0, %v1375
    %v1377 = vrot.slane %v1372, %v1376
    %v1378 = vlaneseq
    %v1379 = vshrl.u32 %v1378, 7
    %v1380 = vsub.s32 1, %v1379
    %v1381 = vrot.slane %v1372, %v1380
    %v1382 = vlaneseq
    %v1383 = vshrl.u32 %v1382, 7
    %v1384 = vsub.s32 2, %v1383
    %v1385 = vrot.slane %v1372, %v1384
    %v1386 = vlaneseq
    %v1387 = vshrl.u32 %v1386, 7
    %v1388 = vsub.s32 3, %v1387
    %v1389 = vrot.slane %v1372, %v1388
    %v1522 = vunpack.c.l.b16 %v1243
    %v1523 = vunpack.c.h.b16 %v1243
    %v1524 = vunpack.c.l.b16 %v1244
    %v1525 = vunpack.c.h.b16 %v1244
    %v1526 = vunpack.c.l.b16 %v1245
    %v1527 = vunpack.c.h.b16 %v1245
    %v1528 = vunpack.c.l.b16 %v1246
    %v1529 = vunpack.c.h.b16 %v1246
    %v1530 = vunpack.c.l.b16 %v1247
    %v1531 = vunpack.c.h.b16 %v1247
    %v1532 = vunpack.c.l.b16 %v1248
    %v1533 = vunpack.c.h.b16 %v1248
    %v1534 = vunpack.c.l.b16 %v1249
    %v1535 = vunpack.c.h.b16 %v1249
    %v1536 = vunpack.c.l.b16 %v1250
    %v1537 = vunpack.c.h.b16 %v1250
    %v1538 = vunpack.c.l.b16 %v1251
    %v1539 = vunpack.c.h.b16 %v1251
    %v1540 = vunpack.c.l.b16 %v1252
    %v1541 = vunpack.c.h.b16 %v1252
    %v1542 = vunpack.c.l.b16 %v1253
    %v1543 = vunpack.c.h.b16 %v1253
    %v1544 = vunpack.c.l.b16 %v1254
    %v1545 = vunpack.c.h.b16 %v1254
    %v1546 = vunpack.c.l.b16 %v1255
    %v1547 = vunpack.c.h.b16 %v1255
    %v1548 = vunpack.c.l.b16 %v1256
    %v1549 = vunpack.c.h.b16 %v1256
    %v1550 = vunpack.c.l.b16 %v1257
    %v1551 = vunpack.c.h.b16 %v1257
    %v1552 = vunpack.c.l.b16 %v1258
    %v1553 = vunpack.c.h.b16 %v1258
    %v1554 = vunpack.c.l.b16 %v1259
    %v1555 = vunpack.c.h.b16 %v1259
    %v1556 = vunpack.c.l.b16 %v1260
    %v1557 = vunpack.c.h.b16 %v1260
    %v1558 = vunpack.c.l.b16 %v1261
    %v1559 = vunpack.c.h.b16 %v1261
    %v1560 = vunpack.c.l.b16 %v1262
    %v1561 = vunpack.c.h.b16 %v1262
    %v1562 = vunpack.c.l.b16 %v1263
    %v1563 = vunpack.c.h.b16 %v1263
    %v1564 = vunpack.c.l.b16 %v1264
    %v1565 = vunpack.c.h.b16 %v1264
    %v1566 = vunpack.c.l.b16 %v1265
    %v1567 = vunpack.c.h.b16 %v1265
    %v1568 = vunpack.c.l.b16 %v1266
    %v1569 = vunpack.c.h.b16 %v1266
    %v1570 = vunpack.c.l.b16 %v1267
    %v1571 = vunpack.c.h.b16 %v1267
    %v1572 = vunpack.c.l.b16 %v1268
    %v1573 = vunpack.c.h.b16 %v1268
    %v1574 = vunpack.c.l.b16 %v1269
    %v1575 = vunpack.c.h.b16 %v1269
    %v1576 = vunpack.c.l.b16 %v1270
    %v1577 = vunpack.c.h.b16 %v1270
    %v1578 = vunpack.c.l.b16 %v1271
    %v1579 = vunpack.c.h.b16 %v1271
    %v1580 = vunpack.c.l.b16 %v1272
    %v1581 = vunpack.c.h.b16 %v1272
    %v1582 = vunpack.c.l.b16 %v1273
    %v1583 = vunpack.c.h.b16 %v1273
    %v1584 = vunpack.c.l.b16 %v1274
    %v1585 = vunpack.c.h.b16 %v1274
    %v1586 = vunpack.c.l.b16 %v1275
    %v1587 = vunpack.c.h.b16 %v1275
    %v1588 = vunpack.c.l.b16 %v1276
    %v1589 = vunpack.c.h.b16 %v1276
    %v1590 = vunpack.c.l.b16 %v1277
    %v1591 = vunpack.c.h.b16 %v1277
    %v1592 = vunpack.c.l.b16 %v1278
    %v1593 = vunpack.c.h.b16 %v1278
    %v1594 = vunpack.c.l.b16 %v1279
    %v1595 = vunpack.c.h.b16 %v1279
    %v1596 = vunpack.c.l.b16 %v1280
    %v1597 = vunpack.c.h.b16 %v1280
    %v1598 = vunpack.c.l.b16 %v1281
    %v1599 = vunpack.c.h.b16 %v1281
    %v1600 = vunpack.c.l.b16 %v1282
    %v1601 = vunpack.c.h.b16 %v1282
    %v1602 = vunpack.c.l.b16 %v1283
    %v1603 = vunpack.c.h.b16 %v1283
    %v1604 = vunpack.c.l.b16 %v1284
    %v1605 = vunpack.c.h.b16 %v1284
    %v1606 = vunpack.c.l.b16 %v1285
    %v1607 = vunpack.c.h.b16 %v1285
    %v1608 = vunpack.c.l.b16 %v1286
    %v1609 = vunpack.c.h.b16 %v1286
    %v1610 = vunpack.c.l.b16 %v1287
    %v1611 = vunpack.c.h.b16 %v1287
    %v1612 = vunpack.c.l.b16 %v1288
    %v1613 = vunpack.c.h.b16 %v1288
    %v1614 = vunpack.c.l.b16 %v1289
    %v1615 = vunpack.c.h.b16 %v1289
    %v1616 = vunpack.c.l.b16 %v1290
    %v1617 = vunpack.c.h.b16 %v1290
    %v1618 = vunpack.c.l.b16 %v1291
    %v1619 = vunpack.c.h.b16 %v1291
    %v1620 = vunpack.c.l.b16 %v1292
    %v1621 = vunpack.c.h.b16 %v1292
    %v1622 = vunpack.c.l.b16 %v1293
    %v1623 = vunpack.c.h.b16 %v1293
    %v1624 = vunpack.c.l.b16 %v1294
    %v1625 = vunpack.c.h.b16 %v1294
    %v1626 = vunpack.c.l.b16 %v1295
    %v1627 = vunpack.c.h.b16 %v1295
    %v1628 = vunpack.c.l.b16 %v1296
    %v1629 = vunpack.c.h.b16 %v1296
    %v1630 = vunpack.c.l.b16 %v1297
    %v1631 = vunpack.c.h.b16 %v1297
    %v1632 = vunpack.c.l.b16 %v1298
    %v1633 = vunpack.c.h.b16 %v1298
    %v1634 = vunpack.c.l.b16 %v1299
    %v1635 = vunpack.c.h.b16 %v1299
    %v1636 = vunpack.c.l.b16 %v1300
    %v1637 = vunpack.c.h.b16 %v1300
    %v1638 = vunpack.c.l.b16 %v1301
    %v1639 = vunpack.c.h.b16 %v1301
    %v1640 = vunpack.c.l.b16 %v1302
    %v1641 = vunpack.c.h.b16 %v1302
    %v1642 = vunpack.c.l.b16 %v1303
    %v1643 = vunpack.c.h.b16 %v1303
    %v1644 = vunpack.c.l.b16 %v1304
    %v1645 = vunpack.c.h.b16 %v1304
    %v1646 = vunpack.c.l.b16 %v1305
    %v1647 = vunpack.c.h.b16 %v1305
    %v1648 = vunpack.c.l.b16 %v1306
    %v1649 = vunpack.c.h.b16 %v1306
    %v1650 = vunpack.c.l.b16 %v1307
    %v1651 = vunpack.c.h.b16 %v1307
    %v1652 = vunpack.c.l.b16 %v1308
    %v1653 = vunpack.c.h.b16 %v1308
    %v1654 = vunpack.c.l.b16 %v1309
    %v1655 = vunpack.c.h.b16 %v1309
    %v1656 = vunpack.c.l.b16 %v1310
    %v1657 = vunpack.c.h.b16 %v1310
    %v1658 = vunpack.c.l.b16 %v1311
    %v1659 = vunpack.c.h.b16 %v1311
    %v1660 = vunpack.c.l.b16 %v1312
    %v1661 = vunpack.c.h.b16 %v1312
    %v1662 = vunpack.c.l.b16 %v1313
    %v1663 = vunpack.c.h.b16 %v1313
    %v1664 = vunpack.c.l.b16 %v1314
    %v1665 = vunpack.c.h.b16 %v1314
    %v1666 = vunpack.c.l.b16 %v1315
    %v1667 = vunpack.c.h.b16 %v1315
    %v1668 = vunpack.c.l.b16 %v1316
    %v1669 = vunpack.c.h.b16 %v1316
    %v1670 = vunpack.c.l.b16 %v1317
    %v1671 = vunpack.c.h.b16 %v1317
    %v1672 = vunpack.c.l.b16 %v1318
    %v1673 = vunpack.c.h.b16 %v1318
    %v1674 = vunpack.c.l.b16 %v1319
    %v1675 = vunpack.c.h.b16 %v1319
    %v1676 = vunpack.c.l.b16 %v1320
    %v1677 = vunpack.c.h.b16 %v1320
    %v1678 = vunpack.c.l.b16 %v1321
    %v1679 = vunpack.c.h.b16 %v1321
    %v1680 = vunpack.c.l.b16 %v1322
    %v1681 = vunpack.c.h.b16 %v1322
    %v1682 = vunpack.c.l.b16 %v1323
    %v1683 = vunpack.c.h.b16 %v1323
    %v1684 = vunpack.c.l.b16 %v1324
    %v1685 = vunpack.c.h.b16 %v1324
    %v1686 = vunpack.c.l.b16 %v1325
    %v1687 = vunpack.c.h.b16 %v1325
    %v1688 = vunpack.c.l.b16 %v1326
    %v1689 = vunpack.c.h.b16 %v1326
    %v1690 = vunpack.c.l.b16 %v1327
    %v1691 = vunpack.c.h.b16 %v1327
    %v1692 = vunpack.c.l.b16 %v1328
    %v1693 = vunpack.c.h.b16 %v1328
    %v1694 = vunpack.c.l.b16 %v1329
    %v1695 = vunpack.c.h.b16 %v1329
    %v1696 = vunpack.c.l.b16 %v1330
    %v1697 = vunpack.c.h.b16 %v1330
    %v1698 = vunpack.c.l.b16 %v1331
    %v1699 = vunpack.c.h.b16 %v1331
    %v1700 = vunpack.c.l.b16 %v1332
    %v1701 = vunpack.c.h.b16 %v1332
    %v1702 = vunpack.c.l.b16 %v1333
    %v1703 = vunpack.c.h.b16 %v1333
    %v1704 = vunpack.c.l.b16 %v1334
    %v1705 = vunpack.c.h.b16 %v1334
    %v1706 = vunpack.c.l.b16 %v1335
    %v1707 = vunpack.c.h.b16 %v1335
    %v1708 = vunpack.c.l.b16 %v1336
    %v1709 = vunpack.c.h.b16 %v1336
    %v1710 = vunpack.c.l.b16 %v1337
    %v1711 = vunpack.c.h.b16 %v1337
    %v1712 = vunpack.c.l.b16 %v1338
    %v1713 = vunpack.c.h.b16 %v1338
    %v1714 = vunpack.c.l.b16 %v1339
    %v1715 = vunpack.c.h.b16 %v1339
    %v1716 = vunpack.c.l.b16 %v1340
    %v1717 = vunpack.c.h.b16 %v1340
    %v1718 = vunpack.c.l.b16 %v1341
    %v1719 = vunpack.c.h.b16 %v1341
    %v1720 = vunpack.c.l.b16 %v1342
    %v1721 = vunpack.c.h.b16 %v1342
    %v1722 = vunpack.c.l.b16 %v1343
    %v1723 = vunpack.c.h.b16 %v1343
    %v1724 = vunpack.c.l.b16 %v1344
    %v1725 = vunpack.c.h.b16 %v1344
    %v1726 = vunpack.c.l.b16 %v1345
    %v1727 = vunpack.c.h.b16 %v1345
    %v1728 = vunpack.c.l.b16 %v1346
    %v1729 = vunpack.c.h.b16 %v1346
    %v1730 = vunpack.c.l.b16 %v1347
    %v1731 = vunpack.c.h.b16 %v1347
    %v1732 = vunpack.c.l.b16 %v1348
    %v1733 = vunpack.c.h.b16 %v1348
    %v1734 = vunpack.c.l.b16 %v1349
    %v1735 = vunpack.c.h.b16 %v1349
    %v1736 = vunpack.c.l.b16 %v1350
    %v1737 = vunpack.c.h.b16 %v1350
    %v1738 = vunpack.c.l.b16 %v1351
    %v1739 = vunpack.c.h.b16 %v1351
    %v1740 = vunpack.c.l.b16 %v1352
    %v1741 = vunpack.c.h.b16 %v1352
    %v1742 = vunpack.c.l.b16 %v1353
    %v1743 = vunpack.c.h.b16 %v1353
    %v1744 = vunpack.c.l.b16 %v1354
    %v1745 = vunpack.c.h.b16 %v1354
    %v1746 = vunpack.c.l.b16 %v1355
    %v1747 = vunpack.c.h.b16 %v1355
    %v1748 = vunpack.c.l.b16 %v1356
    %v1749 = vunpack.c.h.b16 %v1356
    %v1750 = vunpack.c.l.b16 %v1357
    %v1751 = vunpack.c.h.b16 %v1357
    %v1752 = vunpack.c.l.b16 %v1358
    %v1753 = vunpack.c.h.b16 %v1358
    %v1754 = vunpack.c.l.b16 %v1359
    %v1755 = vunpack.c.h.b16 %v1359
    %v1756 = vunpack.c.l.b16 %v1360
    %v1757 = vunpack.c.h.b16 %v1360
    %v1758 = vunpack.c.l.b16 %v1361
    %v1759 = vunpack.c.h.b16 %v1361
    %v1760 = vunpack.c.l.b16 %v1362
    %v1761 = vunpack.c.h.b16 %v1362
    %v1762 = vunpack.c.l.b16 %v1363
    %v1763 = vunpack.c.h.b16 %v1363
    %v1764 = vunpack.c.l.b16 %v1364
    %v1765 = vunpack.c.h.b16 %v1364
    %v1766 = vunpack.c.l.b16 %v1365
    %v1767 = vunpack.c.h.b16 %v1365
    %v1768 = vunpack.c.l.b16 %v1366
    %v1769 = vunpack.c.h.b16 %v1366
    %v1770 = vunpack.c.l.b16 %v1367
    %v1771 = vunpack.c.h.b16 %v1367
    %v1772 = vunpack.c.l.b16 %v1368
    %v1773 = vunpack.c.h.b16 %v1368
    %v1774 = vunpack.c.l.b16 %v1369
    %v1775 = vunpack.c.h.b16 %v1369
    %v1776 = vunpack.c.l.b16 %v1370
    %v1777 = vunpack.c.h.b16 %v1370
    %v1778 = vpack.c.b16 %v1526, %v1522
    %v1779 = vpack.c.b16 %v1527, %v1523
    %v1780 = vpack.c.b16 %v1528, %v1524
    %v1781 = vpack.c.b16 %v1529, %v1525
    %v1782 = vpack.c.b16 %v1534, %v1530
    %v1783 = vpack.c.b16 %v1535, %v1531
    %v1784 = vpack.c.b16 %v1536, %v1532
    %v1785 = vpack.c.b16 %v1537, %v1533
    %v1786 = vpack.c.b16 %v1542, %v1538
    %v1787 = vpack.c.b16 %v1543, %v1539
    %v1788 = vpack.c.b16 %v1544, %v1540
    %v1789 = vpack.c.b16 %v1545, %v1541
    %v1790 = vpack.c.b16 %v1550, %v1546
    %v1791 = vpack.c.b16 %v1551, %v1547
    %v1792 = vpack.c.b16 %v1552, %v1548
    %v1793 = vpack.c.b16 %v1553, %v1549
    %v1794 = vpack.c.b16 %v1558, %v1554
    %v1795 = vpack.c.b16 %v1559, %v1555
    %v1796 = vpack.c.b16 %v1560, %v1556
    %v1797 = vpack.c.b16 %v1561, %v1557
    %v1798 = vpack.c.b16 %v1566, %v1562
    %v1799 = vpack.c.b16 %v1567, %v1563
    %v1800 = vpack.c.b16 %v1568, %v1564
    %v1801 = vpack.c.b16 %v1569, %v1565
    %v1802 = vpack.c.b16 %v1574, %v1570
    %v1803 = vpack.c.b16 %v1575, %v1571
    %v1804 = vpack.c.b16 %v1576, %v1572
    %v1805 = vpack.c.b16 %v1577, %v1573
    %v1806 = vpack.c.b16 %v1582, %v1578
    %v1807 = vpack.c.b16 %v1583, %v1579
    %v1808 = vpack.c.b16 %v1584, %v1580
    %v1809 = vpack.c.b16 %v1585, %v1581
    %v1810 = vpack.c.b16 %v1590, %v1586
    %v1811 = vpack.c.b16 %v1591, %v1587
    %v1812 = vpack.c.b16 %v1592, %v1588
    %v1813 = vpack.c.b16 %v1593, %v1589
    %v1814 = vpack.c.b16 %v1598, %v1594
    %v1815 = vpack.c.b16 %v1599, %v1595
    %v1816 = vpack.c.b16 %v1600, %v1596
    %v1817 = vpack.c.b16 %v1601, %v1597
    %v1818 = vpack.c.b16 %v1606, %v1602
    %v1819 = vpack.c.b16 %v1607, %v1603
    %v1820 = vpack.c.b16 %v1608, %v1604
    %v1821 = vpack.c.b16 %v1609, %v1605
    %v1822 = vpack.c.b16 %v1614, %v1610
    %v1823 = vpack.c.b16 %v1615, %v1611
    %v1824 = vpack.c.b16 %v1616, %v1612
    %v1825 = vpack.c.b16 %v1617, %v1613
    %v1826 = vpack.c.b16 %v1622, %v1618
    %v1827 = vpack.c.b16 %v1623, %v1619
    %v1828 = vpack.c.b16 %v1624, %v1620
    %v1829 = vpack.c.b16 %v1625, %v1621
    %v1830 = vpack.c.b16 %v1630, %v1626
    %v1831 = vpack.c.b16 %v1631, %v1627
    %v1832 = vpack.c.b16 %v1632, %v1628
    %v1833 = vpack.c.b16 %v1633, %v1629
    %v1834 = vpack.c.b16 %v1638, %v1634
    %v1835 = vpack.c.b16 %v1639, %v1635
    %v1836 = vpack.c.b16 %v1640, %v1636
    %v1837 = vpack.c.b16 %v1641, %v1637
    %v1838 = vpack.c.b16 %v1646, %v1642
    %v1839 = vpack.c.b16 %v1647, %v1643
    %v1840 = vpack.c.b16 %v1648, %v1644
    %v1841 = vpack.c.b16 %v1649, %v1645
    %v1842 = vpack.c.b16 %v1654, %v1650
    %v1843 = vpack.c.b16 %v1655, %v1651
    %v1844 = vpack.c.b16 %v1656, %v1652
    %v1845 = vpack.c.b16 %v1657, %v1653
    %v1846 = vpack.c.b16 %v1662, %v1658
    %v1847 = vpack.c.b16 %v1663, %v1659
    %v1848 = vpack.c.b16 %v1664, %v1660
    %v1849 = vpack.c.b16 %v1665, %v1661
    %v1850 = vpack.c.b16 %v1670, %v1666
    %v1851 = vpack.c.b16 %v1671, %v1667
    %v1852 = vpack.c.b16 %v1672, %v1668
    %v1853 = vpack.c.b16 %v1673, %v1669
    %v1854 = vpack.c.b16 %v1678, %v1674
    %v1855 = vpack.c.b16 %v1679, %v1675
    %v1856 = vpack.c.b16 %v1680, %v1676
    %v1857 = vpack.c.b16 %v1681, %v1677
    %v1858 = vpack.c.b16 %v1686, %v1682
    %v1859 = vpack.c.b16 %v1687, %v1683
    %v1860 = vpack.c.b16 %v1688, %v1684
    %v1861 = vpack.c.b16 %v1689, %v1685
    %v1862 = vpack.c.b16 %v1694, %v1690
    %v1863 = vpack.c.b16 %v1695, %v1691
    %v1864 = vpack.c.b16 %v1696, %v1692
    %v1865 = vpack.c.b16 %v1697, %v1693
    %v1866 = vpack.c.b16 %v1702, %v1698
    %v1867 = vpack.c.b16 %v1703, %v1699
    %v1868 = vpack.c.b16 %v1704, %v1700
    %v1869 = vpack.c.b16 %v1705, %v1701
    %v1870 = vpack.c.b16 %v1710, %v1706
    %v1871 = vpack.c.b16 %v1711, %v1707
    %v1872 = vpack.c.b16 %v1712, %v1708
    %v1873 = vpack.c.b16 %v1713, %v1709
    %v1874 = vpack.c.b16 %v1718, %v1714
    %v1875 = vpack.c.b16 %v1719, %v1715
    %v1876 = vpack.c.b16 %v1720, %v1716
    %v1877 = vpack.c.b16 %v1721, %v1717
    %v1878 = vpack.c.b16 %v1726, %v1722
    %v1879 = vpack.c.b16 %v1727, %v1723
    %v1880 = vpack.c.b16 %v1728, %v1724
    %v1881 = vpack.c.b16 %v1729, %v1725
    %v1882 = vpack.c.b16 %v1734, %v1730
    %v1883 = vpack.c.b16 %v1735, %v1731
    %v1884 = vpack.c.b16 %v1736, %v1732
    %v1885 = vpack.c.b16 %v1737, %v1733
    %v1886 = vpack.c.b16 %v1742, %v1738
    %v1887 = vpack.c.b16 %v1743, %v1739
    %v1888 = vpack.c.b16 %v1744, %v1740
    %v1889 = vpack.c.b16 %v1745, %v1741
    %v1890 = vpack.c.b16 %v1750, %v1746
    %v1891 = vpack.c.b16 %v1751, %v1747
    %v1892 = vpack.c.b16 %v1752, %v1748
    %v1893 = vpack.c.b16 %v1753, %v1749
    %v1894 = vpack.c.b16 %v1758, %v1754
    %v1895 = vpack.c.b16 %v1759, %v1755
    %v1896 = vpack.c.b16 %v1760, %v1756
    %v1897 = vpack.c.b16 %v1761, %v1757
    %v1898 = vpack.c.b16 %v1766, %v1762
    %v1899 = vpack.c.b16 %v1767, %v1763
    %v1900 = vpack.c.b16 %v1768, %v1764
    %v1901 = vpack.c.b16 %v1769, %v1765
    %v1902 = vpack.c.b16 %v1774, %v1770
    %v1903 = vpack.c.b16 %v1775, %v1771
    %v1904 = vpack.c.b16 %v1776, %v1772
    %v1905 = vpack.c.b16 %v1777, %v1773
    %2034 = vmatprep.subr.bf16.mxu0 %v1807
    %2035 = vmatpush1.bf16.msra.mxu0 %v1806
    %2036 = vmatprep.subr.bf16.mxu0 %v1803
    %2037 = vmatpush1.bf16.msra.mxu0 %v1802
    %2038 = vmatprep.subr.bf16.mxu0 %v1799
    %2039 = vmatpush1.bf16.msra.mxu0 %v1798
    %2040 = vmatprep.subr.bf16.mxu0 %v1795
    %2041 = vmatpush1.bf16.msra.mxu0 %v1794
    %2042 = vmatprep.subr.bf16.mxu0 %v1791
    %2043 = vmatpush1.bf16.msra.mxu0 %v1790
    %2044 = vmatprep.subr.bf16.mxu0 %v1787
    %2045 = vmatpush1.bf16.msra.mxu0 %v1786
    %2046 = vmatprep.subr.bf16.mxu0 %v1783
    %2047 = vmatpush1.bf16.msra.mxu0 %v1782
    %2048 = vmatprep.subr.bf16.mxu0 %v1779
    %2049 = vmatpush1.bf16.msra.mxu0 %v1778
    %2050 = vmatprep.subr.bf16.mxu0 %v1839
    %2051 = vmatpush2.bf16.msra.mxu0 %v1838
    %2052 = vmatprep.subr.bf16.mxu0 %v1835
    %2053 = vmatpush2.bf16.msra.mxu0 %v1834
    %2054 = vmatprep.subr.bf16.mxu0 %v1831
    %2055 = vmatpush2.bf16.msra.mxu0 %v1830
    %2056 = vmatprep.subr.bf16.mxu0 %v1827
    %2057 = vmatpush2.bf16.msra.mxu0 %v1826
    %2058 = vmatprep.subr.bf16.mxu0 %v1823
    %2059 = vmatpush2.bf16.msra.mxu0 %v1822
    %2060 = vmatprep.subr.bf16.mxu0 %v1819
    %2061 = vmatpush2.bf16.msra.mxu0 %v1818
    %2062 = vmatprep.subr.bf16.mxu0 %v1815
    %2063 = vmatpush2.bf16.msra.mxu0 %v1814
    %2064 = vmatprep.subr.bf16.mxu0 %v1811
    %2065 = vmatpush2.bf16.msra.mxu0 %v1810
    %2066 = vmatprep.mubr.bf16.mxu0 %v1239
    %2067 = vmatmul.mubr.bf16.gmra.mxu0 %v1238
    %v2068 = vpop.f32.mrf.mxu0
    %v2069 = vadd.f32 %v1377, %v2068
    %v2070 = vpop.f32.mrf.mxu0
    %v2071 = vadd.f32 %v1381, %v2070
    %v2072 = vpop.f32.mrf.mxu0
    %v2073 = vadd.f32 %v1377, %v2072
    %v2074 = vpop.f32.mrf.mxu0
    %v2075 = vadd.f32 %v1381, %v2074
    %2076 = vdwg.mxu0
    %2077 = vmatprep.subr.bf16.mxu0 %v1871
    %2078 = vmatpush1.bf16.msra.mxu0 %v1870
    %2079 = vmatprep.subr.bf16.mxu0 %v1867
    %2080 = vmatpush1.bf16.msra.mxu0 %v1866
    %2081 = vmatprep.subr.bf16.mxu0 %v1863
    %2082 = vmatpush1.bf16.msra.mxu0 %v1862
    %2083 = vmatprep.subr.bf16.mxu0 %v1859
    %2084 = vmatpush1.bf16.msra.mxu0 %v1858
    %2085 = vmatprep.subr.bf16.mxu0 %v1855
    %2086 = vmatpush1.bf16.msra.mxu0 %v1854
    %2087 = vmatprep.subr.bf16.mxu0 %v1851
    %2088 = vmatpush1.bf16.msra.mxu0 %v1850
    %2089 = vmatprep.subr.bf16.mxu0 %v1847
    %2090 = vmatpush1.bf16.msra.mxu0 %v1846
    %2091 = vmatprep.subr.bf16.mxu0 %v1843
    %2092 = vmatpush1.bf16.msra.mxu0 %v1842
    %2093 = vmatprep.subr.bf16.mxu0 %v1903
    %2094 = vmatpush2.bf16.msra.mxu0 %v1902
    %2095 = vmatprep.subr.bf16.mxu0 %v1899
    %2096 = vmatpush2.bf16.msra.mxu0 %v1898
    %2097 = vmatprep.subr.bf16.mxu0 %v1895
    %2098 = vmatpush2.bf16.msra.mxu0 %v1894
    %2099 = vmatprep.subr.bf16.mxu0 %v1891
    %2100 = vmatpush2.bf16.msra.mxu0 %v1890
    %2101 = vmatprep.subr.bf16.mxu0 %v1887
    %2102 = vmatpush2.bf16.msra.mxu0 %v1886
    %2103 = vmatprep.subr.bf16.mxu0 %v1883
    %2104 = vmatpush2.bf16.msra.mxu0 %v1882
    %2105 = vmatprep.subr.bf16.mxu0 %v1879
    %2106 = vmatpush2.bf16.msra.mxu0 %v1878
    %2107 = vmatprep.subr.bf16.mxu0 %v1875
    %2108 = vmatpush2.bf16.msra.mxu0 %v1874
    %2109 = vmatprep.mubr.bf16.mxu0 %v1241
    %2110 = vmatmul.mubr.bf16.gmra.mxu0 %v1240
    %v2111 = vpop.f32.mrf.mxu0
    %v2112 = vadd.f32 %v2069, %v2111
    %v2113 = vpop.f32.mrf.mxu0
    %v2114 = vadd.f32 %v2071, %v2113
    %v2115 = vpop.f32.mrf.mxu0
    %v2116 = vadd.f32 %v2073, %v2115
    %v2117 = vpop.f32.mrf.mxu0
    %v2118 = vadd.f32 %v2075, %v2117
    %2119 = vdwg.mxu0
    %2120 = vmatprep.subr.bf16.mxu0 %v1809
    %2121 = vmatpush1.bf16.msra.mxu0 %v1808
    %2122 = vmatprep.subr.bf16.mxu0 %v1805
    %2123 = vmatpush1.bf16.msra.mxu0 %v1804
    %2124 = vmatprep.subr.bf16.mxu0 %v1801
    %2125 = vmatpush1.bf16.msra.mxu0 %v1800
    %2126 = vmatprep.subr.bf16.mxu0 %v1797
    %2127 = vmatpush1.bf16.msra.mxu0 %v1796
    %2128 = vmatprep.subr.bf16.mxu0 %v1793
    %2129 = vmatpush1.bf16.msra.mxu0 %v1792
    %2130 = vmatprep.subr.bf16.mxu0 %v1789
    %2131 = vmatpush1.bf16.msra.mxu0 %v1788
    %2132 = vmatprep.subr.bf16.mxu0 %v1785
    %2133 = vmatpush1.bf16.msra.mxu0 %v1784
    %2134 = vmatprep.subr.bf16.mxu0 %v1781
    %2135 = vmatpush1.bf16.msra.mxu0 %v1780
    %2136 = vmatprep.subr.bf16.mxu0 %v1841
    %2137 = vmatpush2.bf16.msra.mxu0 %v1840
    %2138 = vmatprep.subr.bf16.mxu0 %v1837
    %2139 = vmatpush2.bf16.msra.mxu0 %v1836
    %2140 = vmatprep.subr.bf16.mxu0 %v1833
    %2141 = vmatpush2.bf16.msra.mxu0 %v1832
    %2142 = vmatprep.subr.bf16.mxu0 %v1829
    %2143 = vmatpush2.bf16.msra.mxu0 %v1828
    %2144 = vmatprep.subr.bf16.mxu0 %v1825
    %2145 = vmatpush2.bf16.msra.mxu0 %v1824
    %2146 = vmatprep.subr.bf16.mxu0 %v1821
    %2147 = vmatpush2.bf16.msra.mxu0 %v1820
    %2148 = vmatprep.subr.bf16.mxu0 %v1817
    %2149 = vmatpush2.bf16.msra.mxu0 %v1816
    %2150 = vmatprep.subr.bf16.mxu0 %v1813
    %2151 = vmatpush2.bf16.msra.mxu0 %v1812
    %2152 = vmatprep.mubr.bf16.mxu0 %v1239
    %2153 = vmatmul.mubr.bf16.gmra.mxu0 %v1238
    %v2154 = vpop.f32.mrf.mxu0
    %v2155 = vadd.f32 %v1385, %v2154
    %v2156 = vpop.f32.mrf.mxu0
    %v2157 = vadd.f32 %v1389, %v2156
    %v2158 = vpop.f32.mrf.mxu0
    %v2159 = vadd.f32 %v1385, %v2158
    %v2160 = vpop.f32.mrf.mxu0
    %v2161 = vadd.f32 %v1389, %v2160
    %2162 = vdwg.mxu0
    %2163 = vmatprep.subr.bf16.mxu0 %v1873
    %2164 = vmatpush1.bf16.msra.mxu0 %v1872
    %2165 = vmatprep.subr.bf16.mxu0 %v1869
    %2166 = vmatpush1.bf16.msra.mxu0 %v1868
    %2167 = vmatprep.subr.bf16.mxu0 %v1865
    %2168 = vmatpush1.bf16.msra.mxu0 %v1864
    %2169 = vmatprep.subr.bf16.mxu0 %v1861
    %2170 = vmatpush1.bf16.msra.mxu0 %v1860
    %2171 = vmatprep.subr.bf16.mxu0 %v1857
    %2172 = vmatpush1.bf16.msra.mxu0 %v1856
    %2173 = vmatprep.subr.bf16.mxu0 %v1853
    %2174 = vmatpush1.bf16.msra.mxu0 %v1852
    %2175 = vmatprep.subr.bf16.mxu0 %v1849
    %2176 = vmatpush1.bf16.msra.mxu0 %v1848
    %2177 = vmatprep.subr.bf16.mxu0 %v1845
    %2178 = vmatpush1.bf16.msra.mxu0 %v1844
    %2179 = vmatprep.subr.bf16.mxu0 %v1905
    %2180 = vmatpush2.bf16.msra.mxu0 %v1904
    %2181 = vmatprep.subr.bf16.mxu0 %v1901
    %2182 = vmatpush2.bf16.msra.mxu0 %v1900
    %2183 = vmatprep.subr.bf16.mxu0 %v1897
    %2184 = vmatpush2.bf16.msra.mxu0 %v1896
    %2185 = vmatprep.subr.bf16.mxu0 %v1893
    %2186 = vmatpush2.bf16.msra.mxu0 %v1892
    %2187 = vmatprep.subr.bf16.mxu0 %v1889
    %2188 = vmatpush2.bf16.msra.mxu0 %v1888
    %2189 = vmatprep.subr.bf16.mxu0 %v1885
    %2190 = vmatpush2.bf16.msra.mxu0 %v1884
    %2191 = vmatprep.subr.bf16.mxu0 %v1881
    %2192 = vmatpush2.bf16.msra.mxu0 %v1880
    %2193 = vmatprep.subr.bf16.mxu0 %v1877
    %2194 = vmatpush2.bf16.msra.mxu0 %v1876
    %2195 = vmatprep.mubr.bf16.mxu0 %v1241
    %2196 = vmatmul.mubr.bf16.gmra.mxu0 %v1240
    %v2197 = vpop.f32.mrf.mxu0
    %v2198 = vadd.f32 %v2155, %v2197
    %v2199 = vpop.f32.mrf.mxu0
    %v2200 = vadd.f32 %v2157, %v2199
    %v2201 = vpop.f32.mrf.mxu0
    %v2202 = vadd.f32 %v2159, %v2201
    %v2203 = vpop.f32.mrf.mxu0
    %v2204 = vadd.f32 %v2161, %v2203
    %2205 = vdwg.mxu0
    %v2206 = vmax.f32 %v2112, 0.0
    %v2207 = vmax.f32 %v2114, 0.0
    %v2208 = vmax.f32 %v2198, 0.0
    %v2209 = vmax.f32 %v2200, 0.0
    %v2210 = vmax.f32 %v2116, 0.0
    %v2211 = vmax.f32 %v2118, 0.0
    %v2212 = vmax.f32 %v2202, 0.0
    %v2213 = vmax.f32 %v2204, 0.0
    %v2214 = vpack.c.bf16 %v2210, %v2206
    %v2215 = vpack.c.bf16 %v2211, %v2207
    %v2216 = vpack.c.bf16 %v2212, %v2208
    %v2217 = vpack.c.bf16 %v2213, %v2209
    %v2218 = vld [vmem:[#allocation8] sm:$0xf]
    %v2219 = vld [vmem:[#allocation8 + $0x4] sm:$0xf]
    %v2220 = vld [vmem:[#allocation8 + $0x8] sm:$0xf]
    %v2221 = vld [vmem:[#allocation8 + $0xc] sm:$0xf]
    %v2222 = vld [vmem:[#allocation8 + $0x10] sm:$0xf]
    %v2223 = vld [vmem:[#allocation8 + $0x14] sm:$0xf]
    %v2224 = vld [vmem:[#allocation8 + $0x18] sm:$0xf]
    %v2225 = vld [vmem:[#allocation8 + $0x1c] sm:$0xf]
    %v2226 = vld [vmem:[#allocation8 + $0x20] sm:$0xf]
    %v2227 = vld [vmem:[#allocation8 + $0x24] sm:$0xf]
    %v2228 = vld [vmem:[#allocation8 + $0x28] sm:$0xf]
    %v2229 = vld [vmem:[#allocation8 + $0x2c] sm:$0xf]
    %v2230 = vld [vmem:[#allocation8 + $0x30] sm:$0xf]
    %v2231 = vld [vmem:[#allocation8 + $0x34] sm:$0xf]
    %v2232 = vld [vmem:[#allocation8 + $0x38] sm:$0xf]
    %v2233 = vld [vmem:[#allocation8 + $0x3c] sm:$0xf]
    %v2234 = vld [vmem:[#allocation8 + $0x40] sm:$0xf]
    %v2235 = vld [vmem:[#allocation8 + $0x44] sm:$0xf]
    %v2236 = vld [vmem:[#allocation8 + $0x48] sm:$0xf]
    %v2237 = vld [vmem:[#allocation8 + $0x4c] sm:$0xf]
    %v2238 = vld [vmem:[#allocation8 + $0x50] sm:$0xf]
    %v2239 = vld [vmem:[#allocation8 + $0x54] sm:$0xf]
    %v2240 = vld [vmem:[#allocation8 + $0x58] sm:$0xf]
    %v2241 = vld [vmem:[#allocation8 + $0x5c] sm:$0xf]
    %v2242 = vld [vmem:[#allocation8 + $0x60] sm:$0xf]
    %v2243 = vld [vmem:[#allocation8 + $0x64] sm:$0xf]
    %v2244 = vld [vmem:[#allocation8 + $0x68] sm:$0xf]
    %v2245 = vld [vmem:[#allocation8 + $0x6c] sm:$0xf]
    %v2246 = vld [vmem:[#allocation8 + $0x70] sm:$0xf]
    %v2247 = vld [vmem:[#allocation8 + $0x74] sm:$0xf]
    %v2248 = vld [vmem:[#allocation8 + $0x78] sm:$0xf]
    %v2249 = vld [vmem:[#allocation8 + $0x7c] sm:$0xf]
    %v2250 = vld [vmem:[#allocation8 + $0x80] sm:$0xf]
    %v2251 = vld [vmem:[#allocation8 + $0x84] sm:$0xf]
    %v2252 = vld [vmem:[#allocation8 + $0x88] sm:$0xf]
    %v2253 = vld [vmem:[#allocation8 + $0x8c] sm:$0xf]
    %v2254 = vld [vmem:[#allocation8 + $0x90] sm:$0xf]
    %v2255 = vld [vmem:[#allocation8 + $0x94] sm:$0xf]
    %v2256 = vld [vmem:[#allocation8 + $0x98] sm:$0xf]
    %v2257 = vld [vmem:[#allocation8 + $0x9c] sm:$0xf]
    %v2258 = vld [vmem:[#allocation8 + $0xa0] sm:$0xf]
    %v2259 = vld [vmem:[#allocation8 + $0xa4] sm:$0xf]
    %v2260 = vld [vmem:[#allocation8 + $0xa8] sm:$0xf]
    %v2261 = vld [vmem:[#allocation8 + $0xac] sm:$0xf]
    %v2262 = vld [vmem:[#allocation8 + $0xb0] sm:$0xf]
    %v2263 = vld [vmem:[#allocation8 + $0xb4] sm:$0xf]
    %v2264 = vld [vmem:[#allocation8 + $0xb8] sm:$0xf]
    %v2265 = vld [vmem:[#allocation8 + $0xbc] sm:$0xf]
    %v2266 = vld [vmem:[#allocation8 + $0xc0] sm:$0xf]
    %v2267 = vld [vmem:[#allocation8 + $0xc4] sm:$0xf]
    %v2268 = vld [vmem:[#allocation8 + $0xc8] sm:$0xf]
    %v2269 = vld [vmem:[#allocation8 + $0xcc] sm:$0xf]
    %v2270 = vld [vmem:[#allocation8 + $0xd0] sm:$0xf]
    %v2271 = vld [vmem:[#allocation8 + $0xd4] sm:$0xf]
    %v2272 = vld [vmem:[#allocation8 + $0xd8] sm:$0xf]
    %v2273 = vld [vmem:[#allocation8 + $0xdc] sm:$0xf]
    %v2274 = vld [vmem:[#allocation8 + $0xe0] sm:$0xf]
    %v2275 = vld [vmem:[#allocation8 + $0xe4] sm:$0xf]
    %v2276 = vld [vmem:[#allocation8 + $0xe8] sm:$0xf]
    %v2277 = vld [vmem:[#allocation8 + $0xec] sm:$0xf]
    %v2278 = vld [vmem:[#allocation8 + $0xf0] sm:$0xf]
    %v2279 = vld [vmem:[#allocation8 + $0xf4] sm:$0xf]
    %v2280 = vld [vmem:[#allocation8 + $0xf8] sm:$0xf]
    %v2281 = vld [vmem:[#allocation8 + $0xfc] sm:$0xf]
    %v2282 = vld [vmem:[#allocation10 + $0x3] sm:$0x1]
    %v2283 = vlaneseq
    %v2284 = vshrl.u32 %v2283, 7
    %v2285 = vsub.s32 0, %v2284
    %v2286 = vrot.slane %v2282, %v2285
    %v2351 = vunpack.c.l.b16 %v2218
    %v2352 = vunpack.c.l.b16 %v2219
    %v2353 = vunpack.c.l.b16 %v2220
    %v2354 = vunpack.c.l.b16 %v2221
    %v2355 = vunpack.c.l.b16 %v2222
    %v2356 = vunpack.c.l.b16 %v2223
    %v2357 = vunpack.c.l.b16 %v2224
    %v2358 = vunpack.c.l.b16 %v2225
    %v2359 = vunpack.c.l.b16 %v2226
    %v2360 = vunpack.c.l.b16 %v2227
    %v2361 = vunpack.c.l.b16 %v2228
    %v2362 = vunpack.c.l.b16 %v2229
    %v2363 = vunpack.c.l.b16 %v2230
    %v2364 = vunpack.c.l.b16 %v2231
    %v2365 = vunpack.c.l.b16 %v2232
    %v2366 = vunpack.c.l.b16 %v2233
    %v2367 = vunpack.c.l.b16 %v2234
    %v2368 = vunpack.c.l.b16 %v2235
    %v2369 = vunpack.c.l.b16 %v2236
    %v2370 = vunpack.c.l.b16 %v2237
    %v2371 = vunpack.c.l.b16 %v2238
    %v2372 = vunpack.c.l.b16 %v2239
    %v2373 = vunpack.c.l.b16 %v2240
    %v2374 = vunpack.c.l.b16 %v2241
    %v2375 = vunpack.c.l.b16 %v2242
    %v2376 = vunpack.c.l.b16 %v2243
    %v2377 = vunpack.c.l.b16 %v2244
    %v2378 = vunpack.c.l.b16 %v2245
    %v2379 = vunpack.c.l.b16 %v2246
    %v2380 = vunpack.c.l.b16 %v2247
    %v2381 = vunpack.c.l.b16 %v2248
    %v2382 = vunpack.c.l.b16 %v2249
    %v2383 = vunpack.c.l.b16 %v2250
    %v2384 = vunpack.c.l.b16 %v2251
    %v2385 = vunpack.c.l.b16 %v2252
    %v2386 = vunpack.c.l.b16 %v2253
    %v2387 = vunpack.c.l.b16 %v2254
    %v2388 = vunpack.c.l.b16 %v2255
    %v2389 = vunpack.c.l.b16 %v2256
    %v2390 = vunpack.c.l.b16 %v2257
    %v2391 = vunpack.c.l.b16 %v2258
    %v2392 = vunpack.c.l.b16 %v2259
    %v2393 = vunpack.c.l.b16 %v2260
    %v2394 = vunpack.c.l.b16 %v2261
    %v2395 = vunpack.c.l.b16 %v2262
    %v2396 = vunpack.c.l.b16 %v2263
    %v2397 = vunpack.c.l.b16 %v2264
    %v2398 = vunpack.c.l.b16 %v2265
    %v2399 = vunpack.c.l.b16 %v2266
    %v2400 = vunpack.c.l.b16 %v2267
    %v2401 = vunpack.c.l.b16 %v2268
    %v2402 = vunpack.c.l.b16 %v2269
    %v2403 = vunpack.c.l.b16 %v2270
    %v2404 = vunpack.c.l.b16 %v2271
    %v2405 = vunpack.c.l.b16 %v2272
    %v2406 = vunpack.c.l.b16 %v2273
    %v2407 = vunpack.c.l.b16 %v2274
    %v2408 = vunpack.c.l.b16 %v2275
    %v2409 = vunpack.c.l.b16 %v2276
    %v2410 = vunpack.c.l.b16 %v2277
    %v2411 = vunpack.c.l.b16 %v2278
    %v2412 = vunpack.c.l.b16 %v2279
    %v2413 = vunpack.c.l.b16 %v2280
    %v2414 = vunpack.c.l.b16 %v2281
    %v2415 = vpack.c.b16 %v2352, %v2351
    %v2416 = vpack.c.b16 %v2354, %v2353
    %v2417 = vpack.c.b16 %v2356, %v2355
    %v2418 = vpack.c.b16 %v2358, %v2357
    %v2419 = vpack.c.b16 %v2360, %v2359
    %v2420 = vpack.c.b16 %v2362, %v2361
    %v2421 = vpack.c.b16 %v2364, %v2363
    %v2422 = vpack.c.b16 %v2366, %v2365
    %v2423 = vpack.c.b16 %v2368, %v2367
    %v2424 = vpack.c.b16 %v2370, %v2369
    %v2425 = vpack.c.b16 %v2372, %v2371
    %v2426 = vpack.c.b16 %v2374, %v2373
    %v2427 = vpack.c.b16 %v2376, %v2375
    %v2428 = vpack.c.b16 %v2378, %v2377
    %v2429 = vpack.c.b16 %v2380, %v2379
    %v2430 = vpack.c.b16 %v2382, %v2381
    %v2431 = vpack.c.b16 %v2384, %v2383
    %v2432 = vpack.c.b16 %v2386, %v2385
    %v2433 = vpack.c.b16 %v2388, %v2387
    %v2434 = vpack.c.b16 %v2390, %v2389
    %v2435 = vpack.c.b16 %v2392, %v2391
    %v2436 = vpack.c.b16 %v2394, %v2393
    %v2437 = vpack.c.b16 %v2396, %v2395
    %v2438 = vpack.c.b16 %v2398, %v2397
    %v2439 = vpack.c.b16 %v2400, %v2399
    %v2440 = vpack.c.b16 %v2402, %v2401
    %v2441 = vpack.c.b16 %v2404, %v2403
    %v2442 = vpack.c.b16 %v2406, %v2405
    %v2443 = vpack.c.b16 %v2408, %v2407
    %v2444 = vpack.c.b16 %v2410, %v2409
    %v2445 = vpack.c.b16 %v2412, %v2411
    %v2446 = vpack.c.b16 %v2414, %v2413
    %2479 = vmatprep.subr.bf16.mxu0 0
    %2480 = vmatpush1.bf16.msra.mxu0 %v2422
    %2481 = vmatprep.subr.bf16.mxu0 0
    %2482 = vmatpush1.bf16.msra.mxu0 %v2421
    %2483 = vmatprep.subr.bf16.mxu0 0
    %2484 = vmatpush1.bf16.msra.mxu0 %v2420
    %2485 = vmatprep.subr.bf16.mxu0 0
    %2486 = vmatpush1.bf16.msra.mxu0 %v2419
    %2487 = vmatprep.subr.bf16.mxu0 0
    %2488 = vmatpush1.bf16.msra.mxu0 %v2418
    %2489 = vmatprep.subr.bf16.mxu0 0
    %2490 = vmatpush1.bf16.msra.mxu0 %v2417
    %2491 = vmatprep.subr.bf16.mxu0 0
    %2492 = vmatpush1.bf16.msra.mxu0 %v2416
    %2493 = vmatprep.subr.bf16.mxu0 0
    %2494 = vmatpush1.bf16.msra.mxu0 %v2415
    %2495 = vmatprep.subr.bf16.mxu0 0
    %2496 = vmatpush2.bf16.msra.mxu0 %v2430
    %2497 = vmatprep.subr.bf16.mxu0 0
    %2498 = vmatpush2.bf16.msra.mxu0 %v2429
    %2499 = vmatprep.subr.bf16.mxu0 0
    %2500 = vmatpush2.bf16.msra.mxu0 %v2428
    %2501 = vmatprep.subr.bf16.mxu0 0
    %2502 = vmatpush2.bf16.msra.mxu0 %v2427
    %2503 = vmatprep.subr.bf16.mxu0 0
    %2504 = vmatpush2.bf16.msra.mxu0 %v2426
    %2505 = vmatprep.subr.bf16.mxu0 0
    %2506 = vmatpush2.bf16.msra.mxu0 %v2425
    %2507 = vmatprep.subr.bf16.mxu0 0
    %2508 = vmatpush2.bf16.msra.mxu0 %v2424
    %2509 = vmatprep.subr.bf16.mxu0 0
    %2510 = vmatpush2.bf16.msra.mxu0 %v2423
    %2511 = vmatprep.mubr.bf16.mxu0 %v2215
    %2512 = vmatmul.mubr.bf16.gmra.mxu0 %v2214
    %v2513 = vpop.f32.mrf.mxu0
    %v2514 = vadd.f32 %v2286, %v2513
    %v2515 = vpop.f32.mrf.mxu0
    %v2516 = vpop.f32.mrf.mxu0
    %v2517 = vadd.f32 %v2286, %v2516
    %v2518 = vpop.f32.mrf.mxu0
    %2519 = vdwg.mxu0
    %2520 = vmatprep.subr.bf16.mxu0 0
    %2521 = vmatpush1.bf16.msra.mxu0 %v2438
    %2522 = vmatprep.subr.bf16.mxu0 0
    %2523 = vmatpush1.bf16.msra.mxu0 %v2437
    %2524 = vmatprep.subr.bf16.mxu0 0
    %2525 = vmatpush1.bf16.msra.mxu0 %v2436
    %2526 = vmatprep.subr.bf16.mxu0 0
    %2527 = vmatpush1.bf16.msra.mxu0 %v2435
    %2528 = vmatprep.subr.bf16.mxu0 0
    %2529 = vmatpush1.bf16.msra.mxu0 %v2434
    %2530 = vmatprep.subr.bf16.mxu0 0
    %2531 = vmatpush1.bf16.msra.mxu0 %v2433
    %2532 = vmatprep.subr.bf16.mxu0 0
    %2533 = vmatpush1.bf16.msra.mxu0 %v2432
    %2534 = vmatprep.subr.bf16.mxu0 0
    %2535 = vmatpush1.bf16.msra.mxu0 %v2431
    %2536 = vmatprep.subr.bf16.mxu0 0
    %2537 = vmatpush2.bf16.msra.mxu0 %v2446
    %2538 = vmatprep.subr.bf16.mxu0 0
    %2539 = vmatpush2.bf16.msra.mxu0 %v2445
    %2540 = vmatprep.subr.bf16.mxu0 0
    %2541 = vmatpush2.bf16.msra.mxu0 %v2444
    %2542 = vmatprep.subr.bf16.mxu0 0
    %2543 = vmatpush2.bf16.msra.mxu0 %v2443
    %2544 = vmatprep.subr.bf16.mxu0 0
    %2545 = vmatpush2.bf16.msra.mxu0 %v2442
    %2546 = vmatprep.subr.bf16.mxu0 0
    %2547 = vmatpush2.bf16.msra.mxu0 %v2441
    %2548 = vmatprep.subr.bf16.mxu0 0
    %2549 = vmatpush2.bf16.msra.mxu0 %v2440
    %2550 = vmatprep.subr.bf16.mxu0 0
    %2551 = vmatpush2.bf16.msra.mxu0 %v2439
    %2552 = vmatprep.mubr.bf16.mxu0 %v2217
    %2553 = vmatmul.mubr.bf16.gmra.mxu0 %v2216
    %v2554 = vpop.f32.mrf.mxu0
    %v2555 = vadd.f32 %v2514, %v2554
    %v2556 = vpop.f32.mrf.mxu0
    %v2557 = vpop.f32.mrf.mxu0
    %v2558 = vadd.f32 %v2517, %v2557
    %v2559 = vpop.f32.mrf.mxu0
    %2560 = vdwg.mxu0
    %v2561 = vmul.f32 %v2555, 0.5
    %v2562 = vmul.f32 %v2558, 0.5
    %v2563 = vtanh.pop %v2561
    %v2564 = vtanh.pop %v2562
    %v2565 = vadd.f32 %v2563, 1.0
    %v2566 = vadd.f32 %v2564, 1.0
    %v2567 = vmul.f32 %v2565, 0.5
    %v2568 = vmul.f32 %v2566, 0.5
    %v2569 = vpack.c.bf16 %v2568, %v2567
    %v2571 = vunpack.c.l.b16 %v2569
    %v2572 = vunpack.c.h.b16 %v2569
    %v2573 = vpack.c.b16 %v2571, %v2571
    %v2574 = vpack.c.b16 %v2572, %v2572
    %2577 = vst [vmem:[#allocation11] sm:$0xf] %v2573
    %2578 = vst [vmem:[#allocation11 + $0x4] sm:$0xf] %v2574
    // Predicated region
    $region42: #{tpu_custom_call.1} parent=1 // pred_check
      _
    $region43: #{tpu_custom_call.1} parent=1 // pred_check_branch
      %2580 = sbr.rel (0) target = $region45
    $region44: #{tpu_custom_call.1} parent=1 // pred_region
      %s2582 = ssub.s32 128, 128
      %2583 = vsyncadd [#allocation4], %s2582
      %s2584 = sshll.u32 [#allocation11], 4
      %s2585 = int_to_ptr.vmem [resolvable:$true] %s2584
      %2590 = dma.vmem_to_hbm [thread:$0]  %s2585, 128, %s5, [#allocation4], 64, 64, 4
    $region45: #{tpu_custom_call.1} parent=1 // pred_fallthru
      _
    // Predicated region
    $region46: #{tpu_custom_call.1} parent=1 // pred_check
      _
    $region47: #{tpu_custom_call.1} parent=1 // pred_check_branch
      %2592 = sbr.rel (0) target = $region49
    $region48: #{tpu_custom_call.1} parent=1 // pred_region
      %2593 = dma.done [#allocation4], 128
    $region49: #{tpu_custom_call.1} parent=1 // pred_fallthru
      _
    %2594 = vsyncpa [#allocation3], 1
    %2595 = vsyncpa [#allocation6], 1
    %2596 = vsyncpa [#allocation9], 1
    %2597 = vsyncpa [#allocation4], 1

// kernel: tpu_custom_call.1
$region0: #{tpu_custom_call.1}
  #allocation0 [shape = 'u32[]', space=smem, size = 0x4, offset = 0x4, fixed_abs, tag = 'smem constant byte address 0x4 - core index']
  #allocation1 [shape = 'u32[144,128]{1,0:T(1,128)}', space=vmem, size = 0x12000, scoped, tag = 'internal scratch']
  %s0 = inlined_call_operand.hbm [shape: bf16[16,32], index: 0, kind: input, shape index: {}]
  %s1 = inlined_call_operand.hbm [shape: bf16[32,512], index: 1, kind: input, shape index: {}]
  %s2 = inlined_call_operand.hbm [shape: bf16[2,512,512], index: 2, kind: input, shape index: {}]
  %s3 = inlined_call_operand.hbm [shape: bf16[512,128], index: 3, kind: input, shape index: {}]
  %s4 = inlined_call_operand.hbm [shape: f32[4,512], index: 4, kind: input, shape index: {}]
  %s5 = inlined_call_operand.hbm [shape: bf16[16,128], index: 5, kind: output, shape index: {}]
  %s6 = sld [smem:[#allocation0]]
  $region50: #{tpu_custom_call.1} parent=0
    _
  %s8 = ssub.s32 1, %s6
  %s9 = scalar_select 0, %s8, %s6
  $region1: #{tpu_custom_call.1} parent=0
    #allocation2 [shape = 'u8[4096]{0}', space=vmem, size = 0x1000, scoped, tag = 'input window, operand 0, single buffered']
    #allocation3 [shape = 's32[1]{0}', space=sflag, size = 0x4, scoped, tag = 'scoped memory for tpu_custom_call.1']
    #allocation4 [shape = 's32[1]{0}', space=sflag, size = 0x4, scoped, tag = 'scoped memory for tpu_custom_call.1']
    #allocation5 [shape = 'u8[32768]{0}', space=vmem, size = 0x8000, scoped, tag = 'input window, operand 1, single buffered']
    #allocation6 [shape = 's32[1]{0}', space=sflag, size = 0x4, scoped, tag = 'scoped memory for tpu_custom_call.1']
    #allocation7 [shape = 'u8[1048576]{0}', space=vmem, size = 0x100000, scoped, tag = 'input window, operand 2, single buffered']
    #allocation8 [shape = 'u8[131072]{0}', space=vmem, size = 0x20000, scoped, tag = 'input window, operand 3, single buffered']
    #allocation9 [shape = 's32[1]{0}', space=sflag, size = 0x4, scoped, tag = 'scoped memory for tpu_custom_call.1']
    #allocation10 [shape = 'u8[8192]{0}', space=vmem, size = 0x2000, scoped, tag = 'input window, operand 4, single buffered']
    #allocation11 [shape = 'u8[4096]{0}', space=vmem, size = 0x1000, scoped, tag = 'output window, operand 0, single buffered']
    %10 = vsyncpa [#allocation3], 0
    %11 = vsyncpa [#allocation6], 0
    %12 = vsyncpa [#allocation9], 0
    %13 = vsyncpa [#allocation4], 0
    // Predicated region
    $region2: #{tpu_custom_call.1} parent=1 // pred_check
      _
    $region3: #{tpu_custom_call.1} parent=1 // pred_check_branch
      %15 = sbr.rel (0) target = $region5
    $region4: #{tpu_custom_call.1} parent=1 // pred_region
      %s17 = ssub.s32 128, 128
      %18 = vsyncadd [#allocation3], %s17
      %s19 = sshll.u32 [#allocation2], 4
      %s20 = int_to_ptr.vmem [resolvable:$true] %s19
      %25 = dma.hbm_to_vmem [thread:$0]  %s0, 128, %s20, [#allocation3], 64, 64, 4
    $region5: #{tpu_custom_call.1} parent=1 // pred_fallthru
      _
    // Predicated region
    $region6: #{tpu_custom_call.1} parent=1 // pred_check
      _
    $region7: #{tpu_custom_call.1} parent=1 // pred_check_branch
      %27 = sbr.rel (0) target = $region9
    $region8: #{tpu_custom_call.1} parent=1 // pred_region
      %s29 = ssub.s32 1024, 1024
      %30 = vsyncadd [#allocation6], %s29
      %s31 = sshll.u32 [#allocation5], 4
      %s32 = int_to_ptr.vmem [resolvable:$true] %s31
      %37 = dma.hbm_to_vmem [thread:$0]  %s1, 1024, %s32, [#allocation6], 256, 256, 16
    $region9: #{tpu_custom_call.1} parent=1 // pred_fallthru
      _
    // Predicated region
    $region10: #{tpu_custom_call.1} parent=1 // pred_check
      _
    $region11: #{tpu_custom_call.1} parent=1 // pred_check_branch
      %39 = sbr.rel (0) target = $region13
    $region12: #{tpu_custom_call.1} parent=1 // pred_region
      %s41 = ssub.s32 32768, 32768
      %42 = vsyncadd [#allocation6], %s41
      %s43 = sshll.u32 [#allocation7], 4
      %s44 = int_to_ptr.vmem [resolvable:$true] %s43
      %49 = dma.hbm_to_vmem [thread:$0]  %s2, 32768, %s44, [#allocation6], 256, 256, 16
    $region13: #{tpu_custom_call.1} parent=1 // pred_fallthru
      _
    // Predicated region
    $region14: #{tpu_custom_call.1} parent=1 // pred_check
      _
    $region15: #{tpu_custom_call.1} parent=1 // pred_check_branch
      %51 = sbr.rel (0) target = $region17
    $region16: #{tpu_custom_call.1} parent=1 // pred_region
      %s53 = ssub.s32 4096, 4096
      %54 = vsyncadd [#allocation9], %s53
      %s55 = sshll.u32 [#allocation8], 4
      %s56 = int_to_ptr.vmem [resolvable:$true] %s55
      %61 = dma.hbm_to_vmem [thread:$0]  %s3, 4096, %s56, [#allocation9], 64, 64, 4
    $region17: #{tpu_custom_call.1} parent=1 // pred_fallthru
      _
    // Predicated region
    $region18: #{tpu_custom_call.1} parent=1 // pred_check
      _
    $region19: #{tpu_custom_call.1} parent=1 // pred_check_branch
      %63 = sbr.rel (0) target = $region21
    $region20: #{tpu_custom_call.1} parent=1 // pred_region
      %s65 = ssub.s32 256, 256
      %66 = vsyncadd [#allocation9], %s65
      %s68 = sshll.u32 [#allocation10], 4
      %s69 = int_to_ptr.vmem [resolvable:$true] %s68
      %71 = dma.hbm_to_vmem [thread:$0]  %s4, 256, %s69, [#allocation9]
    $region21: #{tpu_custom_call.1} parent=1 // pred_fallthru
      _
    // Predicated region
    $region22: #{tpu_custom_call.1} parent=1 // pred_check
      _
    $region23: #{tpu_custom_call.1} parent=1 // pred_check_branch
      %73 = sbr.rel (0) target = $region25
    $region24: #{tpu_custom_call.1} parent=1 // pred_region
      %74 = dma.done [#allocation3], 128
    $region25: #{tpu_custom_call.1} parent=1 // pred_fallthru
      _
    // Predicated region
    $region26: #{tpu_custom_call.1} parent=1 // pred_check
      _
    $region27: #{tpu_custom_call.1} parent=1 // pred_check_branch
      %76 = sbr.rel (0) target = $region29
    $region28: #{tpu_custom_call.1} parent=1 // pred_region
      %77 = dma.done [#allocation6], 1024
    $region29: #{tpu_custom_call.1} parent=1 // pred_fallthru
      _
    // Predicated region
    $region30: #{tpu_custom_call.1} parent=1 // pred_check
      _
    $region31: #{tpu_custom_call.1} parent=1 // pred_check_branch
      %79 = sbr.rel (0) target = $region33
    $region32: #{tpu_custom_call.1} parent=1 // pred_region
      %80 = dma.done [#allocation6], 32768
    $region33: #{tpu_custom_call.1} parent=1 // pred_fallthru
      _
    // Predicated region
    $region34: #{tpu_custom_call.1} parent=1 // pred_check
      _
    $region35: #{tpu_custom_call.1} parent=1 // pred_check_branch
      %82 = sbr.rel (0) target = $region37
    $region36: #{tpu_custom_call.1} parent=1 // pred_region
      %83 = dma.done [#allocation9], 4096
    $region37: #{tpu_custom_call.1} parent=1 // pred_fallthru
      _
    // Predicated region
    $region38: #{tpu_custom_call.1} parent=1 // pred_check
      _
    $region39: #{tpu_custom_call.1} parent=1 // pred_check_branch
      %85 = sbr.rel (0) target = $region41
    $region40: #{tpu_custom_call.1} parent=1 // pred_region
      %86 = dma.done [#allocation9], 256
    $region41: #{tpu_custom_call.1} parent=1 // pred_fallthru
      _
    %v88 = vld [vmem:[#allocation2] sm:$0xf]
    %v89 = vld [vmem:[#allocation2 + $0x4] sm:$0xf]
    %v90 = vld [vmem:[#allocation5] sm:$0xff]
    %v91 = vld [vmem:[#allocation5 + $0x8] sm:$0xff]
    %v92 = vld [vmem:[#allocation5 + $0x10] sm:$0xff]
    %v93 = vld [vmem:[#allocation5 + $0x18] sm:$0xff]
    %v94 = vld [vmem:[#allocation5 + $0x20] sm:$0xff]
    %v95 = vld [vmem:[#allocation5 + $0x28] sm:$0xff]
    %v96 = vld [vmem:[#allocation5 + $0x30] sm:$0xff]
    %v97 = vld [vmem:[#allocation5 + $0x38] sm:$0xff]
    %v98 = vld [vmem:[#allocation10] ss:$4 sm:$0xf]
    %v100 = vlaneseq
    %v101 = vshrl.u32 %v100, 7
    %v102 = vsub.s32 0, %v101
    %v103 = vrot.slane %v98, %v102
    %v104 = vlaneseq
    %v105 = vshrl.u32 %v104, 7
    %v106 = vsub.s32 1, %v105
    %v107 = vrot.slane %v98, %v106
    %v108 = vlaneseq
    %v109 = vshrl.u32 %v108, 7
    %v110 = vsub.s32 2, %v109
    %v111 = vrot.slane %v98, %v110
    %v112 = vlaneseq
    %v113 = vshrl.u32 %v112, 7
    %v114 = vsub.s32 3, %v113
    %v115 = vrot.slane %v98, %v114
    %v122 = vunpack.c.l.b16 %v88
    %v123 = vunpack.c.l.b16 %v89
    %v124 = vpack.c.b16 %v123, %v122
    %v133 = vunpack.c.l.b16 %v90
    %v134 = vunpack.c.h.b16 %v90
    %v135 = vunpack.c.l.b16 %v91
    %v136 = vunpack.c.h.b16 %v91
    %v137 = vunpack.c.l.b16 %v92
    %v138 = vunpack.c.h.b16 %v92
    %v139 = vunpack.c.l.b16 %v93
    %v140 = vunpack.c.h.b16 %v93
    %v141 = vunpack.c.l.b16 %v94
    %v142 = vunpack.c.h.b16 %v94
    %v143 = vunpack.c.l.b16 %v95
    %v144 = vunpack.c.h.b16 %v95
    %v145 = vunpack.c.l.b16 %v96
    %v146 = vunpack.c.h.b16 %v96
    %v147 = vunpack.c.l.b16 %v97
    %v148 = vunpack.c.h.b16 %v97
    %v149 = vpack.c.b16 %v137, %v133
    %v150 = vpack.c.b16 %v138, %v134
    %v151 = vpack.c.b16 %v139, %v135
    %v152 = vpack.c.b16 %v140, %v136
    %v153 = vpack.c.b16 %v145, %v141
    %v154 = vpack.c.b16 %v146, %v142
    %v155 = vpack.c.b16 %v147, %v143
    %v156 = vpack.c.b16 %v148, %v144
    %vm165 = vcmask 261120
    %v167 = vsel %vm165, %v124, 0
    %169 = vmatprep.subr.bf16.mxu0 0
    %170 = vmatpush1.bf16.msra.mxu0 0
    %171 = vmatprep.subr.bf16.mxu0 0
    %172 = vmatpush1.bf16.msra.mxu0 0
    %173 = vmatprep.subr.bf16.mxu0 0
    %174 = vmatpush1.bf16.msra.mxu0 0
    %175 = vmatprep.subr.bf16.mxu0 0
    %176 = vmatpush1.bf16.msra.mxu0 0
    %177 = vmatprep.subr.bf16.mxu0 0
    %178 = vmatpush1.bf16.msra.mxu0 0
    %179 = vmatprep.subr.bf16.mxu0 0
    %180 = vmatpush1.bf16.msra.mxu0 0
    %181 = vmatprep.subr.bf16.mxu0 %v154
    %182 = vmatpush1.bf16.msra.mxu0 %v153
    %183 = vmatprep.subr.bf16.mxu0 %v150
    %184 = vmatpush1.bf16.msra.mxu0 %v149
    %185 = vmatprep.subr.bf16.mxu0 0
    %186 = vmatpush2.bf16.msra.mxu0 0
    %187 = vmatprep.subr.bf16.mxu0 0
    %188 = vmatpush2.bf16.msra.mxu0 0
    %189 = vmatprep.subr.bf16.mxu0 0
    %190 = vmatpush2.bf16.msra.mxu0 0
    %191 = vmatprep.subr.bf16.mxu0 0
    %192 = vmatpush2.bf16.msra.mxu0 0
    %193 = vmatprep.subr.bf16.mxu0 0
    %194 = vmatpush2.bf16.msra.mxu0 0
    %195 = vmatprep.subr.bf16.mxu0 0
    %196 = vmatpush2.bf16.msra.mxu0 0
    %197 = vmatprep.subr.bf16.mxu0 0
    %198 = vmatpush2.bf16.msra.mxu0 0
    %199 = vmatprep.subr.bf16.mxu0 0
    %200 = vmatpush2.bf16.msra.mxu0 0
    %201 = vmatprep.mubr.bf16.mxu0 0
    %202 = vmatmul.mubr.bf16.gmra.mxu0 %v167
    %v203 = vpop.f32.mrf.mxu0
    %v204 = vadd.f32 %v103, %v203
    %v205 = vpop.f32.mrf.mxu0
    %v206 = vadd.f32 %v107, %v205
    %v207 = vpop.f32.mrf.mxu0
    %v208 = vadd.f32 %v103, %v207
    %v209 = vpop.f32.mrf.mxu0
    %v210 = vadd.f32 %v107, %v209
    %211 = vdwg.mxu0
    %212 = vmatprep.subr.bf16.mxu0 0
    %213 = vmatpush1.bf16.msra.mxu0 0
    %214 = vmatprep.subr.bf16.mxu0 0
    %215 = vmatpush1.bf16.msra.mxu0 0
    %216 = vmatprep.subr.bf16.mxu0 0
    %217 = vmatpush1.bf16.msra.mxu0 0
    %218 = vmatprep.subr.bf16.mxu0 0
    %219 = vmatpush1.bf16.msra.mxu0 0
    %220 = vmatprep.subr.bf16.mxu0 0
    %221 = vmatpush1.bf16.msra.mxu0 0
    %222 = vmatprep.subr.bf16.mxu0 0
    %223 = vmatpush1.bf16.msra.mxu0 0
    %224 = vmatprep.subr.bf16.mxu0 %v156
    %225 = vmatpush1.bf16.msra.mxu0 %v155
    %226 = vmatprep.subr.bf16.mxu0 %v152
    %227 = vmatpush1.bf16.msra.mxu0 %v151
    %228 = vmatprep.subr.bf16.mxu0 0
    %229 = vmatpush2.bf16.msra.mxu0 0
    %230 = vmatprep.subr.bf16.mxu0 0
    %231 = vmatpush2.bf16.msra.mxu0 0
    %232 = vmatprep.subr.bf16.mxu0 0
    %233 = vmatpush2.bf16.msra.mxu0 0
    %234 = vmatprep.subr.bf16.mxu0 0
    %235 = vmatpush2.bf16.msra.mxu0 0
    %236 = vmatprep.subr.bf16.mxu0 0
    %237 = vmatpush2.bf16.msra.mxu0 0
    %238 = vmatprep.subr.bf16.mxu0 0
    %239 = vmatpush2.bf16.msra.mxu0 0
    %240 = vmatprep.subr.bf16.mxu0 0
    %241 = vmatpush2.bf16.msra.mxu0 0
    %242 = vmatprep.subr.bf16.mxu0 0
    %243 = vmatpush2.bf16.msra.mxu0 0
    %244 = vmatprep.mubr.bf16.mxu0 0
    %245 = vmatmul.mubr.bf16.gmra.mxu0 %v167
    %v246 = vpop.f32.mrf.mxu0
    %v247 = vadd.f32 %v111, %v246
    %v248 = vpop.f32.mrf.mxu0
    %v249 = vadd.f32 %v115, %v248
    %v250 = vpop.f32.mrf.mxu0
    %v251 = vadd.f32 %v111, %v250
    %v252 = vpop.f32.mrf.mxu0
    %v253 = vadd.f32 %v115, %v252
    %254 = vdwg.mxu0
    %v255 = vmax.f32 %v204, 0.0
    %v256 = vmax.f32 %v206, 0.0
    %v257 = vmax.f32 %v247, 0.0
    %v258 = vmax.f32 %v249, 0.0
    %v259 = vmax.f32 %v208, 0.0
    %v260 = vmax.f32 %v210, 0.0
    %v261 = vmax.f32 %v251, 0.0
    %v262 = vmax.f32 %v253, 0.0
    %v263 = vpack.c.bf16 %v259, %v255
    %v264 = vpack.c.bf16 %v260, %v256
    %v265 = vpack.c.bf16 %v261, %v257
    %v266 = vpack.c.bf16 %v262, %v258
    %v267 = vld [vmem:[#allocation7] sm:$0xff]
    %v268 = vld [vmem:[#allocation7 + $0x8] sm:$0xff]
    %v269 = vld [vmem:[#allocation7 + $0x10] sm:$0xff]
    %v270 = vld [vmem:[#allocation7 + $0x18] sm:$0xff]
    %v271 = vld [vmem:[#allocation7 + $0x20] sm:$0xff]
    %v272 = vld [vmem:[#allocation7 + $0x28] sm:$0xff]
    %v273 = vld [vmem:[#allocation7 + $0x30] sm:$0xff]
    %v274 = vld [vmem:[#allocation7 + $0x38] sm:$0xff]
    %v275 = vld [vmem:[#allocation7 + $0x40] sm:$0xff]
    %v276 = vld [vmem:[#allocation7 + $0x48] sm:$0xff]
    %v277 = vld [vmem:[#allocation7 + $0x50] sm:$0xff]
    %v278 = vld [vmem:[#allocation7 + $0x58] sm:$0xff]
    %v279 = vld [vmem:[#allocation7 + $0x60] sm:$0xff]
    %v280 = vld [vmem:[#allocation7 + $0x68] sm:$0xff]
    %v281 = vld [vmem:[#allocation7 + $0x70] sm:$0xff]
    %v282 = vld [vmem:[#allocation7 + $0x78] sm:$0xff]
    %v283 = vld [vmem:[#allocation7 + $0x80] sm:$0xff]
    %v284 = vld [vmem:[#allocation7 + $0x88] sm:$0xff]
    %v285 = vld [vmem:[#allocation7 + $0x90] sm:$0xff]
    %v286 = vld [vmem:[#allocation7 + $0x98] sm:$0xff]
    %v287 = vld [vmem:[#allocation7 + $0xa0] sm:$0xff]
    %v288 = vld [vmem:[#allocation7 + $0xa8] sm:$0xff]
    %v289 = vld [vmem:[#allocation7 + $0xb0] sm:$0xff]
    %v290 = vld [vmem:[#allocation7 + $0xb8] sm:$0xff]
    %v291 = vld [vmem:[#allocation7 + $0xc0] sm:$0xff]
    %v292 = vld [vmem:[#allocation7 + $0xc8] sm:$0xff]
    %v293 = vld [vmem:[#allocation7 + $0xd0] sm:$0xff]
    %v294 = vld [vmem:[#allocation7 + $0xd8] sm:$0xff]
    %v295 = vld [vmem:[#allocation7 + $0xe0] sm:$0xff]
    %v296 = vld [vmem:[#allocation7 + $0xe8] sm:$0xff]
    %v297 = vld [vmem:[#allocation7 + $0xf0] sm:$0xff]
    %v298 = vld [vmem:[#allocation7 + $0xf8] sm:$0xff]
    %v299 = vld [vmem:[#allocation7 + $0x100] sm:$0xff]
    %v300 = vld [vmem:[#allocation7 + $0x108] sm:$0xff]
    %v301 = vld [vmem:[#allocation7 + $0x110] sm:$0xff]
    %v302 = vld [vmem:[#allocation7 + $0x118] sm:$0xff]
    %v303 = vld [vmem:[#allocation7 + $0x120] sm:$0xff]
    %v304 = vld [vmem:[#allocation7 + $0x128] sm:$0xff]
    %v305 = vld [vmem:[#allocation7 + $0x130] sm:$0xff]
    %v306 = vld [vmem:[#allocation7 + $0x138] sm:$0xff]
    %v307 = vld [vmem:[#allocation7 + $0x140] sm:$0xff]
    %v308 = vld [vmem:[#allocation7 + $0x148] sm:$0xff]
    %v309 = vld [vmem:[#allocation7 + $0x150] sm:$0xff]
    %v310 = vld [vmem:[#allocation7 + $0x158] sm:$0xff]
    %v311 = vld [vmem:[#allocation7 + $0x160] sm:$0xff]
    %v312 = vld [vmem:[#allocation7 + $0x168] sm:$0xff]
    %v313 = vld [vmem:[#allocation7 + $0x170] sm:$0xff]
    %v314 = vld [vmem:[#allocation7 + $0x178] sm:$0xff]
    %v315 = vld [vmem:[#allocation7 + $0x180] sm:$0xff]
    %v316 = vld [vmem:[#allocation7 + $0x188] sm:$0xff]
    %v317 = vld [vmem:[#allocation7 + $0x190] sm:$0xff]
    %v318 = vld [vmem:[#allocation7 + $0x198] sm:$0xff]
    %v319 = vld [vmem:[#allocation7 + $0x1a0] sm:$0xff]
    %v320 = vld [vmem:[#allocation7 + $0x1a8] sm:$0xff]
    %v321 = vld [vmem:[#allocation7 + $0x1b0] sm:$0xff]
    %v322 = vld [vmem:[#allocation7 + $0x1b8] sm:$0xff]
    %v323 = vld [vmem:[#allocation7 + $0x1c0] sm:$0xff]
    %v324 = vld [vmem:[#allocation7 + $0x1c8] sm:$0xff]
    %v325 = vld [vmem:[#allocation7 + $0x1d0] sm:$0xff]
    %v326 = vld [vmem:[#allocation7 + $0x1d8] sm:$0xff]
    %v327 = vld [vmem:[#allocation7 + $0x1e0] sm:$0xff]
    %v328 = vld [vmem:[#allocation7 + $0x1e8] sm:$0xff]
    %v329 = vld [vmem:[#allocation7 + $0x1f0] sm:$0xff]
    %v330 = vld [vmem:[#allocation7 + $0x1f8] sm:$0xff]
    %v331 = vld [vmem:[#allocation7 + $0x200] sm:$0xff]
    %v332 = vld [vmem:[#allocation7 + $0x208] sm:$0xff]
    %v333 = vld [vmem:[#allocation7 + $0x210] sm:$0xff]
    %v334 = vld [vmem:[#allocation7 + $0x218] sm:$0xff]
    %v335 = vld [vmem:[#allocation7 + $0x220] sm:$0xff]
    %v336 = vld [vmem:[#allocation7 + $0x228] sm:$0xff]
    %v337 = vld [vmem:[#allocation7 + $0x230] sm:$0xff]
    %v338 = vld [vmem:[#allocation7 + $0x238] sm:$0xff]
    %v339 = vld [vmem:[#allocation7 + $0x240] sm:$0xff]
    %v340 = vld [vmem:[#allocation7 + $0x248] sm:$0xff]
    %v341 = vld [vmem:[#allocation7 + $0x250] sm:$0xff]
    %v342 = vld [vmem:[#allocation7 + $0x258] sm:$0xff]
    %v343 = vld [vmem:[#allocation7 + $0x260] sm:$0xff]
    %v344 = vld [vmem:[#allocation7 + $0x268] sm:$0xff]
    %v345 = vld [vmem:[#allocation7 + $0x270] sm:$0xff]
    %v346 = vld [vmem:[#allocation7 + $0x278] sm:$0xff]
    %v347 = vld [vmem:[#allocation7 + $0x280] sm:$0xff]
    %v348 = vld [vmem:[#allocation7 + $0x288] sm:$0xff]
    %v349 = vld [vmem:[#allocation7 + $0x290] sm:$0xff]
    %v350 = vld [vmem:[#allocation7 + $0x298] sm:$0xff]
    %v351 = vld [vmem:[#allocation7 + $0x2a0] sm:$0xff]
    %v352 = vld [vmem:[#allocation7 + $0x2a8] sm:$0xff]
    %v353 = vld [vmem:[#allocation7 + $0x2b0] sm:$0xff]
    %v354 = vld [vmem:[#allocation7 + $0x2b8] sm:$0xff]
    %v355 = vld [vmem:[#allocation7 + $0x2c0] sm:$0xff]
    %v356 = vld [vmem:[#allocation7 + $0x2c8] sm:$0xff]
    %v357 = vld [vmem:[#allocation7 + $0x2d0] sm:$0xff]
    %v358 = vld [vmem:[#allocation7 + $0x2d8] sm:$0xff]
    %v359 = vld [vmem:[#allocation7 + $0x2e0] sm:$0xff]
    %v360 = vld [vmem:[#allocation7 + $0x2e8] sm:$0xff]
    %v361 = vld [vmem:[#allocation7 + $0x2f0] sm:$0xff]
    %v362 = vld [vmem:[#allocation7 + $0x2f8] sm:$0xff]
    %v363 = vld [vmem:[#allocation7 + $0x300] sm:$0xff]
    %v364 = vld [vmem:[#allocation7 + $0x308] sm:$0xff]
    %v365 = vld [vmem:[#allocation7 + $0x310] sm:$0xff]
    %v366 = vld [vmem:[#allocation7 + $0x318] sm:$0xff]
    %v367 = vld [vmem:[#allocation7 + $0x320] sm:$0xff]
    %v368 = vld [vmem:[#allocation7 + $0x328] sm:$0xff]
    %v369 = vld [vmem:[#allocation7 + $0x330] sm:$0xff]
    %v370 = vld [vmem:[#allocation7 + $0x338] sm:$0xff]
    %v371 = vld [vmem:[#allocation7 + $0x340] sm:$0xff]
    %v372 = vld [vmem:[#allocation7 + $0x348] sm:$0xff]
    %v373 = vld [vmem:[#allocation7 + $0x350] sm:$0xff]
    %v374 = vld [vmem:[#allocation7 + $0x358] sm:$0xff]
    %v375 = vld [vmem:[#allocation7 + $0x360] sm:$0xff]
    %v376 = vld [vmem:[#allocation7 + $0x368] sm:$0xff]
    %v377 = vld [vmem:[#allocation7 + $0x370] sm:$0xff]
    %v378 = vld [vmem:[#allocation7 + $0x378] sm:$0xff]
    %v379 = vld [vmem:[#allocation7 + $0x380] sm:$0xff]
    %v380 = vld [vmem:[#allocation7 + $0x388] sm:$0xff]
    %v381 = vld [vmem:[#allocation7 + $0x390] sm:$0xff]
    %v382 = vld [vmem:[#allocation7 + $0x398] sm:$0xff]
    %v383 = vld [vmem:[#allocation7 + $0x3a0] sm:$0xff]
    %v384 = vld [vmem:[#allocation7 + $0x3a8] sm:$0xff]
    %v385 = vld [vmem:[#allocation7 + $0x3b0] sm:$0xff]
    %v386 = vld [vmem:[#allocation7 + $0x3b8] sm:$0xff]
    %v387 = vld [vmem:[#allocation7 + $0x3c0] sm:$0xff]
    %v388 = vld [vmem:[#allocation7 + $0x3c8] sm:$0xff]
    %v389 = vld [vmem:[#allocation7 + $0x3d0] sm:$0xff]
    %v390 = vld [vmem:[#allocation7 + $0x3d8] sm:$0xff]
    %v391 = vld [vmem:[#allocation7 + $0x3e0] sm:$0xff]
    %v392 = vld [vmem:[#allocation7 + $0x3e8] sm:$0xff]
    %v393 = vld [vmem:[#allocation7 + $0x3f0] sm:$0xff]
    %v394 = vld [vmem:[#allocation7 + $0x3f8] sm:$0xff]
    %s395 = scalar_lea.vmem [#allocation10], 1
    %v396 = vld [vmem:[%s395] ss:$4 sm:$0xf]
    %v398 = vlaneseq
    %v399 = vshrl.u32 %v398, 7
    %v400 = vsub.s32 0, %v399
    %v401 = vrot.slane %v396, %v400
    %v402 = vlaneseq
    %v403 = vshrl.u32 %v402, 7
    %v404 = vsub.s32 1, %v403
    %v405 = vrot.slane %v396, %v404
    %v406 = vlaneseq
    %v407 = vshrl.u32 %v406, 7
    %v408 = vsub.s32 2, %v407
    %v409 = vrot.slane %v396, %v408
    %v410 = vlaneseq
    %v411 = vshrl.u32 %v410, 7
    %v412 = vsub.s32 3, %v411
    %v413 = vrot.slane %v396, %v412
    %v546 = vunpack.c.l.b16 %v267
    %v547 = vunpack.c.h.b16 %v267
    %v548 = vunpack.c.l.b16 %v268
    %v549 = vunpack.c.h.b16 %v268
    %v550 = vunpack.c.l.b16 %v269
    %v551 = vunpack.c.h.b16 %v269
    %v552 = vunpack.c.l.b16 %v270
    %v553 = vunpack.c.h.b16 %v270
    %v554 = vunpack.c.l.b16 %v271
    %v555 = vunpack.c.h.b16 %v271
    %v556 = vunpack.c.l.b16 %v272
    %v557 = vunpack.c.h.b16 %v272
    %v558 = vunpack.c.l.b16 %v273
    %v559 = vunpack.c.h.b16 %v273
    %v560 = vunpack.c.l.b16 %v274
    %v561 = vunpack.c.h.b16 %v274
    %v562 = vunpack.c.l.b16 %v275
    %v563 = vunpack.c.h.b16 %v275
    %v564 = vunpack.c.l.b16 %v276
    %v565 = vunpack.c.h.b16 %v276
    %v566 = vunpack.c.l.b16 %v277
    %v567 = vunpack.c.h.b16 %v277
    %v568 = vunpack.c.l.b16 %v278
    %v569 = vunpack.c.h.b16 %v278
    %v570 = vunpack.c.l.b16 %v279
    %v571 = vunpack.c.h.b16 %v279
    %v572 = vunpack.c.l.b16 %v280
    %v573 = vunpack.c.h.b16 %v280
    %v574 = vunpack.c.l.b16 %v281
    %v575 = vunpack.c.h.b16 %v281
    %v576 = vunpack.c.l.b16 %v282
    %v577 = vunpack.c.h.b16 %v282
    %v578 = vunpack.c.l.b16 %v283
    %v579 = vunpack.c.h.b16 %v283
    %v580 = vunpack.c.l.b16 %v284
    %v581 = vunpack.c.h.b16 %v284
    %v582 = vunpack.c.l.b16 %v285
    %v583 = vunpack.c.h.b16 %v285
    %v584 = vunpack.c.l.b16 %v286
    %v585 = vunpack.c.h.b16 %v286
    %v586 = vunpack.c.l.b16 %v287
    %v587 = vunpack.c.h.b16 %v287
    %v588 = vunpack.c.l.b16 %v288
    %v589 = vunpack.c.h.b16 %v288
    %v590 = vunpack.c.l.b16 %v289
    %v591 = vunpack.c.h.b16 %v289
    %v592 = vunpack.c.l.b16 %v290
    %v593 = vunpack.c.h.b16 %v290
    %v594 = vunpack.c.l.b16 %v291
    %v595 = vunpack.c.h.b16 %v291
    %v596 = vunpack.c.l.b16 %v292
    %v597 = vunpack.c.h.b16 %v292
    %v598 = vunpack.c.l.b16 %v293
    %v599 = vunpack.c.h.b16 %v293
    %v600 = vunpack.c.l.b16 %v294
    %v601 = vunpack.c.h.b16 %v294
    %v602 = vunpack.c.l.b16 %v295
    %v603 = vunpack.c.h.b16 %v295
    %v604 = vunpack.c.l.b16 %v296
    %v605 = vunpack.c.h.b16 %v296
    %v606 = vunpack.c.l.b16 %v297
    %v607 = vunpack.c.h.b16 %v297
    %v608 = vunpack.c.l.b16 %v298
    %v609 = vunpack.c.h.b16 %v298
    %v610 = vunpack.c.l.b16 %v299
    %v611 = vunpack.c.h.b16 %v299
    %v612 = vunpack.c.l.b16 %v300
    %v613 = vunpack.c.h.b16 %v300
    %v614 = vunpack.c.l.b16 %v301
    %v615 = vunpack.c.h.b16 %v301
    %v616 = vunpack.c.l.b16 %v302
    %v617 = vunpack.c.h.b16 %v302
    %v618 = vunpack.c.l.b16 %v303
    %v619 = vunpack.c.h.b16 %v303
    %v620 = vunpack.c.l.b16 %v304
    %v621 = vunpack.c.h.b16 %v304
    %v622 = vunpack.c.l.b16 %v305
    %v623 = vunpack.c.h.b16 %v305
    %v624 = vunpack.c.l.b16 %v306
    %v625 = vunpack.c.h.b16 %v306
    %v626 = vunpack.c.l.b16 %v307
    %v627 = vunpack.c.h.b16 %v307
    %v628 = vunpack.c.l.b16 %v308
    %v629 = vunpack.c.h.b16 %v308
    %v630 = vunpack.c.l.b16 %v309
    %v631 = vunpack.c.h.b16 %v309
    %v632 = vunpack.c.l.b16 %v310
    %v633 = vunpack.c.h.b16 %v310
    %v634 = vunpack.c.l.b16 %v311
    %v635 = vunpack.c.h.b16 %v311
    %v636 = vunpack.c.l.b16 %v312
    %v637 = vunpack.c.h.b16 %v312
    %v638 = vunpack.c.l.b16 %v313
    %v639 = vunpack.c.h.b16 %v313
    %v640 = vunpack.c.l.b16 %v314
    %v641 = vunpack.c.h.b16 %v314
    %v642 = vunpack.c.l.b16 %v315
    %v643 = vunpack.c.h.b16 %v315
    %v644 = vunpack.c.l.b16 %v316
    %v645 = vunpack.c.h.b16 %v316
    %v646 = vunpack.c.l.b16 %v317
    %v647 = vunpack.c.h.b16 %v317
    %v648 = vunpack.c.l.b16 %v318
    %v649 = vunpack.c.h.b16 %v318
    %v650 = vunpack.c.l.b16 %v319
    %v651 = vunpack.c.h.b16 %v319
    %v652 = vunpack.c.l.b16 %v320
    %v653 = vunpack.c.h.b16 %v320
    %v654 = vunpack.c.l.b16 %v321
    %v655 = vunpack.c.h.b16 %v321
    %v656 = vunpack.c.l.b16 %v322
    %v657 = vunpack.c.h.b16 %v322
    %v658 = vunpack.c.l.b16 %v323
    %v659 = vunpack.c.h.b16 %v323
    %v660 = vunpack.c.l.b16 %v324
    %v661 = vunpack.c.h.b16 %v324
    %v662 = vunpack.c.l.b16 %v325
    %v663 = vunpack.c.h.b16 %v325
    %v664 = vunpack.c.l.b16 %v326
    %v665 = vunpack.c.h.b16 %v326
    %v666 = vunpack.c.l.b16 %v327
    %v667 = vunpack.c.h.b16 %v327
    %v668 = vunpack.c.l.b16 %v328
    %v669 = vunpack.c.h.b16 %v328
    %v670 = vunpack.c.l.b16 %v329
    %v671 = vunpack.c.h.b16 %v329
    %v672 = vunpack.c.l.b16 %v330
    %v673 = vunpack.c.h.b16 %v330
    %v674 = vunpack.c.l.b16 %v331
    %v675 = vunpack.c.h.b16 %v331
    %v676 = vunpack.c.l.b16 %v332
    %v677 = vunpack.c.h.b16 %v332
    %v678 = vunpack.c.l.b16 %v333
    %v679 = vunpack.c.h.b16 %v333
    %v680 = vunpack.c.l.b16 %v334
    %v681 = vunpack.c.h.b16 %v334
    %v682 = vunpack.c.l.b16 %v335
    %v683 = vunpack.c.h.b16 %v335
    %v684 = vunpack.c.l.b16 %v336
    %v685 = vunpack.c.h.b16 %v336
    %v686 = vunpack.c.l.b16 %v337
    %v687 = vunpack.c.h.b16 %v337
    %v688 = vunpack.c.l.b16 %v338
    %v689 = vunpack.c.h.b16 %v338
    %v690 = vunpack.c.l.b16 %v339
    %v691 = vunpack.c.h.b16 %v339
    %v692 = vunpack.c.l.b16 %v340
    %v693 = vunpack.c.h.b16 %v340
    %v694 = vunpack.c.l.b16 %v341
    %v695 = vunpack.c.h.b16 %v341
    %v696 = vunpack.c.l.b16 %v342
    %v697 = vunpack.c.h.b16 %v342
    %v698 = vunpack.c.l.b16 %v343
    %v699 = vunpack.c.h.b16 %v343
    %v700 = vunpack.c.l.b16 %v344
    %v701 = vunpack.c.h.b16 %v344
    %v702 = vunpack.c.l.b16 %v345
    %v703 = vunpack.c.h.b16 %v345
    %v704 = vunpack.c.l.b16 %v346
    %v705 = vunpack.c.h.b16 %v346
    %v706 = vunpack.c.l.b16 %v347
    %v707 = vunpack.c.h.b16 %v347
    %v708 = vunpack.c.l.b16 %v348
    %v709 = vunpack.c.h.b16 %v348
    %v710 = vunpack.c.l.b16 %v349
    %v711 = vunpack.c.h.b16 %v349
    %v712 = vunpack.c.l.b16 %v350
    %v713 = vunpack.c.h.b16 %v350
    %v714 = vunpack.c.l.b16 %v351
    %v715 = vunpack.c.h.b16 %v351
    %v716 = vunpack.c.l.b16 %v352
    %v717 = vunpack.c.h.b16 %v352
    %v718 = vunpack.c.l.b16 %v353
    %v719 = vunpack.c.h.b16 %v353
    %v720 = vunpack.c.l.b16 %v354
    %v721 = vunpack.c.h.b16 %v354
    %v722 = vunpack.c.l.b16 %v355
    %v723 = vunpack.c.h.b16 %v355
    %v724 = vunpack.c.l.b16 %v356
    %v725 = vunpack.c.h.b16 %v356
    %v726 = vunpack.c.l.b16 %v357
    %v727 = vunpack.c.h.b16 %v357
    %v728 = vunpack.c.l.b16 %v358
    %v729 = vunpack.c.h.b16 %v358
    %v730 = vunpack.c.l.b16 %v359
    %v731 = vunpack.c.h.b16 %v359
    %v732 = vunpack.c.l.b16 %v360
    %v733 = vunpack.c.h.b16 %v360
    %v734 = vunpack.c.l.b16 %v361
    %v735 = vunpack.c.h.b16 %v361
    %v736 = vunpack.c.l.b16 %v362
    %v737 = vunpack.c.h.b16 %v362
    %v738 = vunpack.c.l.b16 %v363
    %v739 = vunpack.c.h.b16 %v363
    %v740 = vunpack.c.l.b16 %v364
    %v741 = vunpack.c.h.b16 %v364
    %v742 = vunpack.c.l.b16 %v365
    %v743 = vunpack.c.h.b16 %v365
    %v744 = vunpack.c.l.b16 %v366
    %v745 = vunpack.c.h.b16 %v366
    %v746 = vunpack.c.l.b16 %v367
    %v747 = vunpack.c.h.b16 %v367
    %v748 = vunpack.c.l.b16 %v368
    %v749 = vunpack.c.h.b16 %v368
    %v750 = vunpack.c.l.b16 %v369
    %v751 = vunpack.c.h.b16 %v369
    %v752 = vunpack.c.l.b16 %v370
    %v753 = vunpack.c.h.b16 %v370
    %v754 = vunpack.c.l.b16 %v371
    %v755 = vunpack.c.h.b16 %v371
    %v756 = vunpack.c.l.b16 %v372
    %v757 = vunpack.c.h.b16 %v372
    %v758 = vunpack.c.l.b16 %v373
    %v759 = vunpack.c.h.b16 %v373
    %v760 = vunpack.c.l.b16 %v374
    %v761 = vunpack.c.h.b16 %v374
    %v762 = vunpack.c.l.b16 %v375
    %v763 = vunpack.c.h.b16 %v375
    %v764 = vunpack.c.l.b16 %v376
    %v765 = vunpack.c.h.b16 %v376
    %v766 = vunpack.c.l.b16 %v377
    %v767 = vunpack.c.h.b16 %v377
    %v768 = vunpack.c.l.b16 %v378
    %v769 = vunpack.c.h.b16 %v378
    %v770 = vunpack.c.l.b16 %v379
    %v771 = vunpack.c.h.b16 %v379
    %v772 = vunpack.c.l.b16 %v380
    %v773 = vunpack.c.h.b16 %v380
    %v774 = vunpack.c.l.b16 %v381
    %v775 = vunpack.c.h.b16 %v381
    %v776 = vunpack.c.l.b16 %v382
    %v777 = vunpack.c.h.b16 %v382
    %v778 = vunpack.c.l.b16 %v383
    %v779 = vunpack.c.h.b16 %v383
    %v780 = vunpack.c.l.b16 %v384
    %v781 = vunpack.c.h.b16 %v384
    %v782 = vunpack.c.l.b16 %v385
    %v783 = vunpack.c.h.b16 %v385
    %v784 = vunpack.c.l.b16 %v386
    %v785 = vunpack.c.h.b16 %v386
    %v786 = vunpack.c.l.b16 %v387
    %v787 = vunpack.c.h.b16 %v387
    %v788 = vunpack.c.l.b16 %v388
    %v789 = vunpack.c.h.b16 %v388
    %v790 = vunpack.c.l.b16 %v389
    %v791 = vunpack.c.h.b16 %v389
    %v792 = vunpack.c.l.b16 %v390
    %v793 = vunpack.c.h.b16 %v390
    %v794 = vunpack.c.l.b16 %v391
    %v795 = vunpack.c.h.b16 %v391
    %v796 = vunpack.c.l.b16 %v392
    %v797 = vunpack.c.h.b16 %v392
    %v798 = vunpack.c.l.b16 %v393
    %v799 = vunpack.c.h.b16 %v393
    %v800 = vunpack.c.l.b16 %v394
    %v801 = vunpack.c.h.b16 %v394
    %v802 = vpack.c.b16 %v550, %v546
    %v803 = vpack.c.b16 %v551, %v547
    %v804 = vpack.c.b16 %v552, %v548
    %v805 = vpack.c.b16 %v553, %v549
    %v806 = vpack.c.b16 %v558, %v554
    %v807 = vpack.c.b16 %v559, %v555
    %v808 = vpack.c.b16 %v560, %v556
    %v809 = vpack.c.b16 %v561, %v557
    %v810 = vpack.c.b16 %v566, %v562
    %v811 = vpack.c.b16 %v567, %v563
    %v812 = vpack.c.b16 %v568, %v564
    %v813 = vpack.c.b16 %v569, %v565
    %v814 = vpack.c.b16 %v574, %v570
    %v815 = vpack.c.b16 %v575, %v571
    %v816 = vpack.c.b16 %v576, %v572
    %v817 = vpack.c.b16 %v577, %v573
    %v818 = vpack.c.b16 %v582, %v578
    %v819 = vpack.c.b16 %v583, %v579
    %v820 = vpack.c.b16 %v584, %v580
    %v821 = vpack.c.b16 %v585, %v581
    %v822 = vpack.c.b16 %v590, %v586
    %v823 = vpack.c.b16 %v591, %v587
    %v824 = vpack.c.b16 %v592, %v588
    %v825 = vpack.c.b16 %v593, %v589
    %v826 = vpack.c.b16 %v598, %v594
    %v827 = vpack.c.b16 %v599, %v595
    %v828 = vpack.c.b16 %v600, %v596
    %v829 = vpack.c.b16 %v601, %v597
    %v830 = vpack.c.b16 %v606, %v602
    %v831 = vpack.c.b16 %v607, %v603
    %v832 = vpack.c.b16 %v608, %v604
    %v833 = vpack.c.b16 %v609, %v605
    %v834 = vpack.c.b16 %v614, %v610
    %v835 = vpack.c.b16 %v615, %v611
    %v836 = vpack.c.b16 %v616, %v612
    %v837 = vpack.c.b16 %v617, %v613
    %v838 = vpack.c.b16 %v622, %v618
    %v839 = vpack.c.b16 %v623, %v619
    %v840 = vpack.c.b16 %v624, %v620
    %v841 = vpack.c.b16 %v625, %v621
    %v842 = vpack.c.b16 %v630, %v626
    %v843 = vpack.c.b16 %v631, %v627
    %v844 = vpack.c.b16 %v632, %v628
    %v845 = vpack.c.b16 %v633, %v629
    %v846 = vpack.c.b16 %v638, %v634
    %v847 = vpack.c.b16 %v639, %v635
    %v848 = vpack.c.b16 %v640, %v636
    %v849 = vpack.c.b16 %v641, %v637
    %v850 = vpack.c.b16 %v646, %v642
    %v851 = vpack.c.b16 %v647, %v643
    %v852 = vpack.c.b16 %v648, %v644
    %v853 = vpack.c.b16 %v649, %v645
    %v854 = vpack.c.b16 %v654, %v650
    %v855 = vpack.c.b16 %v655, %v651
    %v856 = vpack.c.b16 %v656, %v652
    %v857 = vpack.c.b16 %v657, %v653
    %v858 = vpack.c.b16 %v662, %v658
    %v859 = vpack.c.b16 %v663, %v659
    %v860 = vpack.c.b16 %v664, %v660
    %v861 = vpack.c.b16 %v665, %v661
    %v862 = vpack.c.b16 %v670, %v666
    %v863 = vpack.c.b16 %v671, %v667
    %v864 = vpack.c.b16 %v672, %v668
    %v865 = vpack.c.b16 %v673, %v669
    %v866 = vpack.c.b16 %v678, %v674
    %v867 = vpack.c.b16 %v679, %v675
    %v868 = vpack.c.b16 %v680, %v676
    %v869 = vpack.c.b16 %v681, %v677
    %v870 = vpack.c.b16 %v686, %v682
    %v871 = vpack.c.b16 %v687, %v683
    %v872 = vpack.c.b16 %v688, %v684
    %v873 = vpack.c.b16 %v689, %v685
    %v874 = vpack.c.b16 %v694, %v690
    %v875 = vpack.c.b16 %v695, %v691
    %v876 = vpack.c.b16 %v696, %v692
    %v877 = vpack.c.b16 %v697, %v693
    %v878 = vpack.c.b16 %v702, %v698
    %v879 = vpack.c.b16 %v703, %v699
    %v880 = vpack.c.b16 %v704, %v700
    %v881 = vpack.c.b16 %v705, %v701
    %v882 = vpack.c.b16 %v710, %v706
    %v883 = vpack.c.b16 %v711, %v707
    %v884 = vpack.c.b16 %v712, %v708
    %v885 = vpack.c.b16 %v713, %v709
    %v886 = vpack.c.b16 %v718, %v714
    %v887 = vpack.c.b16 %v719, %v715
    %v888 = vpack.c.b16 %v720, %v716
    %v889 = vpack.c.b16 %v721, %v717
    %v890 = vpack.c.b16 %v726, %v722
    %v891 = vpack.c.b16 %v727, %v723
    %v892 = vpack.c.b16 %v728, %v724
    %v893 = vpack.c.b16 %v729, %v725
    %v894 = vpack.c.b16 %v734, %v730
    %v895 = vpack.c.b16 %v735, %v731
    %v896 = vpack.c.b16 %v736, %v732
    %v897 = vpack.c.b16 %v737, %v733
    %v898 = vpack.c.b16 %v742, %v738
    %v899 = vpack.c.b16 %v743, %v739
    %v900 = vpack.c.b16 %v744, %v740
    %v901 = vpack.c.b16 %v745, %v741
    %v902 = vpack.c.b16 %v750, %v746
    %v903 = vpack.c.b16 %v751, %v747
    %v904 = vpack.c.b16 %v752, %v748
    %v905 = vpack.c.b16 %v753, %v749
    %v906 = vpack.c.b16 %v758, %v754
    %v907 = vpack.c.b16 %v759, %v755
    %v908 = vpack.c.b16 %v760, %v756
    %v909 = vpack.c.b16 %v761, %v757
    %v910 = vpack.c.b16 %v766, %v762
    %v911 = vpack.c.b16 %v767, %v763
    %v912 = vpack.c.b16 %v768, %v764
    %v913 = vpack.c.b16 %v769, %v765
    %v914 = vpack.c.b16 %v774, %v770
    %v915 = vpack.c.b16 %v775, %v771
    %v916 = vpack.c.b16 %v776, %v772
    %v917 = vpack.c.b16 %v777, %v773
    %v918 = vpack.c.b16 %v782, %v778
    %v919 = vpack.c.b16 %v783, %v779
    %v920 = vpack.c.b16 %v784, %v780
    %v921 = vpack.c.b16 %v785, %v781
    %v922 = vpack.c.b16 %v790, %v786
    %v923 = vpack.c.b16 %v791, %v787
    %v924 = vpack.c.b16 %v792, %v788
    %v925 = vpack.c.b16 %v793, %v789
    %v926 = vpack.c.b16 %v798, %v794
    %v927 = vpack.c.b16 %v799, %v795
    %v928 = vpack.c.b16 %v800, %v796
    %v929 = vpack.c.b16 %v801, %v797
    %1058 = vmatprep.subr.bf16.mxu0 %v831
    %1059 = vmatpush1.bf16.msra.mxu0 %v830
    %1060 = vmatprep.subr.bf16.mxu0 %v827
    %1061 = vmatpush1.bf16.msra.mxu0 %v826
    %1062 = vmatprep.subr.bf16.mxu0 %v823
    %1063 = vmatpush1.bf16.msra.mxu0 %v822
    %1064 = vmatprep.subr.bf16.mxu0 %v819
    %1065 = vmatpush1.bf16.msra.mxu0 %v818
    %1066 = vmatprep.subr.bf16.mxu0 %v815
    %1067 = vmatpush1.bf16.msra.mxu0 %v814
    %1068 = vmatprep.subr.bf16.mxu0 %v811
    %1069 = vmatpush1.bf16.msra.mxu0 %v810
    %1070 = vmatprep.subr.bf16.mxu0 %v807
    %1071 = vmatpush1.bf16.msra.mxu0 %v806
    %1072 = vmatprep.subr.bf16.mxu0 %v803
    %1073 = vmatpush1.bf16.msra.mxu0 %v802
    %1074 = vmatprep.subr.bf16.mxu0 %v863
    %1075 = vmatpush2.bf16.msra.mxu0 %v862
    %1076 = vmatprep.subr.bf16.mxu0 %v859
    %1077 = vmatpush2.bf16.msra.mxu0 %v858
    %1078 = vmatprep.subr.bf16.mxu0 %v855
    %1079 = vmatpush2.bf16.msra.mxu0 %v854
    %1080 = vmatprep.subr.bf16.mxu0 %v851
    %1081 = vmatpush2.bf16.msra.mxu0 %v850
    %1082 = vmatprep.subr.bf16.mxu0 %v847
    %1083 = vmatpush2.bf16.msra.mxu0 %v846
    %1084 = vmatprep.subr.bf16.mxu0 %v843
    %1085 = vmatpush2.bf16.msra.mxu0 %v842
    %1086 = vmatprep.subr.bf16.mxu0 %v839
    %1087 = vmatpush2.bf16.msra.mxu0 %v838
    %1088 = vmatprep.subr.bf16.mxu0 %v835
    %1089 = vmatpush2.bf16.msra.mxu0 %v834
    %1090 = vmatprep.mubr.bf16.mxu0 %v264
    %1091 = vmatmul.mubr.bf16.gmra.mxu0 %v263
    %v1092 = vpop.f32.mrf.mxu0
    %v1093 = vadd.f32 %v401, %v1092
    %v1094 = vpop.f32.mrf.mxu0
    %v1095 = vadd.f32 %v405, %v1094
    %v1096 = vpop.f32.mrf.mxu0
    %v1097 = vadd.f32 %v401, %v1096
    %v1098 = vpop.f32.mrf.mxu0
    %v1099 = vadd.f32 %v405, %v1098
    %1100 = vdwg.mxu0
    %1101 = vmatprep.subr.bf16.mxu0 %v895
    %1102 = vmatpush1.bf16.msra.mxu0 %v894
    %1103 = vmatprep.subr.bf16.mxu0 %v891
    %1104 = vmatpush1.bf16.msra.mxu0 %v890
    %1105 = vmatprep.subr.bf16.mxu0 %v887
    %1106 = vmatpush1.bf16.msra.mxu0 %v886
    %1107 = vmatprep.subr.bf16.mxu0 %v883
    %1108 = vmatpush1.bf16.msra.mxu0 %v882
    %1109 = vmatprep.subr.bf16.mxu0 %v879
    %1110 = vmatpush1.bf16.msra.mxu0 %v878
    %1111 = vmatprep.subr.bf16.mxu0 %v875
    %1112 = vmatpush1.bf16.msra.mxu0 %v874
    %1113 = vmatprep.subr.bf16.mxu0 %v871
    %1114 = vmatpush1.bf16.msra.mxu0 %v870
    %1115 = vmatprep.subr.bf16.mxu0 %v867
    %1116 = vmatpush1.bf16.msra.mxu0 %v866
    %1117 = vmatprep.subr.bf16.mxu0 %v927
    %1118 = vmatpush2.bf16.msra.mxu0 %v926
    %1119 = vmatprep.subr.bf16.mxu0 %v923
    %1120 = vmatpush2.bf16.msra.mxu0 %v922
    %1121 = vmatprep.subr.bf16.mxu0 %v919
    %1122 = vmatpush2.bf16.msra.mxu0 %v918
    %1123 = vmatprep.subr.bf16.mxu0 %v915
    %1124 = vmatpush2.bf16.msra.mxu0 %v914
    %1125 = vmatprep.subr.bf16.mxu0 %v911
    %1126 = vmatpush2.bf16.msra.mxu0 %v910
    %1127 = vmatprep.subr.bf16.mxu0 %v907
    %1128 = vmatpush2.bf16.msra.mxu0 %v906
    %1129 = vmatprep.subr.bf16.mxu0 %v903
    %1130 = vmatpush2.bf16.msra.mxu0 %v902
    %1131 = vmatprep.subr.bf16.mxu0 %v899
    %1132 = vmatpush2.bf16.msra.mxu0 %v898
    %1133 = vmatprep.mubr.bf16.mxu0 %v266
    %1134 = vmatmul.mubr.bf16.gmra.mxu0 %v265
    %v1135 = vpop.f32.mrf.mxu0
    %v1136 = vadd.f32 %v1093, %v1135
    %v1137 = vpop.f32.mrf.mxu0
    %v1138 = vadd.f32 %v1095, %v1137
    %v1139 = vpop.f32.mrf.mxu0
    %v1140 = vadd.f32 %v1097, %v1139
    %v1141 = vpop.f32.mrf.mxu0
    %v1142 = vadd.f32 %v1099, %v1141
    %1143 = vdwg.mxu0
    %1144 = vmatprep.subr.bf16.mxu0 %v833
    %1145 = vmatpush1.bf16.msra.mxu0 %v832
    %1146 = vmatprep.subr.bf16.mxu0 %v829
    %1147 = vmatpush1.bf16.msra.mxu0 %v828
    %1148 = vmatprep.subr.bf16.mxu0 %v825
    %1149 = vmatpush1.bf16.msra.mxu0 %v824
    %1150 = vmatprep.subr.bf16.mxu0 %v821
    %1151 = vmatpush1.bf16.msra.mxu0 %v820
    %1152 = vmatprep.subr.bf16.mxu0 %v817
    %1153 = vmatpush1.bf16.msra.mxu0 %v816
    %1154 = vmatprep.subr.bf16.mxu0 %v813
    %1155 = vmatpush1.bf16.msra.mxu0 %v812
    %1156 = vmatprep.subr.bf16.mxu0 %v809
    %1157 = vmatpush1.bf16.msra.mxu0 %v808
    %1158 = vmatprep.subr.bf16.mxu0 %v805
    %1159 = vmatpush1.bf16.msra.mxu0 %v804
    %1160 = vmatprep.subr.bf16.mxu0 %v865
    %1161 = vmatpush2.bf16.msra.mxu0 %v864
    %1162 = vmatprep.subr.bf16.mxu0 %v861
    %1163 = vmatpush2.bf16.msra.mxu0 %v860
    %1164 = vmatprep.subr.bf16.mxu0 %v857
    %1165 = vmatpush2.bf16.msra.mxu0 %v856
    %1166 = vmatprep.subr.bf16.mxu0 %v853
    %1167 = vmatpush2.bf16.msra.mxu0 %v852
    %1168 = vmatprep.subr.bf16.mxu0 %v849
    %1169 = vmatpush2.bf16.msra.mxu0 %v848
    %1170 = vmatprep.subr.bf16.mxu0 %v845
    %1171 = vmatpush2.bf16.msra.mxu0 %v844
    %1172 = vmatprep.subr.bf16.mxu0 %v841
    %1173 = vmatpush2.bf16.msra.mxu0 %v840
    %1174 = vmatprep.subr.bf16.mxu0 %v837
    %1175 = vmatpush2.bf16.msra.mxu0 %v836
    %1176 = vmatprep.mubr.bf16.mxu0 %v264
    %1177 = vmatmul.mubr.bf16.gmra.mxu0 %v263
    %v1178 = vpop.f32.mrf.mxu0
    %v1179 = vadd.f32 %v409, %v1178
    %v1180 = vpop.f32.mrf.mxu0
    %v1181 = vadd.f32 %v413, %v1180
    %v1182 = vpop.f32.mrf.mxu0
    %v1183 = vadd.f32 %v409, %v1182
    %v1184 = vpop.f32.mrf.mxu0
    %v1185 = vadd.f32 %v413, %v1184
    %1186 = vdwg.mxu0
    %1187 = vmatprep.subr.bf16.mxu0 %v897
    %1188 = vmatpush1.bf16.msra.mxu0 %v896
    %1189 = vmatprep.subr.bf16.mxu0 %v893
    %1190 = vmatpush1.bf16.msra.mxu0 %v892
    %1191 = vmatprep.subr.bf16.mxu0 %v889
    %1192 = vmatpush1.bf16.msra.mxu0 %v888
    %1193 = vmatprep.subr.bf16.mxu0 %v885
    %1194 = vmatpush1.bf16.msra.mxu0 %v884
    %1195 = vmatprep.subr.bf16.mxu0 %v881
    %1196 = vmatpush1.bf16.msra.mxu0 %v880
    %1197 = vmatprep.subr.bf16.mxu0 %v877
    %1198 = vmatpush1.bf16.msra.mxu0 %v876
    %1199 = vmatprep.subr.bf16.mxu0 %v873
    %1200 = vmatpush1.bf16.msra.mxu0 %v872
    %1201 = vmatprep.subr.bf16.mxu0 %v869
    %1202 = vmatpush1.bf16.msra.mxu0 %v868
    %1203 = vmatprep.subr.bf16.mxu0 %v929
    %1204 = vmatpush2.bf16.msra.mxu0 %v928
    %1205 = vmatprep.subr.bf16.mxu0 %v925
    %1206 = vmatpush2.bf16.msra.mxu0 %v924
    %1207 = vmatprep.subr.bf16.mxu0 %v921
    %1208 = vmatpush2.bf16.msra.mxu0 %v920
    %1209 = vmatprep.subr.bf16.mxu0 %v917
    %1210 = vmatpush2.bf16.msra.mxu0 %v916
    %1211 = vmatprep.subr.bf16.mxu0 %v913
    %1212 = vmatpush2.bf16.msra.mxu0 %v912
    %1213 = vmatprep.subr.bf16.mxu0 %v909
    %1214 = vmatpush2.bf16.msra.mxu0 %v908
    %1215 = vmatprep.subr.bf16.mxu0 %v905
    %1216 = vmatpush2.bf16.msra.mxu0 %v904
    %1217 = vmatprep.subr.bf16.mxu0 %v901
    %1218 = vmatpush2.bf16.msra.mxu0 %v900
    %1219 = vmatprep.mubr.bf16.mxu0 %v266
    %1220 = vmatmul.mubr.bf16.gmra.mxu0 %v265
    %v1221 = vpop.f32.mrf.mxu0
    %v1222 = vadd.f32 %v1179, %v1221
    %v1223 = vpop.f32.mrf.mxu0
    %v1224 = vadd.f32 %v1181, %v1223
    %v1225 = vpop.f32.mrf.mxu0
    %v1226 = vadd.f32 %v1183, %v1225
    %v1227 = vpop.f32.mrf.mxu0
    %v1228 = vadd.f32 %v1185, %v1227
    %1229 = vdwg.mxu0
    %v1230 = vmax.f32 %v1136, 0.0
    %v1231 = vmax.f32 %v1138, 0.0
    %v1232 = vmax.f32 %v1222, 0.0
    %v1233 = vmax.f32 %v1224, 0.0
    %v1234 = vmax.f32 %v1140, 0.0
    %v1235 = vmax.f32 %v1142, 0.0
    %v1236 = vmax.f32 %v1226, 0.0
    %v1237 = vmax.f32 %v1228, 0.0
    %v1238 = vpack.c.bf16 %v1234, %v1230
    %v1239 = vpack.c.bf16 %v1235, %v1231
    %v1240 = vpack.c.bf16 %v1236, %v1232
    %v1241 = vpack.c.bf16 %v1237, %v1233
    %s1242 = scalar_lea.vmem [#allocation7], 1024
    %v1243 = vld [vmem:[%s1242] sm:$0xff]
    %v1244 = vld [vmem:[%s1242 + $0x8] sm:$0xff]
    %v1245 = vld [vmem:[%s1242 + $0x10] sm:$0xff]
    %v1246 = vld [vmem:[%s1242 + $0x18] sm:$0xff]
    %v1247 = vld [vmem:[%s1242 + $0x20] sm:$0xff]
    %v1248 = vld [vmem:[%s1242 + $0x28] sm:$0xff]
    %v1249 = vld [vmem:[%s1242 + $0x30] sm:$0xff]
    %v1250 = vld [vmem:[%s1242 + $0x38] sm:$0xff]
    %v1251 = vld [vmem:[%s1242 + $0x40] sm:$0xff]
    %v1252 = vld [vmem:[%s1242 + $0x48] sm:$0xff]
    %v1253 = vld [vmem:[%s1242 + $0x50] sm:$0xff]
    %v1254 = vld [vmem:[%s1242 + $0x58] sm:$0xff]
    %v1255 = vld [vmem:[%s1242 + $0x60] sm:$0xff]
    %v1256 = vld [vmem:[%s1242 + $0x68] sm:$0xff]
    %v1257 = vld [vmem:[%s1242 + $0x70] sm:$0xff]
    %v1258 = vld [vmem:[%s1242 + $0x78] sm:$0xff]
    %v1259 = vld [vmem:[%s1242 + $0x80] sm:$0xff]
    %v1260 = vld [vmem:[%s1242 + $0x88] sm:$0xff]
    %v1261 = vld [vmem:[%s1242 + $0x90] sm:$0xff]
    %v1262 = vld [vmem:[%s1242 + $0x98] sm:$0xff]
    %v1263 = vld [vmem:[%s1242 + $0xa0] sm:$0xff]
    %v1264 = vld [vmem:[%s1242 + $0xa8] sm:$0xff]
    %v1265 = vld [vmem:[%s1242 + $0xb0] sm:$0xff]
    %v1266 = vld [vmem:[%s1242 + $0xb8] sm:$0xff]
    %v1267 = vld [vmem:[%s1242 + $0xc0] sm:$0xff]
    %v1268 = vld [vmem:[%s1242 + $0xc8] sm:$0xff]
    %v1269 = vld [vmem:[%s1242 + $0xd0] sm:$0xff]
    %v1270 = vld [vmem:[%s1242 + $0xd8] sm:$0xff]
    %v1271 = vld [vmem:[%s1242 + $0xe0] sm:$0xff]
    %v1272 = vld [vmem:[%s1242 + $0xe8] sm:$0xff]
    %v1273 = vld [vmem:[%s1242 + $0xf0] sm:$0xff]
    %v1274 = vld [vmem:[%s1242 + $0xf8] sm:$0xff]
    %v1275 = vld [vmem:[%s1242 + $0x100] sm:$0xff]
    %v1276 = vld [vmem:[%s1242 + $0x108] sm:$0xff]
    %v1277 = vld [vmem:[%s1242 + $0x110] sm:$0xff]
    %v1278 = vld [vmem:[%s1242 + $0x118] sm:$0xff]
    %v1279 = vld [vmem:[%s1242 + $0x120] sm:$0xff]
    %v1280 = vld [vmem:[%s1242 + $0x128] sm:$0xff]
    %v1281 = vld [vmem:[%s1242 + $0x130] sm:$0xff]
    %v1282 = vld [vmem:[%s1242 + $0x138] sm:$0xff]
    %v1283 = vld [vmem:[%s1242 + $0x140] sm:$0xff]
    %v1284 = vld [vmem:[%s1242 + $0x148] sm:$0xff]
    %v1285 = vld [vmem:[%s1242 + $0x150] sm:$0xff]
    %v1286 = vld [vmem:[%s1242 + $0x158] sm:$0xff]
    %v1287 = vld [vmem:[%s1242 + $0x160] sm:$0xff]
    %v1288 = vld [vmem:[%s1242 + $0x168] sm:$0xff]
    %v1289 = vld [vmem:[%s1242 + $0x170] sm:$0xff]
    %v1290 = vld [vmem:[%s1242 + $0x178] sm:$0xff]
    %v1291 = vld [vmem:[%s1242 + $0x180] sm:$0xff]
    %v1292 = vld [vmem:[%s1242 + $0x188] sm:$0xff]
    %v1293 = vld [vmem:[%s1242 + $0x190] sm:$0xff]
    %v1294 = vld [vmem:[%s1242 + $0x198] sm:$0xff]
    %v1295 = vld [vmem:[%s1242 + $0x1a0] sm:$0xff]
    %v1296 = vld [vmem:[%s1242 + $0x1a8] sm:$0xff]
    %v1297 = vld [vmem:[%s1242 + $0x1b0] sm:$0xff]
    %v1298 = vld [vmem:[%s1242 + $0x1b8] sm:$0xff]
    %v1299 = vld [vmem:[%s1242 + $0x1c0] sm:$0xff]
    %v1300 = vld [vmem:[%s1242 + $0x1c8] sm:$0xff]
    %v1301 = vld [vmem:[%s1242 + $0x1d0] sm:$0xff]
    %v1302 = vld [vmem:[%s1242 + $0x1d8] sm:$0xff]
    %v1303 = vld [vmem:[%s1242 + $0x1e0] sm:$0xff]
    %v1304 = vld [vmem:[%s1242 + $0x1e8] sm:$0xff]
    %v1305 = vld [vmem:[%s1242 + $0x1f0] sm:$0xff]
    %v1306 = vld [vmem:[%s1242 + $0x1f8] sm:$0xff]
    %v1307 = vld [vmem:[%s1242 + $0x200] sm:$0xff]
    %v1308 = vld [vmem:[%s1242 + $0x208] sm:$0xff]
    %v1309 = vld [vmem:[%s1242 + $0x210] sm:$0xff]
    %v1310 = vld [vmem:[%s1242 + $0x218] sm:$0xff]
    %v1311 = vld [vmem:[%s1242 + $0x220] sm:$0xff]
    %v1312 = vld [vmem:[%s1242 + $0x228] sm:$0xff]
    %v1313 = vld [vmem:[%s1242 + $0x230] sm:$0xff]
    %v1314 = vld [vmem:[%s1242 + $0x238] sm:$0xff]
    %v1315 = vld [vmem:[%s1242 + $0x240] sm:$0xff]
    %v1316 = vld [vmem:[%s1242 + $0x248] sm:$0xff]
    %v1317 = vld [vmem:[%s1242 + $0x250] sm:$0xff]
    %v1318 = vld [vmem:[%s1242 + $0x258] sm:$0xff]
    %v1319 = vld [vmem:[%s1242 + $0x260] sm:$0xff]
    %v1320 = vld [vmem:[%s1242 + $0x268] sm:$0xff]
    %v1321 = vld [vmem:[%s1242 + $0x270] sm:$0xff]
    %v1322 = vld [vmem:[%s1242 + $0x278] sm:$0xff]
    %v1323 = vld [vmem:[%s1242 + $0x280] sm:$0xff]
    %v1324 = vld [vmem:[%s1242 + $0x288] sm:$0xff]
    %v1325 = vld [vmem:[%s1242 + $0x290] sm:$0xff]
    %v1326 = vld [vmem:[%s1242 + $0x298] sm:$0xff]
    %v1327 = vld [vmem:[%s1242 + $0x2a0] sm:$0xff]
    %v1328 = vld [vmem:[%s1242 + $0x2a8] sm:$0xff]
    %v1329 = vld [vmem:[%s1242 + $0x2b0] sm:$0xff]
    %v1330 = vld [vmem:[%s1242 + $0x2b8] sm:$0xff]
    %v1331 = vld [vmem:[%s1242 + $0x2c0] sm:$0xff]
    %v1332 = vld [vmem:[%s1242 + $0x2c8] sm:$0xff]
    %v1333 = vld [vmem:[%s1242 + $0x2d0] sm:$0xff]
    %v1334 = vld [vmem:[%s1242 + $0x2d8] sm:$0xff]
    %v1335 = vld [vmem:[%s1242 + $0x2e0] sm:$0xff]
    %v1336 = vld [vmem:[%s1242 + $0x2e8] sm:$0xff]
    %v1337 = vld [vmem:[%s1242 + $0x2f0] sm:$0xff]
    %v1338 = vld [vmem:[%s1242 + $0x2f8] sm:$0xff]
    %v1339 = vld [vmem:[%s1242 + $0x300] sm:$0xff]
    %v1340 = vld [vmem:[%s1242 + $0x308] sm:$0xff]
    %v1341 = vld [vmem:[%s1242 + $0x310] sm:$0xff]
    %v1342 = vld [vmem:[%s1242 + $0x318] sm:$0xff]
    %v1343 = vld [vmem:[%s1242 + $0x320] sm:$0xff]
    %v1344 = vld [vmem:[%s1242 + $0x328] sm:$0xff]
    %v1345 = vld [vmem:[%s1242 + $0x330] sm:$0xff]
    %v1346 = vld [vmem:[%s1242 + $0x338] sm:$0xff]
    %v1347 = vld [vmem:[%s1242 + $0x340] sm:$0xff]
    %v1348 = vld [vmem:[%s1242 + $0x348] sm:$0xff]
    %v1349 = vld [vmem:[%s1242 + $0x350] sm:$0xff]
    %v1350 = vld [vmem:[%s1242 + $0x358] sm:$0xff]
    %v1351 = vld [vmem:[%s1242 + $0x360] sm:$0xff]
    %v1352 = vld [vmem:[%s1242 + $0x368] sm:$0xff]
    %v1353 = vld [vmem:[%s1242 + $0x370] sm:$0xff]
    %v1354 = vld [vmem:[%s1242 + $0x378] sm:$0xff]
    %v1355 = vld [vmem:[%s1242 + $0x380] sm:$0xff]
    %v1356 = vld [vmem:[%s1242 + $0x388] sm:$0xff]
    %v1357 = vld [vmem:[%s1242 + $0x390] sm:$0xff]
    %v1358 = vld [vmem:[%s1242 + $0x398] sm:$0xff]
    %v1359 = vld [vmem:[%s1242 + $0x3a0] sm:$0xff]
    %v1360 = vld [vmem:[%s1242 + $0x3a8] sm:$0xff]
    %v1361 = vld [vmem:[%s1242 + $0x3b0] sm:$0xff]
    %v1362 = vld [vmem:[%s1242 + $0x3b8] sm:$0xff]
    %v1363 = vld [vmem:[%s1242 + $0x3c0] sm:$0xff]
    %v1364 = vld [vmem:[%s1242 + $0x3c8] sm:$0xff]
    %v1365 = vld [vmem:[%s1242 + $0x3d0] sm:$0xff]
    %v1366 = vld [vmem:[%s1242 + $0x3d8] sm:$0xff]
    %v1367 = vld [vmem:[%s1242 + $0x3e0] sm:$0xff]
    %v1368 = vld [vmem:[%s1242 + $0x3e8] sm:$0xff]
    %v1369 = vld [vmem:[%s1242 + $0x3f0] sm:$0xff]
    %v1370 = vld [vmem:[%s1242 + $0x3f8] sm:$0xff]
    %s1371 = scalar_lea.vmem [#allocation10], 2
    %v1372 = vld [vmem:[%s1371] ss:$4 sm:$0xf]
    %v1374 = vlaneseq
    %v1375 = vshrl.u32 %v1374, 7
    %v1376 = vsub.s32 0, %v1375
    %v1377 = vrot.slane %v1372, %v1376
    %v1378 = vlaneseq
    %v1379 = vshrl.u32 %v1378, 7
    %v1380 = vsub.s32 1, %v1379
    %v1381 = vrot.slane %v1372, %v1380
    %v1382 = vlaneseq
    %v1383 = vshrl.u32 %v1382, 7
    %v1384 = vsub.s32 2, %v1383
    %v1385 = vrot.slane %v1372, %v1384
    %v1386 = vlaneseq
    %v1387 = vshrl.u32 %v1386, 7
    %v1388 = vsub.s32 3, %v1387
    %v1389 = vrot.slane %v1372, %v1388
    %v1522 = vunpack.c.l.b16 %v1243
    %v1523 = vunpack.c.h.b16 %v1243
    %v1524 = vunpack.c.l.b16 %v1244
    %v1525 = vunpack.c.h.b16 %v1244
    %v1526 = vunpack.c.l.b16 %v1245
    %v1527 = vunpack.c.h.b16 %v1245
    %v1528 = vunpack.c.l.b16 %v1246
    %v1529 = vunpack.c.h.b16 %v1246
    %v1530 = vunpack.c.l.b16 %v1247
    %v1531 = vunpack.c.h.b16 %v1247
    %v1532 = vunpack.c.l.b16 %v1248
    %v1533 = vunpack.c.h.b16 %v1248
    %v1534 = vunpack.c.l.b16 %v1249
    %v1535 = vunpack.c.h.b16 %v1249
    %v1536 = vunpack.c.l.b16 %v1250
    %v1537 = vunpack.c.h.b16 %v1250
    %v1538 = vunpack.c.l.b16 %v1251
    %v1539 = vunpack.c.h.b16 %v1251
    %v1540 = vunpack.c.l.b16 %v1252
    %v1541 = vunpack.c.h.b16 %v1252
    %v1542 = vunpack.c.l.b16 %v1253
    %v1543 = vunpack.c.h.b16 %v1253
    %v1544 = vunpack.c.l.b16 %v1254
    %v1545 = vunpack.c.h.b16 %v1254
    %v1546 = vunpack.c.l.b16 %v1255
    %v1547 = vunpack.c.h.b16 %v1255
    %v1548 = vunpack.c.l.b16 %v1256
    %v1549 = vunpack.c.h.b16 %v1256
    %v1550 = vunpack.c.l.b16 %v1257
    %v1551 = vunpack.c.h.b16 %v1257
    %v1552 = vunpack.c.l.b16 %v1258
    %v1553 = vunpack.c.h.b16 %v1258
    %v1554 = vunpack.c.l.b16 %v1259
    %v1555 = vunpack.c.h.b16 %v1259
    %v1556 = vunpack.c.l.b16 %v1260
    %v1557 = vunpack.c.h.b16 %v1260
    %v1558 = vunpack.c.l.b16 %v1261
    %v1559 = vunpack.c.h.b16 %v1261
    %v1560 = vunpack.c.l.b16 %v1262
    %v1561 = vunpack.c.h.b16 %v1262
    %v1562 = vunpack.c.l.b16 %v1263
    %v1563 = vunpack.c.h.b16 %v1263
    %v1564 = vunpack.c.l.b16 %v1264
    %v1565 = vunpack.c.h.b16 %v1264
    %v1566 = vunpack.c.l.b16 %v1265
    %v1567 = vunpack.c.h.b16 %v1265
    %v1568 = vunpack.c.l.b16 %v1266
    %v1569 = vunpack.c.h.b16 %v1266
    %v1570 = vunpack.c.l.b16 %v1267
    %v1571 = vunpack.c.h.b16 %v1267
    %v1572 = vunpack.c.l.b16 %v1268
    %v1573 = vunpack.c.h.b16 %v1268
    %v1574 = vunpack.c.l.b16 %v1269
    %v1575 = vunpack.c.h.b16 %v1269
    %v1576 = vunpack.c.l.b16 %v1270
    %v1577 = vunpack.c.h.b16 %v1270
    %v1578 = vunpack.c.l.b16 %v1271
    %v1579 = vunpack.c.h.b16 %v1271
    %v1580 = vunpack.c.l.b16 %v1272
    %v1581 = vunpack.c.h.b16 %v1272
    %v1582 = vunpack.c.l.b16 %v1273
    %v1583 = vunpack.c.h.b16 %v1273
    %v1584 = vunpack.c.l.b16 %v1274
    %v1585 = vunpack.c.h.b16 %v1274
    %v1586 = vunpack.c.l.b16 %v1275
    %v1587 = vunpack.c.h.b16 %v1275
    %v1588 = vunpack.c.l.b16 %v1276
    %v1589 = vunpack.c.h.b16 %v1276
    %v1590 = vunpack.c.l.b16 %v1277
    %v1591 = vunpack.c.h.b16 %v1277
    %v1592 = vunpack.c.l.b16 %v1278
    %v1593 = vunpack.c.h.b16 %v1278
    %v1594 = vunpack.c.l.b16 %v1279
    %v1595 = vunpack.c.h.b16 %v1279
    %v1596 = vunpack.c.l.b16 %v1280
    %v1597 = vunpack.c.h.b16 %v1280
    %v1598 = vunpack.c.l.b16 %v1281
    %v1599 = vunpack.c.h.b16 %v1281
    %v1600 = vunpack.c.l.b16 %v1282
    %v1601 = vunpack.c.h.b16 %v1282
    %v1602 = vunpack.c.l.b16 %v1283
    %v1603 = vunpack.c.h.b16 %v1283
    %v1604 = vunpack.c.l.b16 %v1284
    %v1605 = vunpack.c.h.b16 %v1284
    %v1606 = vunpack.c.l.b16 %v1285
    %v1607 = vunpack.c.h.b16 %v1285
    %v1608 = vunpack.c.l.b16 %v1286
    %v1609 = vunpack.c.h.b16 %v1286
    %v1610 = vunpack.c.l.b16 %v1287
    %v1611 = vunpack.c.h.b16 %v1287
    %v1612 = vunpack.c.l.b16 %v1288
    %v1613 = vunpack.c.h.b16 %v1288
    %v1614 = vunpack.c.l.b16 %v1289
    %v1615 = vunpack.c.h.b16 %v1289
    %v1616 = vunpack.c.l.b16 %v1290
    %v1617 = vunpack.c.h.b16 %v1290
    %v1618 = vunpack.c.l.b16 %v1291
    %v1619 = vunpack.c.h.b16 %v1291
    %v1620 = vunpack.c.l.b16 %v1292
    %v1621 = vunpack.c.h.b16 %v1292
    %v1622 = vunpack.c.l.b16 %v1293
    %v1623 = vunpack.c.h.b16 %v1293
    %v1624 = vunpack.c.l.b16 %v1294
    %v1625 = vunpack.c.h.b16 %v1294
    %v1626 = vunpack.c.l.b16 %v1295
    %v1627 = vunpack.c.h.b16 %v1295
    %v1628 = vunpack.c.l.b16 %v1296
    %v1629 = vunpack.c.h.b16 %v1296
    %v1630 = vunpack.c.l.b16 %v1297
    %v1631 = vunpack.c.h.b16 %v1297
    %v1632 = vunpack.c.l.b16 %v1298
    %v1633 = vunpack.c.h.b16 %v1298
    %v1634 = vunpack.c.l.b16 %v1299
    %v1635 = vunpack.c.h.b16 %v1299
    %v1636 = vunpack.c.l.b16 %v1300
    %v1637 = vunpack.c.h.b16 %v1300
    %v1638 = vunpack.c.l.b16 %v1301
    %v1639 = vunpack.c.h.b16 %v1301
    %v1640 = vunpack.c.l.b16 %v1302
    %v1641 = vunpack.c.h.b16 %v1302
    %v1642 = vunpack.c.l.b16 %v1303
    %v1643 = vunpack.c.h.b16 %v1303
    %v1644 = vunpack.c.l.b16 %v1304
    %v1645 = vunpack.c.h.b16 %v1304
    %v1646 = vunpack.c.l.b16 %v1305
    %v1647 = vunpack.c.h.b16 %v1305
    %v1648 = vunpack.c.l.b16 %v1306
    %v1649 = vunpack.c.h.b16 %v1306
    %v1650 = vunpack.c.l.b16 %v1307
    %v1651 = vunpack.c.h.b16 %v1307
    %v1652 = vunpack.c.l.b16 %v1308
    %v1653 = vunpack.c.h.b16 %v1308
    %v1654 = vunpack.c.l.b16 %v1309
    %v1655 = vunpack.c.h.b16 %v1309
    %v1656 = vunpack.c.l.b16 %v1310
    %v1657 = vunpack.c.h.b16 %v1310
    %v1658 = vunpack.c.l.b16 %v1311
    %v1659 = vunpack.c.h.b16 %v1311
    %v1660 = vunpack.c.l.b16 %v1312
    %v1661 = vunpack.c.h.b16 %v1312
    %v1662 = vunpack.c.l.b16 %v1313
    %v1663 = vunpack.c.h.b16 %v1313
    %v1664 = vunpack.c.l.b16 %v1314
    %v1665 = vunpack.c.h.b16 %v1314
    %v1666 = vunpack.c.l.b16 %v1315
    %v1667 = vunpack.c.h.b16 %v1315
    %v1668 = vunpack.c.l.b16 %v1316
    %v1669 = vunpack.c.h.b16 %v1316
    %v1670 = vunpack.c.l.b16 %v1317
    %v1671 = vunpack.c.h.b16 %v1317
    %v1672 = vunpack.c.l.b16 %v1318
    %v1673 = vunpack.c.h.b16 %v1318
    %v1674 = vunpack.c.l.b16 %v1319
    %v1675 = vunpack.c.h.b16 %v1319
    %v1676 = vunpack.c.l.b16 %v1320
    %v1677 = vunpack.c.h.b16 %v1320
    %v1678 = vunpack.c.l.b16 %v1321
    %v1679 = vunpack.c.h.b16 %v1321
    %v1680 = vunpack.c.l.b16 %v1322
    %v1681 = vunpack.c.h.b16 %v1322
    %v1682 = vunpack.c.l.b16 %v1323
    %v1683 = vunpack.c.h.b16 %v1323
    %v1684 = vunpack.c.l.b16 %v1324
    %v1685 = vunpack.c.h.b16 %v1324
    %v1686 = vunpack.c.l.b16 %v1325
    %v1687 = vunpack.c.h.b16 %v1325
    %v1688 = vunpack.c.l.b16 %v1326
    %v1689 = vunpack.c.h.b16 %v1326
    %v1690 = vunpack.c.l.b16 %v1327
    %v1691 = vunpack.c.h.b16 %v1327
    %v1692 = vunpack.c.l.b16 %v1328
    %v1693 = vunpack.c.h.b16 %v1328
    %v1694 = vunpack.c.l.b16 %v1329
    %v1695 = vunpack.c.h.b16 %v1329
    %v1696 = vunpack.c.l.b16 %v1330
    %v1697 = vunpack.c.h.b16 %v1330
    %v1698 = vunpack.c.l.b16 %v1331
    %v1699 = vunpack.c.h.b16 %v1331
    %v1700 = vunpack.c.l.b16 %v1332
    %v1701 = vunpack.c.h.b16 %v1332
    %v1702 = vunpack.c.l.b16 %v1333
    %v1703 = vunpack.c.h.b16 %v1333
    %v1704 = vunpack.c.l.b16 %v1334
    %v1705 = vunpack.c.h.b16 %v1334
    %v1706 = vunpack.c.l.b16 %v1335
    %v1707 = vunpack.c.h.b16 %v1335
    %v1708 = vunpack.c.l.b16 %v1336
    %v1709 = vunpack.c.h.b16 %v1336
    %v1710 = vunpack.c.l.b16 %v1337
    %v1711 = vunpack.c.h.b16 %v1337
    %v1712 = vunpack.c.l.b16 %v1338
    %v1713 = vunpack.c.h.b16 %v1338
    %v1714 = vunpack.c.l.b16 %v1339
    %v1715 = vunpack.c.h.b16 %v1339
    %v1716 = vunpack.c.l.b16 %v1340
    %v1717 = vunpack.c.h.b16 %v1340
    %v1718 = vunpack.c.l.b16 %v1341
    %v1719 = vunpack.c.h.b16 %v1341
    %v1720 = vunpack.c.l.b16 %v1342
    %v1721 = vunpack.c.h.b16 %v1342
    %v1722 = vunpack.c.l.b16 %v1343
    %v1723 = vunpack.c.h.b16 %v1343
    %v1724 = vunpack.c.l.b16 %v1344
    %v1725 = vunpack.c.h.b16 %v1344
    %v1726 = vunpack.c.l.b16 %v1345
    %v1727 = vunpack.c.h.b16 %v1345
    %v1728 = vunpack.c.l.b16 %v1346
    %v1729 = vunpack.c.h.b16 %v1346
    %v1730 = vunpack.c.l.b16 %v1347
    %v1731 = vunpack.c.h.b16 %v1347
    %v1732 = vunpack.c.l.b16 %v1348
    %v1733 = vunpack.c.h.b16 %v1348
    %v1734 = vunpack.c.l.b16 %v1349
    %v1735 = vunpack.c.h.b16 %v1349
    %v1736 = vunpack.c.l.b16 %v1350
    %v1737 = vunpack.c.h.b16 %v1350
    %v1738 = vunpack.c.l.b16 %v1351
    %v1739 = vunpack.c.h.b16 %v1351
    %v1740 = vunpack.c.l.b16 %v1352
    %v1741 = vunpack.c.h.b16 %v1352
    %v1742 = vunpack.c.l.b16 %v1353
    %v1743 = vunpack.c.h.b16 %v1353
    %v1744 = vunpack.c.l.b16 %v1354
    %v1745 = vunpack.c.h.b16 %v1354
    %v1746 = vunpack.c.l.b16 %v1355
    %v1747 = vunpack.c.h.b16 %v1355
    %v1748 = vunpack.c.l.b16 %v1356
    %v1749 = vunpack.c.h.b16 %v1356
    %v1750 = vunpack.c.l.b16 %v1357
    %v1751 = vunpack.c.h.b16 %v1357
    %v1752 = vunpack.c.l.b16 %v1358
    %v1753 = vunpack.c.h.b16 %v1358
    %v1754 = vunpack.c.l.b16 %v1359
    %v1755 = vunpack.c.h.b16 %v1359
    %v1756 = vunpack.c.l.b16 %v1360
    %v1757 = vunpack.c.h.b16 %v1360
    %v1758 = vunpack.c.l.b16 %v1361
    %v1759 = vunpack.c.h.b16 %v1361
    %v1760 = vunpack.c.l.b16 %v1362
    %v1761 = vunpack.c.h.b16 %v1362
    %v1762 = vunpack.c.l.b16 %v1363
    %v1763 = vunpack.c.h.b16 %v1363
    %v1764 = vunpack.c.l.b16 %v1364
    %v1765 = vunpack.c.h.b16 %v1364
    %v1766 = vunpack.c.l.b16 %v1365
    %v1767 = vunpack.c.h.b16 %v1365
    %v1768 = vunpack.c.l.b16 %v1366
    %v1769 = vunpack.c.h.b16 %v1366
    %v1770 = vunpack.c.l.b16 %v1367
    %v1771 = vunpack.c.h.b16 %v1367
    %v1772 = vunpack.c.l.b16 %v1368
    %v1773 = vunpack.c.h.b16 %v1368
    %v1774 = vunpack.c.l.b16 %v1369
    %v1775 = vunpack.c.h.b16 %v1369
    %v1776 = vunpack.c.l.b16 %v1370
    %v1777 = vunpack.c.h.b16 %v1370
    %v1778 = vpack.c.b16 %v1526, %v1522
    %v1779 = vpack.c.b16 %v1527, %v1523
    %v1780 = vpack.c.b16 %v1528, %v1524
    %v1781 = vpack.c.b16 %v1529, %v1525
    %v1782 = vpack.c.b16 %v1534, %v1530
    %v1783 = vpack.c.b16 %v1535, %v1531
    %v1784 = vpack.c.b16 %v1536, %v1532
    %v1785 = vpack.c.b16 %v1537, %v1533
    %v1786 = vpack.c.b16 %v1542, %v1538
    %v1787 = vpack.c.b16 %v1543, %v1539
    %v1788 = vpack.c.b16 %v1544, %v1540
    %v1789 = vpack.c.b16 %v1545, %v1541
    %v1790 = vpack.c.b16 %v1550, %v1546
    %v1791 = vpack.c.b16 %v1551, %v1547
    %v1792 = vpack.c.b16 %v1552, %v1548
    %v1793 = vpack.c.b16 %v1553, %v1549
    %v1794 = vpack.c.b16 %v1558, %v1554
    %v1795 = vpack.c.b16 %v1559, %v1555
    %v1796 = vpack.c.b16 %v1560, %v1556
    %v1797 = vpack.c.b16 %v1561, %v1557
    %v1798 = vpack.c.b16 %v1566, %v1562
    %v1799 = vpack.c.b16 %v1567, %v1563
    %v1800 = vpack.c.b16 %v1568, %v1564
    %v1801 = vpack.c.b16 %v1569, %v1565
    %v1802 = vpack.c.b16 %v1574, %v1570
    %v1803 = vpack.c.b16 %v1575, %v1571
    %v1804 = vpack.c.b16 %v1576, %v1572
    %v1805 = vpack.c.b16 %v1577, %v1573
    %v1806 = vpack.c.b16 %v1582, %v1578
    %v1807 = vpack.c.b16 %v1583, %v1579
    %v1808 = vpack.c.b16 %v1584, %v1580
    %v1809 = vpack.c.b16 %v1585, %v1581
    %v1810 = vpack.c.b16 %v1590, %v1586
    %v1811 = vpack.c.b16 %v1591, %v1587
    %v1812 = vpack.c.b16 %v1592, %v1588
    %v1813 = vpack.c.b16 %v1593, %v1589
    %v1814 = vpack.c.b16 %v1598, %v1594
    %v1815 = vpack.c.b16 %v1599, %v1595
    %v1816 = vpack.c.b16 %v1600, %v1596
    %v1817 = vpack.c.b16 %v1601, %v1597
    %v1818 = vpack.c.b16 %v1606, %v1602
    %v1819 = vpack.c.b16 %v1607, %v1603
    %v1820 = vpack.c.b16 %v1608, %v1604
    %v1821 = vpack.c.b16 %v1609, %v1605
    %v1822 = vpack.c.b16 %v1614, %v1610
    %v1823 = vpack.c.b16 %v1615, %v1611
    %v1824 = vpack.c.b16 %v1616, %v1612
    %v1825 = vpack.c.b16 %v1617, %v1613
    %v1826 = vpack.c.b16 %v1622, %v1618
    %v1827 = vpack.c.b16 %v1623, %v1619
    %v1828 = vpack.c.b16 %v1624, %v1620
    %v1829 = vpack.c.b16 %v1625, %v1621
    %v1830 = vpack.c.b16 %v1630, %v1626
    %v1831 = vpack.c.b16 %v1631, %v1627
    %v1832 = vpack.c.b16 %v1632, %v1628
    %v1833 = vpack.c.b16 %v1633, %v1629
    %v1834 = vpack.c.b16 %v1638, %v1634
    %v1835 = vpack.c.b16 %v1639, %v1635
    %v1836 = vpack.c.b16 %v1640, %v1636
    %v1837 = vpack.c.b16 %v1641, %v1637
    %v1838 = vpack.c.b16 %v1646, %v1642
    %v1839 = vpack.c.b16 %v1647, %v1643
    %v1840 = vpack.c.b16 %v1648, %v1644
    %v1841 = vpack.c.b16 %v1649, %v1645
    %v1842 = vpack.c.b16 %v1654, %v1650
    %v1843 = vpack.c.b16 %v1655, %v1651
    %v1844 = vpack.c.b16 %v1656, %v1652
    %v1845 = vpack.c.b16 %v1657, %v1653
    %v1846 = vpack.c.b16 %v1662, %v1658
    %v1847 = vpack.c.b16 %v1663, %v1659
    %v1848 = vpack.c.b16 %v1664, %v1660
    %v1849 = vpack.c.b16 %v1665, %v1661
    %v1850 = vpack.c.b16 %v1670, %v1666
    %v1851 = vpack.c.b16 %v1671, %v1667
    %v1852 = vpack.c.b16 %v1672, %v1668
    %v1853 = vpack.c.b16 %v1673, %v1669
    %v1854 = vpack.c.b16 %v1678, %v1674
    %v1855 = vpack.c.b16 %v1679, %v1675
    %v1856 = vpack.c.b16 %v1680, %v1676
    %v1857 = vpack.c.b16 %v1681, %v1677
    %v1858 = vpack.c.b16 %v1686, %v1682
    %v1859 = vpack.c.b16 %v1687, %v1683
    %v1860 = vpack.c.b16 %v1688, %v1684
    %v1861 = vpack.c.b16 %v1689, %v1685
    %v1862 = vpack.c.b16 %v1694, %v1690
    %v1863 = vpack.c.b16 %v1695, %v1691
    %v1864 = vpack.c.b16 %v1696, %v1692
    %v1865 = vpack.c.b16 %v1697, %v1693
    %v1866 = vpack.c.b16 %v1702, %v1698
    %v1867 = vpack.c.b16 %v1703, %v1699
    %v1868 = vpack.c.b16 %v1704, %v1700
    %v1869 = vpack.c.b16 %v1705, %v1701
    %v1870 = vpack.c.b16 %v1710, %v1706
    %v1871 = vpack.c.b16 %v1711, %v1707
    %v1872 = vpack.c.b16 %v1712, %v1708
    %v1873 = vpack.c.b16 %v1713, %v1709
    %v1874 = vpack.c.b16 %v1718, %v1714
    %v1875 = vpack.c.b16 %v1719, %v1715
    %v1876 = vpack.c.b16 %v1720, %v1716
    %v1877 = vpack.c.b16 %v1721, %v1717
    %v1878 = vpack.c.b16 %v1726, %v1722
    %v1879 = vpack.c.b16 %v1727, %v1723
    %v1880 = vpack.c.b16 %v1728, %v1724
    %v1881 = vpack.c.b16 %v1729, %v1725
    %v1882 = vpack.c.b16 %v1734, %v1730
    %v1883 = vpack.c.b16 %v1735, %v1731
    %v1884 = vpack.c.b16 %v1736, %v1732
    %v1885 = vpack.c.b16 %v1737, %v1733
    %v1886 = vpack.c.b16 %v1742, %v1738
    %v1887 = vpack.c.b16 %v1743, %v1739
    %v1888 = vpack.c.b16 %v1744, %v1740
    %v1889 = vpack.c.b16 %v1745, %v1741
    %v1890 = vpack.c.b16 %v1750, %v1746
    %v1891 = vpack.c.b16 %v1751, %v1747
    %v1892 = vpack.c.b16 %v1752, %v1748
    %v1893 = vpack.c.b16 %v1753, %v1749
    %v1894 = vpack.c.b16 %v1758, %v1754
    %v1895 = vpack.c.b16 %v1759, %v1755
    %v1896 = vpack.c.b16 %v1760, %v1756
    %v1897 = vpack.c.b16 %v1761, %v1757
    %v1898 = vpack.c.b16 %v1766, %v1762
    %v1899 = vpack.c.b16 %v1767, %v1763
    %v1900 = vpack.c.b16 %v1768, %v1764
    %v1901 = vpack.c.b16 %v1769, %v1765
    %v1902 = vpack.c.b16 %v1774, %v1770
    %v1903 = vpack.c.b16 %v1775, %v1771
    %v1904 = vpack.c.b16 %v1776, %v1772
    %v1905 = vpack.c.b16 %v1777, %v1773
    %2034 = vmatprep.subr.bf16.mxu0 %v1807
    %2035 = vmatpush1.bf16.msra.mxu0 %v1806
    %2036 = vmatprep.subr.bf16.mxu0 %v1803
    %2037 = vmatpush1.bf16.msra.mxu0 %v1802
    %2038 = vmatprep.subr.bf16.mxu0 %v1799
    %2039 = vmatpush1.bf16.msra.mxu0 %v1798
    %2040 = vmatprep.subr.bf16.mxu0 %v1795
    %2041 = vmatpush1.bf16.msra.mxu0 %v1794
    %2042 = vmatprep.subr.bf16.mxu0 %v1791
    %2043 = vmatpush1.bf16.msra.mxu0 %v1790
    %2044 = vmatprep.subr.bf16.mxu0 %v1787
    %2045 = vmatpush1.bf16.msra.mxu0 %v1786
    %2046 = vmatprep.subr.bf16.mxu0 %v1783
    %2047 = vmatpush1.bf16.msra.mxu0 %v1782
    %2048 = vmatprep.subr.bf16.mxu0 %v1779
    %2049 = vmatpush1.bf16.msra.mxu0 %v1778
    %2050 = vmatprep.subr.bf16.mxu0 %v1839
    %2051 = vmatpush2.bf16.msra.mxu0 %v1838
    %2052 = vmatprep.subr.bf16.mxu0 %v1835
    %2053 = vmatpush2.bf16.msra.mxu0 %v1834
    %2054 = vmatprep.subr.bf16.mxu0 %v1831
    %2055 = vmatpush2.bf16.msra.mxu0 %v1830
    %2056 = vmatprep.subr.bf16.mxu0 %v1827
    %2057 = vmatpush2.bf16.msra.mxu0 %v1826
    %2058 = vmatprep.subr.bf16.mxu0 %v1823
    %2059 = vmatpush2.bf16.msra.mxu0 %v1822
    %2060 = vmatprep.subr.bf16.mxu0 %v1819
    %2061 = vmatpush2.bf16.msra.mxu0 %v1818
    %2062 = vmatprep.subr.bf16.mxu0 %v1815
    %2063 = vmatpush2.bf16.msra.mxu0 %v1814
    %2064 = vmatprep.subr.bf16.mxu0 %v1811
    %2065 = vmatpush2.bf16.msra.mxu0 %v1810
    %2066 = vmatprep.mubr.bf16.mxu0 %v1239
    %2067 = vmatmul.mubr.bf16.gmra.mxu0 %v1238
    %v2068 = vpop.f32.mrf.mxu0
    %v2069 = vadd.f32 %v1377, %v2068
    %v2070 = vpop.f32.mrf.mxu0
    %v2071 = vadd.f32 %v1381, %v2070
    %v2072 = vpop.f32.mrf.mxu0
    %v2073 = vadd.f32 %v1377, %v2072
    %v2074 = vpop.f32.mrf.mxu0
    %v2075 = vadd.f32 %v1381, %v2074
    %2076 = vdwg.mxu0
    %2077 = vmatprep.subr.bf16.mxu0 %v1871
    %2078 = vmatpush1.bf16.msra.mxu0 %v1870
    %2079 = vmatprep.subr.bf16.mxu0 %v1867
    %2080 = vmatpush1.bf16.msra.mxu0 %v1866
    %2081 = vmatprep.subr.bf16.mxu0 %v1863
    %2082 = vmatpush1.bf16.msra.mxu0 %v1862
    %2083 = vmatprep.subr.bf16.mxu0 %v1859
    %2084 = vmatpush1.bf16.msra.mxu0 %v1858
    %2085 = vmatprep.subr.bf16.mxu0 %v1855
    %2086 = vmatpush1.bf16.msra.mxu0 %v1854
    %2087 = vmatprep.subr.bf16.mxu0 %v1851
    %2088 = vmatpush1.bf16.msra.mxu0 %v1850
    %2089 = vmatprep.subr.bf16.mxu0 %v1847
    %2090 = vmatpush1.bf16.msra.mxu0 %v1846
    %2091 = vmatprep.subr.bf16.mxu0 %v1843
    %2092 = vmatpush1.bf16.msra.mxu0 %v1842
    %2093 = vmatprep.subr.bf16.mxu0 %v1903
    %2094 = vmatpush2.bf16.msra.mxu0 %v1902
    %2095 = vmatprep.subr.bf16.mxu0 %v1899
    %2096 = vmatpush2.bf16.msra.mxu0 %v1898
    %2097 = vmatprep.subr.bf16.mxu0 %v1895
    %2098 = vmatpush2.bf16.msra.mxu0 %v1894
    %2099 = vmatprep.subr.bf16.mxu0 %v1891
    %2100 = vmatpush2.bf16.msra.mxu0 %v1890
    %2101 = vmatprep.subr.bf16.mxu0 %v1887
    %2102 = vmatpush2.bf16.msra.mxu0 %v1886
    %2103 = vmatprep.subr.bf16.mxu0 %v1883
    %2104 = vmatpush2.bf16.msra.mxu0 %v1882
    %2105 = vmatprep.subr.bf16.mxu0 %v1879
    %2106 = vmatpush2.bf16.msra.mxu0 %v1878
    %2107 = vmatprep.subr.bf16.mxu0 %v1875
    %2108 = vmatpush2.bf16.msra.mxu0 %v1874
    %2109 = vmatprep.mubr.bf16.mxu0 %v1241
    %2110 = vmatmul.mubr.bf16.gmra.mxu0 %v1240
    %v2111 = vpop.f32.mrf.mxu0
    %v2112 = vadd.f32 %v2069, %v2111
    %v2113 = vpop.f32.mrf.mxu0
    %v2114 = vadd.f32 %v2071, %v2113
    %v2115 = vpop.f32.mrf.mxu0
    %v2116 = vadd.f32 %v2073, %v2115
    %v2117 = vpop.f32.mrf.mxu0
    %v2118 = vadd.f32 %v2075, %v2117
    %2119 = vdwg.mxu0
    %2120 = vmatprep.subr.bf16.mxu0 %v1809
    %2121 = vmatpush1.bf16.msra.mxu0 %v1808
    %2122 = vmatprep.subr.bf16.mxu0 %v1805
    %2123 = vmatpush1.bf16.msra.mxu0 %v1804
    %2124 = vmatprep.subr.bf16.mxu0 %v1801
    %2125 = vmatpush1.bf16.msra.mxu0 %v1800
    %2126 = vmatprep.subr.bf16.mxu0 %v1797
    %2127 = vmatpush1.bf16.msra.mxu0 %v1796
    %2128 = vmatprep.subr.bf16.mxu0 %v1793
    %2129 = vmatpush1.bf16.msra.mxu0 %v1792
    %2130 = vmatprep.subr.bf16.mxu0 %v1789
    %2131 = vmatpush1.bf16.msra.mxu0 %v1788
    %2132 = vmatprep.subr.bf16.mxu0 %v1785
    %2133 = vmatpush1.bf16.msra.mxu0 %v1784
    %2134 = vmatprep.subr.bf16.mxu0 %v1781
    %2135 = vmatpush1.bf16.msra.mxu0 %v1780
    %2136 = vmatprep.subr.bf16.mxu0 %v1841
    %2137 = vmatpush2.bf16.msra.mxu0 %v1840
    %2138 = vmatprep.subr.bf16.mxu0 %v1837
    %2139 = vmatpush2.bf16.msra.mxu0 %v1836
    %2140 = vmatprep.subr.bf16.mxu0 %v1833
    %2141 = vmatpush2.bf16.msra.mxu0 %v1832
    %2142 = vmatprep.subr.bf16.mxu0 %v1829
    %2143 = vmatpush2.bf16.msra.mxu0 %v1828
    %2144 = vmatprep.subr.bf16.mxu0 %v1825
    %2145 = vmatpush2.bf16.msra.mxu0 %v1824
    %2146 = vmatprep.subr.bf16.mxu0 %v1821
    %2147 = vmatpush2.bf16.msra.mxu0 %v1820
    %2148 = vmatprep.subr.bf16.mxu0 %v1817
    %2149 = vmatpush2.bf16.msra.mxu0 %v1816
    %2150 = vmatprep.subr.bf16.mxu0 %v1813
    %2151 = vmatpush2.bf16.msra.mxu0 %v1812
    %2152 = vmatprep.mubr.bf16.mxu0 %v1239
    %2153 = vmatmul.mubr.bf16.gmra.mxu0 %v1238
    %v2154 = vpop.f32.mrf.mxu0
    %v2155 = vadd.f32 %v1385, %v2154
    %v2156 = vpop.f32.mrf.mxu0
    %v2157 = vadd.f32 %v1389, %v2156
    %v2158 = vpop.f32.mrf.mxu0
    %v2159 = vadd.f32 %v1385, %v2158
    %v2160 = vpop.f32.mrf.mxu0
    %v2161 = vadd.f32 %v1389, %v2160
    %2162 = vdwg.mxu0
    %2163 = vmatprep.subr.bf16.mxu0 %v1873
    %2164 = vmatpush1.bf16.msra.mxu0 %v1872
    %2165 = vmatprep.subr.bf16.mxu0 %v1869
    %2166 = vmatpush1.bf16.msra.mxu0 %v1868
    %2167 = vmatprep.subr.bf16.mxu0 %v1865
    %2168 = vmatpush1.bf16.msra.mxu0 %v1864
    %2169 = vmatprep.subr.bf16.mxu0 %v1861
    %2170 = vmatpush1.bf16.msra.mxu0 %v1860
    %2171 = vmatprep.subr.bf16.mxu0 %v1857
    %2172 = vmatpush1.bf16.msra.mxu0 %v1856
    %2173 = vmatprep.subr.bf16.mxu0 %v1853
    %2174 = vmatpush1.bf16.msra.mxu0 %v1852
    %2175 = vmatprep.subr.bf16.mxu0 %v1849
    %2176 = vmatpush1.bf16.msra.mxu0 %v1848
    %2177 = vmatprep.subr.bf16.mxu0 %v1845
    %2178 = vmatpush1.bf16.msra.mxu0 %v1844
    %2179 = vmatprep.subr.bf16.mxu0 %v1905
    %2180 = vmatpush2.bf16.msra.mxu0 %v1904
    %2181 = vmatprep.subr.bf16.mxu0 %v1901
    %2182 = vmatpush2.bf16.msra.mxu0 %v1900
    %2183 = vmatprep.subr.bf16.mxu0 %v1897
    %2184 = vmatpush2.bf16.msra.mxu0 %v1896
    %2185 = vmatprep.subr.bf16.mxu0 %v1893
    %2186 = vmatpush2.bf16.msra.mxu0 %v1892
    %2187 = vmatprep.subr.bf16.mxu0 %v1889
    %2188 = vmatpush2.bf16.msra.mxu0 %v1888
    %2189 = vmatprep.subr.bf16.mxu0 %v1885
    %2190 = vmatpush2.bf16.msra.mxu0 %v1884
    %2191 = vmatprep.subr.bf16.mxu0 %v1881
    %2192 = vmatpush2.bf16.msra.mxu0 %v1880
    %2193 = vmatprep.subr.bf16.mxu0 %v1877
    %2194 = vmatpush2.bf16.msra.mxu0 %v1876
    %2195 = vmatprep.mubr.bf16.mxu0 %v1241
    %2196 = vmatmul.mubr.bf16.gmra.mxu0 %v1240
    %v2197 = vpop.f32.mrf.mxu0
    %v2198 = vadd.f32 %v2155, %v2197
    %v2199 = vpop.f32.mrf.mxu0
    %v2200 = vadd.f32 %v2157, %v2199
    %v2201 = vpop.f32.mrf.mxu0
    %v2202 = vadd.f32 %v2159, %v2201
    %v2203 = vpop.f32.mrf.mxu0
    %v2204 = vadd.f32 %v2161, %v2203
    %2205 = vdwg.mxu0
    %v2206 = vmax.f32 %v2112, 0.0
    %v2207 = vmax.f32 %v2114, 0.0
    %v2208 = vmax.f32 %v2198, 0.0
    %v2209 = vmax.f32 %v2200, 0.0
    %v2210 = vmax.f32 %v2116, 0.0
    %v2211 = vmax.f32 %v2118, 0.0
    %v2212 = vmax.f32 %v2202, 0.0
    %v2213 = vmax.f32 %v2204, 0.0
    %v2214 = vpack.c.bf16 %v2210, %v2206
    %v2215 = vpack.c.bf16 %v2211, %v2207
    %v2216 = vpack.c.bf16 %v2212, %v2208
    %v2217 = vpack.c.bf16 %v2213, %v2209
    %v2218 = vld [vmem:[#allocation8] sm:$0xf]
    %v2219 = vld [vmem:[#allocation8 + $0x4] sm:$0xf]
    %v2220 = vld [vmem:[#allocation8 + $0x8] sm:$0xf]
    %v2221 = vld [vmem:[#allocation8 + $0xc] sm:$0xf]
    %v2222 = vld [vmem:[#allocation8 + $0x10] sm:$0xf]
    %v2223 = vld [vmem:[#allocation8 + $0x14] sm:$0xf]
    %v2224 = vld [vmem:[#allocation8 + $0x18] sm:$0xf]
    %v2225 = vld [vmem:[#allocation8 + $0x1c] sm:$0xf]
    %v2226 = vld [vmem:[#allocation8 + $0x20] sm:$0xf]
    %v2227 = vld [vmem:[#allocation8 + $0x24] sm:$0xf]
    %v2228 = vld [vmem:[#allocation8 + $0x28] sm:$0xf]
    %v2229 = vld [vmem:[#allocation8 + $0x2c] sm:$0xf]
    %v2230 = vld [vmem:[#allocation8 + $0x30] sm:$0xf]
    %v2231 = vld [vmem:[#allocation8 + $0x34] sm:$0xf]
    %v2232 = vld [vmem:[#allocation8 + $0x38] sm:$0xf]
    %v2233 = vld [vmem:[#allocation8 + $0x3c] sm:$0xf]
    %v2234 = vld [vmem:[#allocation8 + $0x40] sm:$0xf]
    %v2235 = vld [vmem:[#allocation8 + $0x44] sm:$0xf]
    %v2236 = vld [vmem:[#allocation8 + $0x48] sm:$0xf]
    %v2237 = vld [vmem:[#allocation8 + $0x4c] sm:$0xf]
    %v2238 = vld [vmem:[#allocation8 + $0x50] sm:$0xf]
    %v2239 = vld [vmem:[#allocation8 + $0x54] sm:$0xf]
    %v2240 = vld [vmem:[#allocation8 + $0x58] sm:$0xf]
    %v2241 = vld [vmem:[#allocation8 + $0x5c] sm:$0xf]
    %v2242 = vld [vmem:[#allocation8 + $0x60] sm:$0xf]
    %v2243 = vld [vmem:[#allocation8 + $0x64] sm:$0xf]
    %v2244 = vld [vmem:[#allocation8 + $0x68] sm:$0xf]
    %v2245 = vld [vmem:[#allocation8 + $0x6c] sm:$0xf]
    %v2246 = vld [vmem:[#allocation8 + $0x70] sm:$0xf]
    %v2247 = vld [vmem:[#allocation8 + $0x74] sm:$0xf]
    %v2248 = vld [vmem:[#allocation8 + $0x78] sm:$0xf]
    %v2249 = vld [vmem:[#allocation8 + $0x7c] sm:$0xf]
    %v2250 = vld [vmem:[#allocation8 + $0x80] sm:$0xf]
    %v2251 = vld [vmem:[#allocation8 + $0x84] sm:$0xf]
    %v2252 = vld [vmem:[#allocation8 + $0x88] sm:$0xf]
    %v2253 = vld [vmem:[#allocation8 + $0x8c] sm:$0xf]
    %v2254 = vld [vmem:[#allocation8 + $0x90] sm:$0xf]
    %v2255 = vld [vmem:[#allocation8 + $0x94] sm:$0xf]
    %v2256 = vld [vmem:[#allocation8 + $0x98] sm:$0xf]
    %v2257 = vld [vmem:[#allocation8 + $0x9c] sm:$0xf]
    %v2258 = vld [vmem:[#allocation8 + $0xa0] sm:$0xf]
    %v2259 = vld [vmem:[#allocation8 + $0xa4] sm:$0xf]
    %v2260 = vld [vmem:[#allocation8 + $0xa8] sm:$0xf]
    %v2261 = vld [vmem:[#allocation8 + $0xac] sm:$0xf]
    %v2262 = vld [vmem:[#allocation8 + $0xb0] sm:$0xf]
    %v2263 = vld [vmem:[#allocation8 + $0xb4] sm:$0xf]
    %v2264 = vld [vmem:[#allocation8 + $0xb8] sm:$0xf]
    %v2265 = vld [vmem:[#allocation8 + $0xbc] sm:$0xf]
    %v2266 = vld [vmem:[#allocation8 + $0xc0] sm:$0xf]
    %v2267 = vld [vmem:[#allocation8 + $0xc4] sm:$0xf]
    %v2268 = vld [vmem:[#allocation8 + $0xc8] sm:$0xf]
    %v2269 = vld [vmem:[#allocation8 + $0xcc] sm:$0xf]
    %v2270 = vld [vmem:[#allocation8 + $0xd0] sm:$0xf]
    %v2271 = vld [vmem:[#allocation8 + $0xd4] sm:$0xf]
    %v2272 = vld [vmem:[#allocation8 + $0xd8] sm:$0xf]
    %v2273 = vld [vmem:[#allocation8 + $0xdc] sm:$0xf]
    %v2274 = vld [vmem:[#allocation8 + $0xe0] sm:$0xf]
    %v2275 = vld [vmem:[#allocation8 + $0xe4] sm:$0xf]
    %v2276 = vld [vmem:[#allocation8 + $0xe8] sm:$0xf]
    %v2277 = vld [vmem:[#allocation8 + $0xec] sm:$0xf]
    %v2278 = vld [vmem:[#allocation8 + $0xf0] sm:$0xf]
    %v2279 = vld [vmem:[#allocation8 + $0xf4] sm:$0xf]
    %v2280 = vld [vmem:[#allocation8 + $0xf8] sm:$0xf]
    %v2281 = vld [vmem:[#allocation8 + $0xfc] sm:$0xf]
    %v2282 = vld [vmem:[#allocation10 + $0x3] sm:$0x1]
    %v2283 = vlaneseq
    %v2284 = vshrl.u32 %v2283, 7
    %v2285 = vsub.s32 0, %v2284
    %v2286 = vrot.slane %v2282, %v2285
    %v2351 = vunpack.c.l.b16 %v2218
    %v2352 = vunpack.c.l.b16 %v2219
    %v2353 = vunpack.c.l.b16 %v2220
    %v2354 = vunpack.c.l.b16 %v2221
    %v2355 = vunpack.c.l.b16 %v2222
    %v2356 = vunpack.c.l.b16 %v2223
    %v2357 = vunpack.c.l.b16 %v2224
    %v2358 = vunpack.c.l.b16 %v2225
    %v2359 = vunpack.c.l.b16 %v2226
    %v2360 = vunpack.c.l.b16 %v2227
    %v2361 = vunpack.c.l.b16 %v2228
    %v2362 = vunpack.c.l.b16 %v2229
    %v2363 = vunpack.c.l.b16 %v2230
    %v2364 = vunpack.c.l.b16 %v2231
    %v2365 = vunpack.c.l.b16 %v2232
    %v2366 = vunpack.c.l.b16 %v2233
    %v2367 = vunpack.c.l.b16 %v2234
    %v2368 = vunpack.c.l.b16 %v2235
    %v2369 = vunpack.c.l.b16 %v2236
    %v2370 = vunpack.c.l.b16 %v2237
    %v2371 = vunpack.c.l.b16 %v2238
    %v2372 = vunpack.c.l.b16 %v2239
    %v2373 = vunpack.c.l.b16 %v2240
    %v2374 = vunpack.c.l.b16 %v2241
    %v2375 = vunpack.c.l.b16 %v2242
    %v2376 = vunpack.c.l.b16 %v2243
    %v2377 = vunpack.c.l.b16 %v2244
    %v2378 = vunpack.c.l.b16 %v2245
    %v2379 = vunpack.c.l.b16 %v2246
    %v2380 = vunpack.c.l.b16 %v2247
    %v2381 = vunpack.c.l.b16 %v2248
    %v2382 = vunpack.c.l.b16 %v2249
    %v2383 = vunpack.c.l.b16 %v2250
    %v2384 = vunpack.c.l.b16 %v2251
    %v2385 = vunpack.c.l.b16 %v2252
    %v2386 = vunpack.c.l.b16 %v2253
    %v2387 = vunpack.c.l.b16 %v2254
    %v2388 = vunpack.c.l.b16 %v2255
    %v2389 = vunpack.c.l.b16 %v2256
    %v2390 = vunpack.c.l.b16 %v2257
    %v2391 = vunpack.c.l.b16 %v2258
    %v2392 = vunpack.c.l.b16 %v2259
    %v2393 = vunpack.c.l.b16 %v2260
    %v2394 = vunpack.c.l.b16 %v2261
    %v2395 = vunpack.c.l.b16 %v2262
    %v2396 = vunpack.c.l.b16 %v2263
    %v2397 = vunpack.c.l.b16 %v2264
    %v2398 = vunpack.c.l.b16 %v2265
    %v2399 = vunpack.c.l.b16 %v2266
    %v2400 = vunpack.c.l.b16 %v2267
    %v2401 = vunpack.c.l.b16 %v2268
    %v2402 = vunpack.c.l.b16 %v2269
    %v2403 = vunpack.c.l.b16 %v2270
    %v2404 = vunpack.c.l.b16 %v2271
    %v2405 = vunpack.c.l.b16 %v2272
    %v2406 = vunpack.c.l.b16 %v2273
    %v2407 = vunpack.c.l.b16 %v2274
    %v2408 = vunpack.c.l.b16 %v2275
    %v2409 = vunpack.c.l.b16 %v2276
    %v2410 = vunpack.c.l.b16 %v2277
    %v2411 = vunpack.c.l.b16 %v2278
    %v2412 = vunpack.c.l.b16 %v2279
    %v2413 = vunpack.c.l.b16 %v2280
    %v2414 = vunpack.c.l.b16 %v2281
    %v2415 = vpack.c.b16 %v2352, %v2351
    %v2416 = vpack.c.b16 %v2354, %v2353
    %v2417 = vpack.c.b16 %v2356, %v2355
    %v2418 = vpack.c.b16 %v2358, %v2357
    %v2419 = vpack.c.b16 %v2360, %v2359
    %v2420 = vpack.c.b16 %v2362, %v2361
    %v2421 = vpack.c.b16 %v2364, %v2363
    %v2422 = vpack.c.b16 %v2366, %v2365
    %v2423 = vpack.c.b16 %v2368, %v2367
    %v2424 = vpack.c.b16 %v2370, %v2369
    %v2425 = vpack.c.b16 %v2372, %v2371
    %v2426 = vpack.c.b16 %v2374, %v2373
    %v2427 = vpack.c.b16 %v2376, %v2375
    %v2428 = vpack.c.b16 %v2378, %v2377
    %v2429 = vpack.c.b16 %v2380, %v2379
    %v2430 = vpack.c.b16 %v2382, %v2381
    %v2431 = vpack.c.b16 %v2384, %v2383
    %v2432 = vpack.c.b16 %v2386, %v2385
    %v2433 = vpack.c.b16 %v2388, %v2387
    %v2434 = vpack.c.b16 %v2390, %v2389
    %v2435 = vpack.c.b16 %v2392, %v2391
    %v2436 = vpack.c.b16 %v2394, %v2393
    %v2437 = vpack.c.b16 %v2396, %v2395
    %v2438 = vpack.c.b16 %v2398, %v2397
    %v2439 = vpack.c.b16 %v2400, %v2399
    %v2440 = vpack.c.b16 %v2402, %v2401
    %v2441 = vpack.c.b16 %v2404, %v2403
    %v2442 = vpack.c.b16 %v2406, %v2405
    %v2443 = vpack.c.b16 %v2408, %v2407
    %v2444 = vpack.c.b16 %v2410, %v2409
    %v2445 = vpack.c.b16 %v2412, %v2411
    %v2446 = vpack.c.b16 %v2414, %v2413
    %2479 = vmatprep.subr.bf16.mxu0 0
    %2480 = vmatpush1.bf16.msra.mxu0 %v2422
    %2481 = vmatprep.subr.bf16.mxu0 0
    %2482 = vmatpush1.bf16.msra.mxu0 %v2421
    %2483 = vmatprep.subr.bf16.mxu0 0
    %2484 = vmatpush1.bf16.msra.mxu0 %v2420
    %2485 = vmatprep.subr.bf16.mxu0 0
    %2486 = vmatpush1.bf16.msra.mxu0 %v2419
    %2487 = vmatprep.subr.bf16.mxu0 0
    %2488 = vmatpush1.bf16.msra.mxu0 %v2418
    %2489 = vmatprep.subr.bf16.mxu0 0
    %2490 = vmatpush1.bf16.msra.mxu0 %v2417
    %2491 = vmatprep.subr.bf16.mxu0 0
    %2492 = vmatpush1.bf16.msra.mxu0 %v2416
    %2493 = vmatprep.subr.bf16.mxu0 0
    %2494 = vmatpush1.bf16.msra.mxu0 %v2415
    %2495 = vmatprep.subr.bf16.mxu0 0
    %2496 = vmatpush2.bf16.msra.mxu0 %v2430
    %2497 = vmatprep.subr.bf16.mxu0 0
    %2498 = vmatpush2.bf16.msra.mxu0 %v2429
    %2499 = vmatprep.subr.bf16.mxu0 0
    %2500 = vmatpush2.bf16.msra.mxu0 %v2428
    %2501 = vmatprep.subr.bf16.mxu0 0
    %2502 = vmatpush2.bf16.msra.mxu0 %v2427
    %2503 = vmatprep.subr.bf16.mxu0 0
    %2504 = vmatpush2.bf16.msra.mxu0 %v2426
    %2505 = vmatprep.subr.bf16.mxu0 0
    %2506 = vmatpush2.bf16.msra.mxu0 %v2425
    %2507 = vmatprep.subr.bf16.mxu0 0
    %2508 = vmatpush2.bf16.msra.mxu0 %v2424
    %2509 = vmatprep.subr.bf16.mxu0 0
    %2510 = vmatpush2.bf16.msra.mxu0 %v2423
    %2511 = vmatprep.mubr.bf16.mxu0 %v2215
    %2512 = vmatmul.mubr.bf16.gmra.mxu0 %v2214
    %v2513 = vpop.f32.mrf.mxu0
    %v2514 = vadd.f32 %v2286, %v2513
    %v2515 = vpop.f32.mrf.mxu0
    %v2516 = vpop.f32.mrf.mxu0
    %v2517 = vadd.f32 %v2286, %v2516
    %v2518 = vpop.f32.mrf.mxu0
    %2519 = vdwg.mxu0
    %2520 = vmatprep.subr.bf16.mxu0 0
    %2521 = vmatpush1.bf16.msra.mxu0 %v2438
    %2522 = vmatprep.subr.bf16.mxu0 0
    %2523 = vmatpush1.bf16.msra.mxu0 %v2437
    %2524 = vmatprep.subr.bf16.mxu0 0
    %2525 = vmatpush1.bf16.msra.mxu0 %v2436
    %2526 = vmatprep.subr.bf16.mxu0 0
    %2527 = vmatpush1.bf16.msra.mxu0 %v2435
    %2528 = vmatprep.subr.bf16.mxu0 0
    %2529 = vmatpush1.bf16.msra.mxu0 %v2434
    %2530 = vmatprep.subr.bf16.mxu0 0
    %2531 = vmatpush1.bf16.msra.mxu0 %v2433
    %2532 = vmatprep.subr.bf16.mxu0 0
    %2533 = vmatpush1.bf16.msra.mxu0 %v2432
    %2534 = vmatprep.subr.bf16.mxu0 0
    %2535 = vmatpush1.bf16.msra.mxu0 %v2431
    %2536 = vmatprep.subr.bf16.mxu0 0
    %2537 = vmatpush2.bf16.msra.mxu0 %v2446
    %2538 = vmatprep.subr.bf16.mxu0 0
    %2539 = vmatpush2.bf16.msra.mxu0 %v2445
    %2540 = vmatprep.subr.bf16.mxu0 0
    %2541 = vmatpush2.bf16.msra.mxu0 %v2444
    %2542 = vmatprep.subr.bf16.mxu0 0
    %2543 = vmatpush2.bf16.msra.mxu0 %v2443
    %2544 = vmatprep.subr.bf16.mxu0 0
    %2545 = vmatpush2.bf16.msra.mxu0 %v2442
    %2546 = vmatprep.subr.bf16.mxu0 0
    %2547 = vmatpush2.bf16.msra.mxu0 %v2441
    %2548 = vmatprep.subr.bf16.mxu0 0
    %2549 = vmatpush2.bf16.msra.mxu0 %v2440
    %2550 = vmatprep.subr.bf16.mxu0 0
    %2551 = vmatpush2.bf16.msra.mxu0 %v2439
    %2552 = vmatprep.mubr.bf16.mxu0 %v2217
    %2553 = vmatmul.mubr.bf16.gmra.mxu0 %v2216
    %v2554 = vpop.f32.mrf.mxu0
    %v2555 = vadd.f32 %v2514, %v2554
    %v2556 = vpop.f32.mrf.mxu0
    %v2557 = vpop.f32.mrf.mxu0
    %v2558 = vadd.f32 %v2517, %v2557
    %v2559 = vpop.f32.mrf.mxu0
    %2560 = vdwg.mxu0
    %v2561 = vmul.f32 %v2555, 0.5
    %v2562 = vmul.f32 %v2558, 0.5
    %v2563 = vtanh.pop %v2561
    %v2564 = vtanh.pop %v2562
    %v2565 = vadd.f32 %v2563, 1.0
    %v2566 = vadd.f32 %v2564, 1.0
    %v2567 = vmul.f32 %v2565, 0.5
    %v2568 = vmul.f32 %v2566, 0.5
    %v2569 = vpack.c.bf16 %v2568, %v2567
    %v2571 = vunpack.c.l.b16 %v2569
    %v2572 = vunpack.c.h.b16 %v2569
    %v2573 = vpack.c.b16 %v2571, %v2571
    %v2574 = vpack.c.b16 %v2572, %v2572
    %2577 = vst [vmem:[#allocation11] sm:$0xf] %v2573
    %2578 = vst [vmem:[#allocation11 + $0x4] sm:$0xf] %v2574
    // Predicated region
    $region42: #{tpu_custom_call.1} parent=1 // pred_check
      _
    $region43: #{tpu_custom_call.1} parent=1 // pred_check_branch
      %2580 = sbr.rel (0) target = $region45
    $region44: #{tpu_custom_call.1} parent=1 // pred_region
      %s2582 = ssub.s32 128, 128
      %2583 = vsyncadd [#allocation4], %s2582
      %s2584 = sshll.u32 [#allocation11], 4
      %s2585 = int_to_ptr.vmem [resolvable:$true] %s2584
      %2590 = dma.vmem_to_hbm [thread:$0]  %s2585, 128, %s5, [#allocation4], 64, 64, 4
    $region45: #{tpu_custom_call.1} parent=1 // pred_fallthru
      _
    // Predicated region
    $region46: #{tpu_custom_call.1} parent=1 // pred_check
      _
    $region47: #{tpu_custom_call.1} parent=1 // pred_check_branch
      %2592 = sbr.rel (0) target = $region49
    $region48: #{tpu_custom_call.1} parent=1 // pred_region
      %2593 = dma.done [#allocation4], 128
    $region49: #{tpu_custom_call.1} parent=1 // pred_fallthru
      _
    %2594 = vsyncpa [#allocation3], 1
    %2595 = vsyncpa [#allocation6], 1
    %2596 = vsyncpa [#allocation9], 1
    %2597 = vsyncpa [#allocation4], 1

</llo_original>
